<compile_context>
chip_gen: v5e
topology: v5e:2x2
jax: 0.10.0
libtpu: 0.0.40
codegen_flags: <defaults>
</compile_context>

<pallas_src>
import functools
import math

import jax
import jax.numpy as jnp
from jax import lax
from jax.experimental import pallas as pl
from jax.experimental.pallas import tpu as pltpu

EPS = 1e-5        # PyTorch LayerNorm default eps
OUT_W = 128       # lane-dense packed output width (value + N*H attention weights)


def _layer_norm(x, gamma, beta):
    mu = jnp.mean(x, axis=-1, keepdims=True)
    var = jnp.mean(jnp.square(x - mu), axis=-1, keepdims=True)
    return (x - mu) * lax.rsqrt(var + EPS) * gamma + beta


def critic_kernel(num_agents, num_heads, state_dim, scale,
                  x_ref,
                  wqkv_ref, bqkv_ref, wo_ref, bo_ref, g_att_ref, b_att_ref,
                  w1_ref, b1_ref, g1_ref, be1_ref,
                  w2_ref, b2_ref, g2_ref, be2_ref,
                  w3_ref, b3_ref, g3_ref, be3_ref,
                  wout_ref, bout_ref,
                  out_ref):
    N, H, D = num_agents, num_heads, state_dim
    dh = D // H
    f32, bf16 = jnp.float32, jnp.bfloat16
    TB = x_ref.shape[0]
    inv_n = 1.0 / N

    # Head masks over the D feature lanes (head h owns lanes [h*dh, (h+1)*dh)).
    lane = lax.broadcasted_iota(jnp.int32, (1, D), 1)
    head_mask = [((lane >= h * dh) & (lane < (h + 1) * dh)).astype(f32) for h in range(H)]

    # ---- per-agent fused QKV projection: aligned lane slices + one MXU matmul each ----
    x = x_ref[...]                                            # (TB, N*D) bf16
    q, k, v = [], [], []
    for i in range(N):
        xi = x[:, i * D:(i + 1) * D]                          # (TB, D) aligned lane slice
        qkv = jnp.dot(xi, wqkv_ref[...],
                      preferred_element_type=f32) + bqkv_ref[...]   # (TB, 3D) f32
        q.append(qkv[:, 0 * D:1 * D] * scale)                 # fold softmax scale into q
        k.append(qkv[:, 1 * D:2 * D])
        v.append(qkv[:, 2 * D:3 * D])

    g_acc = jnp.zeros((TB, D), f32)                           # mean over agents of LN(attended)
    attw = [[jnp.zeros((TB, 1), f32) for _ in range(N)] for _ in range(H)]

    # ---- attention, statically unrolled over (query agent, key agent, head) ----
    for i in range(N):
        # scores via masked lane reductions — everything stays 2-D and f32
        s = [[None] * N for _ in range(H)]
        for j in range(N):
            prod = q[i] * k[j]                                # (TB, D) VPU
            for h in range(H):
                s[h][j] = jnp.sum(prod * head_mask[h], axis=-1, keepdims=True)   # (TB, 1)

        # softmax over key agents per head (f32 exp, approx reciprocal on the EUP)
        w = [[None] * N for _ in range(H)]
        for h in range(H):
            m = s[h][0]
            for j in range(1, N):
                m = jnp.maximum(m, s[h][j])
            e = [jnp.exp(s[h][j] - m) for j in range(N)]
            denom = e[0]
            for j in range(1, N):
                denom = denom + e[j]
            inv = pl.reciprocal(denom, approx=True)
            for j in range(N):
                w[h][j] = e[j] * inv                          # (TB, 1)
                attw[h][j] = attw[h][j] + w[h][j] * inv_n     # mean over query agents

        # context: VPU head->lane expansion, f32 accumulation (no MXU, no bf16 probs)
        ctx = jnp.zeros((TB, D), f32)
        for j in range(N):
            wexp = w[0][j] * head_mask[0]
            for h in range(1, H):
                wexp = wexp + w[h][j] * head_mask[h]          # (TB, D)
            ctx = ctx + wexp * v[j]

        # output projection + attention LayerNorm, accumulate the over-agents mean
        attended = jnp.dot(ctx.astype(bf16), wo_ref[...],
                           preferred_element_type=f32) + bo_ref[...]
        attended = _layer_norm(attended, g_att_ref[...], b_att_ref[...])
        g_acc = g_acc + attended * inv_n

    # ---- secure MLP: Linear -> LayerNorm -> ReLU (Dropout == identity in eval) ----
    def mlp_block(hdn, w_r, b_r, gm_r, bt_r):
        y = jnp.dot(hdn.astype(bf16), w_r[...], preferred_element_type=f32) + b_r[...]
        return jnp.maximum(_layer_norm(y, gm_r[...], bt_r[...]), 0.0)

    h1 = mlp_block(g_acc, w1_ref, b1_ref, g1_ref, be1_ref)
    h2 = mlp_block(h1, w2_ref, b2_ref, g2_ref, be2_ref)
    h3 = mlp_block(h2, w3_ref, b3_ref, g3_ref, be3_ref)

    # final hidden -> 1 head as an f32 lane reduction (avoids a 1-output-lane MXU matmul)
    value = jnp.sum(h3 * wout_ref[...], axis=-1, keepdims=True) + bout_ref[...]
    value = jnp.clip(value, -1000.0, 1000.0)                  # (TB, 1)

    # ---- pack value + attention weights into one lane-dense (TB, OUT_W) output slab ----
    out_lane = lax.broadcasted_iota(jnp.int32, (1, OUT_W), 1)
    slab = value * (out_lane == 0).astype(f32)
    for h in range(H):
        for j in range(N):
            slab = slab + attw[h][j] * (out_lane == (1 + h * N + j)).astype(f32)
    out_ref[...] = slab


def _round_up(x, m):
    return ((x + m - 1) // m) * m


def secure_centralized_critic_forward(combined_states, params, *,
                                      num_agents, state_dim, num_heads,
                                      block_b=512):
    """Returns (value (B,), attention_weights (B, H, N))."""
    B, in_dim = combined_states.shape
    N, D, H = num_agents, state_dim, num_heads
    assert in_dim == N * D
    assert D % H == 0
    assert 1 + N * H <= OUT_W
    scale = 1.0 / math.sqrt(D // H)
    f32, bf16 = jnp.float32, jnp.bfloat16

    # Batch tile: multiple of 8 sublanes; use >= 2 grid steps whenever B allows so the
    # "parallel" batch axis can shard across both v7x TensorCores.  No host padding —
    # the ragged last tile is handled by Pallas block clamping (the kernel is row-local,
    # so stale rows in the boundary tile never contaminate valid rows and their output
    # rows are never written back).
    n_tiles = max(2, pl.cdiv(B, block_b)) if B > 8 else 1
    TB = max(8, _round_up(pl.cdiv(B, n_tiles), 8))
    grid_b = pl.cdiv(B, TB)

    x = combined_states.astype(bf16)            # halves the only DMA that scales with grid

    wqkv = jnp.concatenate([params["wq"], params["wk"], params["wv"]], axis=1).astype(bf16)
    bqkv = jnp.concatenate([params["bq"], params["bk"], params["bv"]], axis=1).astype(f32)

    weights = [
        wqkv, bqkv,
        params["wo"].astype(bf16), params["bo"].astype(f32),
        params["g_att"].astype(f32), params["b_att"].astype(f32),
        params["w1"].astype(bf16), params["b1"].astype(f32),
        params["g1"].astype(f32), params["be1"].astype(f32),
        params["w2"].astype(bf16), params["b2"].astype(f32),
        params["g2"].astype(f32), params["be2"].astype(f32),
        params["w3"].astype(bf16), params["b3"].astype(f32),
        params["g3"].astype(f32), params["be3"].astype(f32),
        jnp.transpose(params["wout"]).astype(f32),   # (1, hidden_dims[-1]) row, kept f32
        params["bout"].astype(f32),                  # (1, 1)
    ]

    def wspec(arr):   # weights: full block, constant index map -> resident in VMEM
        return pl.BlockSpec(arr.shape, lambda i: (0, 0))

    grid_spec = pltpu.PrefetchScalarGridSpec(
        num_scalar_prefetch=0,
        grid=(grid_b,),
        in_specs=[pl.BlockSpec((TB, N * D), lambda i: (i, 0))] +
                 [wspec(a) for a in weights],
        out_specs=pl.BlockSpec((TB, OUT_W), lambda i: (i, 0)),
    )

    kernel = functools.partial(critic_kernel, N, H, D, scale)
    out = pl.pallas_call(
        kernel,
        out_shape=jax.ShapeDtypeStruct((B, OUT_W), f32),
        grid_spec=grid_spec,
        compiler_params=pltpu.CompilerParams(
            dimension_semantics=("parallel",),        # shard batch tiles across TCs
            vmem_limit_bytes=32 * 1024 * 1024),       # real working set is a few MiB
    )(x, *weights)

    value = out[:, 0]                                 # (B,)  == value.squeeze(-1)
    attw = out[:, 1:1 + H * N].reshape(B, H, N)       # mean-over-query attention weights
    return value, attw


def init_params(key, state_dim, hidden_dims):
    """Deterministic parameter init (he_normal for MLP, xavier_uniform for attention)."""
    D = state_dim
    ks = list(jax.random.split(key, 16))

    def he(k, fin, fout):
        return jax.random.normal(k, (fin, fout), jnp.float32) * math.sqrt(2.0 / fin)

    def xavier(k, fin, fout):
        lim = math.sqrt(6.0 / (fin + fout))
        return jax.random.uniform(k, (fin, fout), jnp.float32, -lim, lim)

    p = {}
    p["wq"] = xavier(ks[0], D, D); p["bq"] = jnp.zeros((1, D), jnp.float32)
    p["wk"] = xavier(ks[1], D, D); p["bk"] = jnp.zeros((1, D), jnp.float32)
    p["wv"] = xavier(ks[2], D, D); p["bv"] = jnp.zeros((1, D), jnp.float32)
    p["wo"] = xavier(ks[3], D, D); p["bo"] = jnp.zeros((1, D), jnp.float32)
    p["g_att"] = jnp.ones((1, D), jnp.float32)
    p["b_att"] = jnp.zeros((1, D), jnp.float32)

    dims = [D] + list(hidden_dims)
    for i in range(3):
        fin, fout = dims[i], dims[i + 1]
        p[f"w{i+1}"] = he(ks[4 + i], fin, fout)
        p[f"b{i+1}"] = jnp.zeros((1, fout), jnp.float32)
        p[f"g{i+1}"] = jnp.ones((1, fout), jnp.float32)
        p[f"be{i+1}"] = jnp.zeros((1, fout), jnp.float32)
    p["wout"] = he(ks[8], hidden_dims[-1], 1)
    p["bout"] = jnp.zeros((1, 1), jnp.float32)
    return p


def reference_forward(combined_states, params, *, num_agents, state_dim, num_heads):
    """Pure-JAX f32 reference of the same forward pass (for correctness check)."""
    B = combined_states.shape[0]
    x = combined_states.reshape(B, num_agents, state_dim)
    D = state_dim
    dh = D // num_heads
    scale = 1.0 / math.sqrt(dh)

    q = jnp.einsum("bnd,de->bne", x, params["wq"]) + params["bq"]
    k = jnp.einsum("bnd,de->bne", x, params["wk"]) + params["bk"]
    v = jnp.einsum("bnd,de->bne", x, params["wv"]) + params["bv"]

    ctx_parts, wm_parts = [], []
    for h in range(num_heads):
        lo = h * dh
        qh, kh, vh = q[..., lo:lo + dh], k[..., lo:lo + dh], v[..., lo:lo + dh]
        s = jnp.einsum("bnd,bmd->bnm", qh, kh) * scale
        w = jax.nn.softmax(s, axis=-1)
        ctx_parts.append(jnp.einsum("bnm,bmd->bnd", w, vh))
        wm_parts.append(jnp.mean(w, axis=1))
    ctx = jnp.concatenate(ctx_parts, axis=-1)
    attw = jnp.stack(wm_parts, axis=1)

    attended = jnp.einsum("bnd,de->bne", ctx, params["wo"]) + params["bo"]
    attended = _layer_norm(attended, params["g_att"], params["b_att"])
    g = jnp.mean(attended, axis=1)

    h_act = g
    for i in range(3):
        y = h_act @ params[f"w{i+1}"] + params[f"b{i+1}"]
        y = _layer_norm(y, params[f"g{i+1}"], params[f"be{i+1}"])
        h_act = jnp.maximum(y, 0.0)
    value = jnp.clip(h_act @ params["wout"] + params["bout"], -1000.0, 1000.0)
    return value[:, 0], attw


if __name__ == "__main__":
    # Small shapes consistent with the module: num_heads = min(8, state_dim // 64),
    # hidden_dims = [512, 256, 128] (module defaults; all lane-dense 128 multiples).
    B = 13                                   # deliberately not a multiple of the tile
    STATE_DIM = 128
    NUM_AGENTS = 3
    NUM_HEADS = min(8, STATE_DIM // 64)      # = 2
    HIDDEN_DIMS = [512, 256, 128]

    key = jax.random.PRNGKey(0)
    kx, kp = jax.random.split(key)
    combined_states = jax.random.normal(
        kx, (B, NUM_AGENTS * STATE_DIM), jnp.float32)
    params = init_params(kp, STATE_DIM, HIDDEN_DIMS)

    value, attn_weights = secure_centralized_critic_forward(
        combined_states, params,
        num_agents=NUM_AGENTS, state_dim=STATE_DIM, num_heads=NUM_HEADS,
        block_b=8)                           # small tile -> multi-step grid + ragged tail
    jax.block_until_ready((value, attn_weights))

    v_ref, w_ref = reference_forward(
        combined_states, params,
        num_agents=NUM_AGENTS, state_dim=STATE_DIM, num_heads=NUM_HEADS)

    assert value.shape == (B,)
    assert attn_weights.shape == (B, NUM_HEADS, NUM_AGENTS)
    assert jnp.allclose(value, v_ref, atol=5e-2, rtol=5e-2)
    assert jnp.allclose(attn_weights, w_ref, atol=5e-2, rtol=5e-2)

    print("KERNEL_OK")
</pallas_src>

<mosaic_0001>
module attributes {stable_mosaic.version = 11 : i64} {
  func.func @critic_kernel(%arg0: i32, %arg1: memref<8x384xbf16, #tpu.memory_space<vmem>>, %arg2: memref<128x384xbf16, #tpu.memory_space<vmem>>, %arg3: memref<1x384xf32, #tpu.memory_space<vmem>>, %arg4: memref<128x128xbf16, #tpu.memory_space<vmem>>, %arg5: memref<1x128xf32, #tpu.memory_space<vmem>>, %arg6: memref<1x128xf32, #tpu.memory_space<vmem>>, %arg7: memref<1x128xf32, #tpu.memory_space<vmem>>, %arg8: memref<128x512xbf16, #tpu.memory_space<vmem>>, %arg9: memref<1x512xf32, #tpu.memory_space<vmem>>, %arg10: memref<1x512xf32, #tpu.memory_space<vmem>>, %arg11: memref<1x512xf32, #tpu.memory_space<vmem>>, %arg12: memref<512x256xbf16, #tpu.memory_space<vmem>>, %arg13: memref<1x256xf32, #tpu.memory_space<vmem>>, %arg14: memref<1x256xf32, #tpu.memory_space<vmem>>, %arg15: memref<1x256xf32, #tpu.memory_space<vmem>>, %arg16: memref<256x128xbf16, #tpu.memory_space<vmem>>, %arg17: memref<1x128xf32, #tpu.memory_space<vmem>>, %arg18: memref<1x128xf32, #tpu.memory_space<vmem>>, %arg19: memref<1x128xf32, #tpu.memory_space<vmem>>, %arg20: memref<1x128xf32, #tpu.memory_space<vmem>>, %arg21: memref<1x1xf32, #tpu.memory_space<vmem>>, %arg22: memref<8x128xf32, #tpu.memory_space<vmem>>) attributes {dimension_semantics = [#tpu.dimension_semantics<parallel>], iteration_bounds = array<i64: 2>, scalar_prefetch = 0 : i64, scratch_operands = 0 : i64, tpu.core_type = #tpu.core_type<tc>, window_params = [{transform_indices = @transform_0, window_bounds = array<i64: 8, 384>}, {pipeline_mode = #tpu.pipeline_mode<synchronous>, transform_indices = @transform_1, window_bounds = array<i64: 128, 384>}, {pipeline_mode = #tpu.pipeline_mode<synchronous>, transform_indices = @transform_2, window_bounds = array<i64: 1, 384>}, {pipeline_mode = #tpu.pipeline_mode<synchronous>, transform_indices = @transform_3, window_bounds = array<i64: 128, 128>}, {pipeline_mode = #tpu.pipeline_mode<synchronous>, transform_indices = @transform_4, window_bounds = array<i64: 1, 128>}, {pipeline_mode = #tpu.pipeline_mode<synchronous>, transform_indices = @transform_5, window_bounds = array<i64: 1, 128>}, {pipeline_mode = #tpu.pipeline_mode<synchronous>, transform_indices = @transform_6, window_bounds = array<i64: 1, 128>}, {pipeline_mode = #tpu.pipeline_mode<synchronous>, transform_indices = @transform_7, window_bounds = array<i64: 128, 512>}, {pipeline_mode = #tpu.pipeline_mode<synchronous>, transform_indices = @transform_8, window_bounds = array<i64: 1, 512>}, {pipeline_mode = #tpu.pipeline_mode<synchronous>, transform_indices = @transform_9, window_bounds = array<i64: 1, 512>}, {pipeline_mode = #tpu.pipeline_mode<synchronous>, transform_indices = @transform_10, window_bounds = array<i64: 1, 512>}, {pipeline_mode = #tpu.pipeline_mode<synchronous>, transform_indices = @transform_11, window_bounds = array<i64: 512, 256>}, {pipeline_mode = #tpu.pipeline_mode<synchronous>, transform_indices = @transform_12, window_bounds = array<i64: 1, 256>}, {pipeline_mode = #tpu.pipeline_mode<synchronous>, transform_indices = @transform_13, window_bounds = array<i64: 1, 256>}, {pipeline_mode = #tpu.pipeline_mode<synchronous>, transform_indices = @transform_14, window_bounds = array<i64: 1, 256>}, {pipeline_mode = #tpu.pipeline_mode<synchronous>, transform_indices = @transform_15, window_bounds = array<i64: 256, 128>}, {pipeline_mode = #tpu.pipeline_mode<synchronous>, transform_indices = @transform_16, window_bounds = array<i64: 1, 128>}, {pipeline_mode = #tpu.pipeline_mode<synchronous>, transform_indices = @transform_17, window_bounds = array<i64: 1, 128>}, {pipeline_mode = #tpu.pipeline_mode<synchronous>, transform_indices = @transform_18, window_bounds = array<i64: 1, 128>}, {pipeline_mode = #tpu.pipeline_mode<synchronous>, transform_indices = @transform_19, window_bounds = array<i64: 1, 128>}, {pipeline_mode = #tpu.pipeline_mode<synchronous>, transform_indices = @transform_20, window_bounds = array<i64: 1, 1>}, {transform_indices = @transform_21, window_bounds = array<i64: 8, 128>}]} {
    %0 = tpu.iota {dimensions = array<i32: 1>} : vector<1x128xi32>
    %c0_i32 = arith.constant 0 : i32
    %1 = vector.broadcast %c0_i32 : i32 to vector<1x128xi32>
    %2 = arith.cmpi sge, %0, %1 : vector<1x128xi32>
    %c64_i32 = arith.constant 64 : i32
    %3 = vector.broadcast %c64_i32 : i32 to vector<1x128xi32>
    %4 = arith.cmpi slt, %0, %3 : vector<1x128xi32>
    %5 = arith.andi %2, %4 : vector<1x128xi1>
    %6 = arith.extui %5 : vector<1x128xi1> to vector<1x128xi32>
    %7 = arith.sitofp %6 : vector<1x128xi32> to vector<1x128xf32>
    %c64_i32_0 = arith.constant 64 : i32
    %8 = vector.broadcast %c64_i32_0 : i32 to vector<1x128xi32>
    %9 = arith.cmpi sge, %0, %8 : vector<1x128xi32>
    %c128_i32 = arith.constant 128 : i32
    %10 = vector.broadcast %c128_i32 : i32 to vector<1x128xi32>
    %11 = arith.cmpi slt, %0, %10 : vector<1x128xi32>
    %12 = arith.andi %9, %11 : vector<1x128xi1>
    %13 = arith.extui %12 : vector<1x128xi1> to vector<1x128xi32>
    %14 = arith.sitofp %13 : vector<1x128xi32> to vector<1x128xf32>
    %c0 = arith.constant 0 : index
    %c0_1 = arith.constant 0 : index
    %15 = vector.load %arg1[%c0, %c0_1] : memref<8x384xbf16, #tpu.memory_space<vmem>>, vector<8x384xbf16>
    %16 = vector.extract_strided_slice %15 {offsets = [0, 0], sizes = [8, 128], strides = [1, 1]} : vector<8x384xbf16> to vector<8x128xbf16>
    %c0_2 = arith.constant 0 : index
    %c0_3 = arith.constant 0 : index
    %17 = vector.load %arg2[%c0_2, %c0_3] : memref<128x384xbf16, #tpu.memory_space<vmem>>, vector<128x384xbf16>
    %cst = arith.constant dense<0.000000e+00> : vector<8x384xf32>
    %18 = tpu.matmul %16, %17, %cst {dimension_numbers = #tpu.dot_dimension_numbers<[1], [0], [0], [1], [0, 0, 1, 1], [], []>} : vector<8x128xbf16>, vector<128x384xbf16>, vector<8x384xf32> -> vector<8x384xf32>
    %c0_4 = arith.constant 0 : index
    %c0_5 = arith.constant 0 : index
    %19 = vector.load %arg3[%c0_4, %c0_5] : memref<1x384xf32, #tpu.memory_space<vmem>>, vector<1x384xf32>
    %20 = vector.broadcast %19 : vector<1x384xf32> to vector<8x384xf32>
    %21 = arith.addf %18, %20 : vector<8x384xf32>
    %22 = vector.extract_strided_slice %21 {offsets = [0, 0], sizes = [8, 128], strides = [1, 1]} : vector<8x384xf32> to vector<8x128xf32>
    %cst_6 = arith.constant 1.250000e-01 : f32
    %23 = vector.broadcast %cst_6 : f32 to vector<8x128xf32>
    %24 = arith.mulf %22, %23 : vector<8x128xf32>
    %25 = vector.extract_strided_slice %21 {offsets = [0, 128], sizes = [8, 128], strides = [1, 1]} : vector<8x384xf32> to vector<8x128xf32>
    %26 = vector.extract_strided_slice %21 {offsets = [0, 256], sizes = [8, 128], strides = [1, 1]} : vector<8x384xf32> to vector<8x128xf32>
    %27 = vector.extract_strided_slice %15 {offsets = [0, 128], sizes = [8, 128], strides = [1, 1]} : vector<8x384xbf16> to vector<8x128xbf16>
    %c0_7 = arith.constant 0 : index
    %c0_8 = arith.constant 0 : index
    %28 = vector.load %arg2[%c0_7, %c0_8] : memref<128x384xbf16, #tpu.memory_space<vmem>>, vector<128x384xbf16>
    %cst_9 = arith.constant dense<0.000000e+00> : vector<8x384xf32>
    %29 = tpu.matmul %27, %28, %cst_9 {dimension_numbers = #tpu.dot_dimension_numbers<[1], [0], [0], [1], [0, 0, 1, 1], [], []>} : vector<8x128xbf16>, vector<128x384xbf16>, vector<8x384xf32> -> vector<8x384xf32>
    %c0_10 = arith.constant 0 : index
    %c0_11 = arith.constant 0 : index
    %30 = vector.load %arg3[%c0_10, %c0_11] : memref<1x384xf32, #tpu.memory_space<vmem>>, vector<1x384xf32>
    %31 = vector.broadcast %30 : vector<1x384xf32> to vector<8x384xf32>
    %32 = arith.addf %29, %31 : vector<8x384xf32>
    %33 = vector.extract_strided_slice %32 {offsets = [0, 0], sizes = [8, 128], strides = [1, 1]} : vector<8x384xf32> to vector<8x128xf32>
    %cst_12 = arith.constant 1.250000e-01 : f32
    %34 = vector.broadcast %cst_12 : f32 to vector<8x128xf32>
    %35 = arith.mulf %33, %34 : vector<8x128xf32>
    %36 = vector.extract_strided_slice %32 {offsets = [0, 128], sizes = [8, 128], strides = [1, 1]} : vector<8x384xf32> to vector<8x128xf32>
    %37 = vector.extract_strided_slice %32 {offsets = [0, 256], sizes = [8, 128], strides = [1, 1]} : vector<8x384xf32> to vector<8x128xf32>
    %38 = vector.extract_strided_slice %15 {offsets = [0, 256], sizes = [8, 128], strides = [1, 1]} : vector<8x384xbf16> to vector<8x128xbf16>
    %c0_13 = arith.constant 0 : index
    %c0_14 = arith.constant 0 : index
    %39 = vector.load %arg2[%c0_13, %c0_14] : memref<128x384xbf16, #tpu.memory_space<vmem>>, vector<128x384xbf16>
    %cst_15 = arith.constant dense<0.000000e+00> : vector<8x384xf32>
    %40 = tpu.matmul %38, %39, %cst_15 {dimension_numbers = #tpu.dot_dimension_numbers<[1], [0], [0], [1], [0, 0, 1, 1], [], []>} : vector<8x128xbf16>, vector<128x384xbf16>, vector<8x384xf32> -> vector<8x384xf32>
    %c0_16 = arith.constant 0 : index
    %c0_17 = arith.constant 0 : index
    %41 = vector.load %arg3[%c0_16, %c0_17] : memref<1x384xf32, #tpu.memory_space<vmem>>, vector<1x384xf32>
    %42 = vector.broadcast %41 : vector<1x384xf32> to vector<8x384xf32>
    %43 = arith.addf %40, %42 : vector<8x384xf32>
    %44 = vector.extract_strided_slice %43 {offsets = [0, 0], sizes = [8, 128], strides = [1, 1]} : vector<8x384xf32> to vector<8x128xf32>
    %cst_18 = arith.constant 1.250000e-01 : f32
    %45 = vector.broadcast %cst_18 : f32 to vector<8x128xf32>
    %46 = arith.mulf %44, %45 : vector<8x128xf32>
    %47 = vector.extract_strided_slice %43 {offsets = [0, 128], sizes = [8, 128], strides = [1, 1]} : vector<8x384xf32> to vector<8x128xf32>
    %48 = vector.extract_strided_slice %43 {offsets = [0, 256], sizes = [8, 128], strides = [1, 1]} : vector<8x384xf32> to vector<8x128xf32>
    %cst_19 = arith.constant 0.000000e+00 : f32
    %49 = vector.broadcast %cst_19 : f32 to vector<8x128xf32>
    %cst_20 = arith.constant 0.000000e+00 : f32
    %50 = vector.broadcast %cst_20 : f32 to vector<8x1xf32>
    %cst_21 = arith.constant 0.000000e+00 : f32
    %51 = vector.broadcast %cst_21 : f32 to vector<8x1xf32>
    %cst_22 = arith.constant 0.000000e+00 : f32
    %52 = vector.broadcast %cst_22 : f32 to vector<8x1xf32>
    %cst_23 = arith.constant 0.000000e+00 : f32
    %53 = vector.broadcast %cst_23 : f32 to vector<8x1xf32>
    %cst_24 = arith.constant 0.000000e+00 : f32
    %54 = vector.broadcast %cst_24 : f32 to vector<8x1xf32>
    %cst_25 = arith.constant 0.000000e+00 : f32
    %55 = vector.broadcast %cst_25 : f32 to vector<8x1xf32>
    %56 = arith.mulf %24, %25 : vector<8x128xf32>
    %57 = vector.broadcast %7 : vector<1x128xf32> to vector<8x128xf32>
    %58 = arith.mulf %56, %57 : vector<8x128xf32>
    %cst_26 = arith.constant dense<0.000000e+00> : vector<8xf32>
    %59 = vector.multi_reduction <add>, %58, %cst_26 [1] : vector<8x128xf32> to vector<8xf32>
    %60 = vector.shape_cast %59 : vector<8xf32> to vector<8x1xf32>
    %61 = vector.broadcast %14 : vector<1x128xf32> to vector<8x128xf32>
    %62 = arith.mulf %56, %61 : vector<8x128xf32>
    %cst_27 = arith.constant dense<0.000000e+00> : vector<8xf32>
    %63 = vector.multi_reduction <add>, %62, %cst_27 [1] : vector<8x128xf32> to vector<8xf32>
    %64 = vector.shape_cast %63 : vector<8xf32> to vector<8x1xf32>
    %65 = arith.mulf %24, %36 : vector<8x128xf32>
    %66 = vector.broadcast %7 : vector<1x128xf32> to vector<8x128xf32>
    %67 = arith.mulf %65, %66 : vector<8x128xf32>
    %cst_28 = arith.constant dense<0.000000e+00> : vector<8xf32>
    %68 = vector.multi_reduction <add>, %67, %cst_28 [1] : vector<8x128xf32> to vector<8xf32>
    %69 = vector.shape_cast %68 : vector<8xf32> to vector<8x1xf32>
    %70 = vector.broadcast %14 : vector<1x128xf32> to vector<8x128xf32>
    %71 = arith.mulf %65, %70 : vector<8x128xf32>
    %cst_29 = arith.constant dense<0.000000e+00> : vector<8xf32>
    %72 = vector.multi_reduction <add>, %71, %cst_29 [1] : vector<8x128xf32> to vector<8xf32>
    %73 = vector.shape_cast %72 : vector<8xf32> to vector<8x1xf32>
    %74 = arith.mulf %24, %47 : vector<8x128xf32>
    %75 = vector.broadcast %7 : vector<1x128xf32> to vector<8x128xf32>
    %76 = arith.mulf %74, %75 : vector<8x128xf32>
    %cst_30 = arith.constant dense<0.000000e+00> : vector<8xf32>
    %77 = vector.multi_reduction <add>, %76, %cst_30 [1] : vector<8x128xf32> to vector<8xf32>
    %78 = vector.shape_cast %77 : vector<8xf32> to vector<8x1xf32>
    %79 = vector.broadcast %14 : vector<1x128xf32> to vector<8x128xf32>
    %80 = arith.mulf %74, %79 : vector<8x128xf32>
    %cst_31 = arith.constant dense<0.000000e+00> : vector<8xf32>
    %81 = vector.multi_reduction <add>, %80, %cst_31 [1] : vector<8x128xf32> to vector<8xf32>
    %82 = vector.shape_cast %81 : vector<8xf32> to vector<8x1xf32>
    %83 = arith.maximumf %60, %69 : vector<8x1xf32>
    %84 = arith.maximumf %83, %78 : vector<8x1xf32>
    %85 = arith.subf %60, %84 : vector<8x1xf32>
    %86 = math.exp %85 : vector<8x1xf32>
    %87 = arith.subf %69, %84 : vector<8x1xf32>
    %88 = math.exp %87 : vector<8x1xf32>
    %89 = arith.subf %78, %84 : vector<8x1xf32>
    %90 = math.exp %89 : vector<8x1xf32>
    %91 = arith.addf %86, %88 : vector<8x1xf32>
    %92 = arith.addf %91, %90 : vector<8x1xf32>
    %93 = tpu.reciprocal %92 {approx = true} : vector<8x1xf32> -> vector<8x1xf32>
    %94 = arith.mulf %86, %93 : vector<8x1xf32>
    %cst_32 = arith.constant 0.333333343 : f32
    %95 = vector.broadcast %cst_32 : f32 to vector<8x1xf32>
    %96 = arith.mulf %94, %95 : vector<8x1xf32>
    %97 = arith.addf %50, %96 : vector<8x1xf32>
    %98 = arith.mulf %88, %93 : vector<8x1xf32>
    %cst_33 = arith.constant 0.333333343 : f32
    %99 = vector.broadcast %cst_33 : f32 to vector<8x1xf32>
    %100 = arith.mulf %98, %99 : vector<8x1xf32>
    %101 = arith.addf %51, %100 : vector<8x1xf32>
    %102 = arith.mulf %90, %93 : vector<8x1xf32>
    %cst_34 = arith.constant 0.333333343 : f32
    %103 = vector.broadcast %cst_34 : f32 to vector<8x1xf32>
    %104 = arith.mulf %102, %103 : vector<8x1xf32>
    %105 = arith.addf %52, %104 : vector<8x1xf32>
    %106 = arith.maximumf %64, %73 : vector<8x1xf32>
    %107 = arith.maximumf %106, %82 : vector<8x1xf32>
    %108 = arith.subf %64, %107 : vector<8x1xf32>
    %109 = math.exp %108 : vector<8x1xf32>
    %110 = arith.subf %73, %107 : vector<8x1xf32>
    %111 = math.exp %110 : vector<8x1xf32>
    %112 = arith.subf %82, %107 : vector<8x1xf32>
    %113 = math.exp %112 : vector<8x1xf32>
    %114 = arith.addf %109, %111 : vector<8x1xf32>
    %115 = arith.addf %114, %113 : vector<8x1xf32>
    %116 = tpu.reciprocal %115 {approx = true} : vector<8x1xf32> -> vector<8x1xf32>
    %117 = arith.mulf %109, %116 : vector<8x1xf32>
    %cst_35 = arith.constant 0.333333343 : f32
    %118 = vector.broadcast %cst_35 : f32 to vector<8x1xf32>
    %119 = arith.mulf %117, %118 : vector<8x1xf32>
    %120 = arith.addf %53, %119 : vector<8x1xf32>
    %121 = arith.mulf %111, %116 : vector<8x1xf32>
    %cst_36 = arith.constant 0.333333343 : f32
    %122 = vector.broadcast %cst_36 : f32 to vector<8x1xf32>
    %123 = arith.mulf %121, %122 : vector<8x1xf32>
    %124 = arith.addf %54, %123 : vector<8x1xf32>
    %125 = arith.mulf %113, %116 : vector<8x1xf32>
    %cst_37 = arith.constant 0.333333343 : f32
    %126 = vector.broadcast %cst_37 : f32 to vector<8x1xf32>
    %127 = arith.mulf %125, %126 : vector<8x1xf32>
    %128 = arith.addf %55, %127 : vector<8x1xf32>
    %cst_38 = arith.constant 0.000000e+00 : f32
    %129 = vector.broadcast %cst_38 : f32 to vector<8x128xf32>
    %130 = vector.broadcast %94 : vector<8x1xf32> to vector<8x128xf32>
    %131 = vector.broadcast %7 : vector<1x128xf32> to vector<8x128xf32>
    %132 = arith.mulf %130, %131 : vector<8x128xf32>
    %133 = vector.broadcast %117 : vector<8x1xf32> to vector<8x128xf32>
    %134 = vector.broadcast %14 : vector<1x128xf32> to vector<8x128xf32>
    %135 = arith.mulf %133, %134 : vector<8x128xf32>
    %136 = arith.addf %132, %135 : vector<8x128xf32>
    %137 = arith.mulf %136, %26 : vector<8x128xf32>
    %138 = arith.addf %129, %137 : vector<8x128xf32>
    %139 = vector.broadcast %98 : vector<8x1xf32> to vector<8x128xf32>
    %140 = vector.broadcast %7 : vector<1x128xf32> to vector<8x128xf32>
    %141 = arith.mulf %139, %140 : vector<8x128xf32>
    %142 = vector.broadcast %121 : vector<8x1xf32> to vector<8x128xf32>
    %143 = vector.broadcast %14 : vector<1x128xf32> to vector<8x128xf32>
    %144 = arith.mulf %142, %143 : vector<8x128xf32>
    %145 = arith.addf %141, %144 : vector<8x128xf32>
    %146 = arith.mulf %145, %37 : vector<8x128xf32>
    %147 = arith.addf %138, %146 : vector<8x128xf32>
    %148 = vector.broadcast %102 : vector<8x1xf32> to vector<8x128xf32>
    %149 = vector.broadcast %7 : vector<1x128xf32> to vector<8x128xf32>
    %150 = arith.mulf %148, %149 : vector<8x128xf32>
    %151 = vector.broadcast %125 : vector<8x1xf32> to vector<8x128xf32>
    %152 = vector.broadcast %14 : vector<1x128xf32> to vector<8x128xf32>
    %153 = arith.mulf %151, %152 : vector<8x128xf32>
    %154 = arith.addf %150, %153 : vector<8x128xf32>
    %155 = arith.mulf %154, %48 : vector<8x128xf32>
    %156 = arith.addf %147, %155 : vector<8x128xf32>
    %157 = arith.truncf %156 : vector<8x128xf32> to vector<8x128xbf16>
    %c0_39 = arith.constant 0 : index
    %c0_40 = arith.constant 0 : index
    %158 = vector.load %arg4[%c0_39, %c0_40] : memref<128x128xbf16, #tpu.memory_space<vmem>>, vector<128x128xbf16>
    %cst_41 = arith.constant dense<0.000000e+00> : vector<8x128xf32>
    %159 = tpu.matmul %157, %158, %cst_41 {dimension_numbers = #tpu.dot_dimension_numbers<[1], [0], [0], [1], [0, 0, 1, 1], [], []>} : vector<8x128xbf16>, vector<128x128xbf16>, vector<8x128xf32> -> vector<8x128xf32>
    %c0_42 = arith.constant 0 : index
    %c0_43 = arith.constant 0 : index
    %160 = vector.load %arg5[%c0_42, %c0_43] : memref<1x128xf32, #tpu.memory_space<vmem>>, vector<1x128xf32>
    %161 = vector.broadcast %160 : vector<1x128xf32> to vector<8x128xf32>
    %162 = arith.addf %159, %161 : vector<8x128xf32>
    %c0_44 = arith.constant 0 : index
    %c0_45 = arith.constant 0 : index
    %163 = vector.load %arg6[%c0_44, %c0_45] : memref<1x128xf32, #tpu.memory_space<vmem>>, vector<1x128xf32>
    %c0_46 = arith.constant 0 : index
    %c0_47 = arith.constant 0 : index
    %164 = vector.load %arg7[%c0_46, %c0_47] : memref<1x128xf32, #tpu.memory_space<vmem>>, vector<1x128xf32>
    %cst_48 = arith.constant dense<0.000000e+00> : vector<8xf32>
    %165 = vector.multi_reduction <add>, %162, %cst_48 [1] : vector<8x128xf32> to vector<8xf32>
    %166 = vector.shape_cast %165 : vector<8xf32> to vector<8x1xf32>
    %cst_49 = arith.constant 1.280000e+02 : f32
    %167 = vector.broadcast %cst_49 : f32 to vector<8x1xf32>
    %168 = arith.divf %166, %167 : vector<8x1xf32>
    %169 = vector.broadcast %168 : vector<8x1xf32> to vector<8x128xf32>
    %170 = arith.subf %162, %169 : vector<8x128xf32>
    %171 = arith.mulf %170, %170 : vector<8x128xf32>
    %cst_50 = arith.constant dense<0.000000e+00> : vector<8xf32>
    %172 = vector.multi_reduction <add>, %171, %cst_50 [1] : vector<8x128xf32> to vector<8xf32>
    %173 = vector.shape_cast %172 : vector<8xf32> to vector<8x1xf32>
    %cst_51 = arith.constant 1.280000e+02 : f32
    %174 = vector.broadcast %cst_51 : f32 to vector<8x1xf32>
    %175 = arith.divf %173, %174 : vector<8x1xf32>
    %176 = vector.broadcast %168 : vector<8x1xf32> to vector<8x128xf32>
    %177 = arith.subf %162, %176 : vector<8x128xf32>
    %cst_52 = arith.constant 9.99999974E-6 : f32
    %178 = vector.broadcast %cst_52 : f32 to vector<8x1xf32>
    %179 = arith.addf %175, %178 : vector<8x1xf32>
    %180 = math.rsqrt %179 : vector<8x1xf32>
    %181 = vector.broadcast %180 : vector<8x1xf32> to vector<8x128xf32>
    %182 = arith.mulf %177, %181 : vector<8x128xf32>
    %183 = vector.broadcast %163 : vector<1x128xf32> to vector<8x128xf32>
    %184 = arith.mulf %182, %183 : vector<8x128xf32>
    %185 = vector.broadcast %164 : vector<1x128xf32> to vector<8x128xf32>
    %186 = arith.addf %184, %185 : vector<8x128xf32>
    %cst_53 = arith.constant 0.333333343 : f32
    %187 = vector.broadcast %cst_53 : f32 to vector<8x128xf32>
    %188 = arith.mulf %186, %187 : vector<8x128xf32>
    %189 = arith.addf %49, %188 : vector<8x128xf32>
    %190 = arith.mulf %35, %25 : vector<8x128xf32>
    %191 = vector.broadcast %7 : vector<1x128xf32> to vector<8x128xf32>
    %192 = arith.mulf %190, %191 : vector<8x128xf32>
    %cst_54 = arith.constant dense<0.000000e+00> : vector<8xf32>
    %193 = vector.multi_reduction <add>, %192, %cst_54 [1] : vector<8x128xf32> to vector<8xf32>
    %194 = vector.shape_cast %193 : vector<8xf32> to vector<8x1xf32>
    %195 = vector.broadcast %14 : vector<1x128xf32> to vector<8x128xf32>
    %196 = arith.mulf %190, %195 : vector<8x128xf32>
    %cst_55 = arith.constant dense<0.000000e+00> : vector<8xf32>
    %197 = vector.multi_reduction <add>, %196, %cst_55 [1] : vector<8x128xf32> to vector<8xf32>
    %198 = vector.shape_cast %197 : vector<8xf32> to vector<8x1xf32>
    %199 = arith.mulf %35, %36 : vector<8x128xf32>
    %200 = vector.broadcast %7 : vector<1x128xf32> to vector<8x128xf32>
    %201 = arith.mulf %199, %200 : vector<8x128xf32>
    %cst_56 = arith.constant dense<0.000000e+00> : vector<8xf32>
    %202 = vector.multi_reduction <add>, %201, %cst_56 [1] : vector<8x128xf32> to vector<8xf32>
    %203 = vector.shape_cast %202 : vector<8xf32> to vector<8x1xf32>
    %204 = vector.broadcast %14 : vector<1x128xf32> to vector<8x128xf32>
    %205 = arith.mulf %199, %204 : vector<8x128xf32>
    %cst_57 = arith.constant dense<0.000000e+00> : vector<8xf32>
    %206 = vector.multi_reduction <add>, %205, %cst_57 [1] : vector<8x128xf32> to vector<8xf32>
    %207 = vector.shape_cast %206 : vector<8xf32> to vector<8x1xf32>
    %208 = arith.mulf %35, %47 : vector<8x128xf32>
    %209 = vector.broadcast %7 : vector<1x128xf32> to vector<8x128xf32>
    %210 = arith.mulf %208, %209 : vector<8x128xf32>
    %cst_58 = arith.constant dense<0.000000e+00> : vector<8xf32>
    %211 = vector.multi_reduction <add>, %210, %cst_58 [1] : vector<8x128xf32> to vector<8xf32>
    %212 = vector.shape_cast %211 : vector<8xf32> to vector<8x1xf32>
    %213 = vector.broadcast %14 : vector<1x128xf32> to vector<8x128xf32>
    %214 = arith.mulf %208, %213 : vector<8x128xf32>
    %cst_59 = arith.constant dense<0.000000e+00> : vector<8xf32>
    %215 = vector.multi_reduction <add>, %214, %cst_59 [1] : vector<8x128xf32> to vector<8xf32>
    %216 = vector.shape_cast %215 : vector<8xf32> to vector<8x1xf32>
    %217 = arith.maximumf %194, %203 : vector<8x1xf32>
    %218 = arith.maximumf %217, %212 : vector<8x1xf32>
    %219 = arith.subf %194, %218 : vector<8x1xf32>
    %220 = math.exp %219 : vector<8x1xf32>
    %221 = arith.subf %203, %218 : vector<8x1xf32>
    %222 = math.exp %221 : vector<8x1xf32>
    %223 = arith.subf %212, %218 : vector<8x1xf32>
    %224 = math.exp %223 : vector<8x1xf32>
    %225 = arith.addf %220, %222 : vector<8x1xf32>
    %226 = arith.addf %225, %224 : vector<8x1xf32>
    %227 = tpu.reciprocal %226 {approx = true} : vector<8x1xf32> -> vector<8x1xf32>
    %228 = arith.mulf %220, %227 : vector<8x1xf32>
    %cst_60 = arith.constant 0.333333343 : f32
    %229 = vector.broadcast %cst_60 : f32 to vector<8x1xf32>
    %230 = arith.mulf %228, %229 : vector<8x1xf32>
    %231 = arith.addf %97, %230 : vector<8x1xf32>
    %232 = arith.mulf %222, %227 : vector<8x1xf32>
    %cst_61 = arith.constant 0.333333343 : f32
    %233 = vector.broadcast %cst_61 : f32 to vector<8x1xf32>
    %234 = arith.mulf %232, %233 : vector<8x1xf32>
    %235 = arith.addf %101, %234 : vector<8x1xf32>
    %236 = arith.mulf %224, %227 : vector<8x1xf32>
    %cst_62 = arith.constant 0.333333343 : f32
    %237 = vector.broadcast %cst_62 : f32 to vector<8x1xf32>
    %238 = arith.mulf %236, %237 : vector<8x1xf32>
    %239 = arith.addf %105, %238 : vector<8x1xf32>
    %240 = arith.maximumf %198, %207 : vector<8x1xf32>
    %241 = arith.maximumf %240, %216 : vector<8x1xf32>
    %242 = arith.subf %198, %241 : vector<8x1xf32>
    %243 = math.exp %242 : vector<8x1xf32>
    %244 = arith.subf %207, %241 : vector<8x1xf32>
    %245 = math.exp %244 : vector<8x1xf32>
    %246 = arith.subf %216, %241 : vector<8x1xf32>
    %247 = math.exp %246 : vector<8x1xf32>
    %248 = arith.addf %243, %245 : vector<8x1xf32>
    %249 = arith.addf %248, %247 : vector<8x1xf32>
    %250 = tpu.reciprocal %249 {approx = true} : vector<8x1xf32> -> vector<8x1xf32>
    %251 = arith.mulf %243, %250 : vector<8x1xf32>
    %cst_63 = arith.constant 0.333333343 : f32
    %252 = vector.broadcast %cst_63 : f32 to vector<8x1xf32>
    %253 = arith.mulf %251, %252 : vector<8x1xf32>
    %254 = arith.addf %120, %253 : vector<8x1xf32>
    %255 = arith.mulf %245, %250 : vector<8x1xf32>
    %cst_64 = arith.constant 0.333333343 : f32
    %256 = vector.broadcast %cst_64 : f32 to vector<8x1xf32>
    %257 = arith.mulf %255, %256 : vector<8x1xf32>
    %258 = arith.addf %124, %257 : vector<8x1xf32>
    %259 = arith.mulf %247, %250 : vector<8x1xf32>
    %cst_65 = arith.constant 0.333333343 : f32
    %260 = vector.broadcast %cst_65 : f32 to vector<8x1xf32>
    %261 = arith.mulf %259, %260 : vector<8x1xf32>
    %262 = arith.addf %128, %261 : vector<8x1xf32>
    %cst_66 = arith.constant 0.000000e+00 : f32
    %263 = vector.broadcast %cst_66 : f32 to vector<8x128xf32>
    %264 = vector.broadcast %228 : vector<8x1xf32> to vector<8x128xf32>
    %265 = vector.broadcast %7 : vector<1x128xf32> to vector<8x128xf32>
    %266 = arith.mulf %264, %265 : vector<8x128xf32>
    %267 = vector.broadcast %251 : vector<8x1xf32> to vector<8x128xf32>
    %268 = vector.broadcast %14 : vector<1x128xf32> to vector<8x128xf32>
    %269 = arith.mulf %267, %268 : vector<8x128xf32>
    %270 = arith.addf %266, %269 : vector<8x128xf32>
    %271 = arith.mulf %270, %26 : vector<8x128xf32>
    %272 = arith.addf %263, %271 : vector<8x128xf32>
    %273 = vector.broadcast %232 : vector<8x1xf32> to vector<8x128xf32>
    %274 = vector.broadcast %7 : vector<1x128xf32> to vector<8x128xf32>
    %275 = arith.mulf %273, %274 : vector<8x128xf32>
    %276 = vector.broadcast %255 : vector<8x1xf32> to vector<8x128xf32>
    %277 = vector.broadcast %14 : vector<1x128xf32> to vector<8x128xf32>
    %278 = arith.mulf %276, %277 : vector<8x128xf32>
    %279 = arith.addf %275, %278 : vector<8x128xf32>
    %280 = arith.mulf %279, %37 : vector<8x128xf32>
    %281 = arith.addf %272, %280 : vector<8x128xf32>
    %282 = vector.broadcast %236 : vector<8x1xf32> to vector<8x128xf32>
    %283 = vector.broadcast %7 : vector<1x128xf32> to vector<8x128xf32>
    %284 = arith.mulf %282, %283 : vector<8x128xf32>
    %285 = vector.broadcast %259 : vector<8x1xf32> to vector<8x128xf32>
    %286 = vector.broadcast %14 : vector<1x128xf32> to vector<8x128xf32>
    %287 = arith.mulf %285, %286 : vector<8x128xf32>
    %288 = arith.addf %284, %287 : vector<8x128xf32>
    %289 = arith.mulf %288, %48 : vector<8x128xf32>
    %290 = arith.addf %281, %289 : vector<8x128xf32>
    %291 = arith.truncf %290 : vector<8x128xf32> to vector<8x128xbf16>
    %c0_67 = arith.constant 0 : index
    %c0_68 = arith.constant 0 : index
    %292 = vector.load %arg4[%c0_67, %c0_68] : memref<128x128xbf16, #tpu.memory_space<vmem>>, vector<128x128xbf16>
    %cst_69 = arith.constant dense<0.000000e+00> : vector<8x128xf32>
    %293 = tpu.matmul %291, %292, %cst_69 {dimension_numbers = #tpu.dot_dimension_numbers<[1], [0], [0], [1], [0, 0, 1, 1], [], []>} : vector<8x128xbf16>, vector<128x128xbf16>, vector<8x128xf32> -> vector<8x128xf32>
    %c0_70 = arith.constant 0 : index
    %c0_71 = arith.constant 0 : index
    %294 = vector.load %arg5[%c0_70, %c0_71] : memref<1x128xf32, #tpu.memory_space<vmem>>, vector<1x128xf32>
    %295 = vector.broadcast %294 : vector<1x128xf32> to vector<8x128xf32>
    %296 = arith.addf %293, %295 : vector<8x128xf32>
    %c0_72 = arith.constant 0 : index
    %c0_73 = arith.constant 0 : index
    %297 = vector.load %arg6[%c0_72, %c0_73] : memref<1x128xf32, #tpu.memory_space<vmem>>, vector<1x128xf32>
    %c0_74 = arith.constant 0 : index
    %c0_75 = arith.constant 0 : index
    %298 = vector.load %arg7[%c0_74, %c0_75] : memref<1x128xf32, #tpu.memory_space<vmem>>, vector<1x128xf32>
    %cst_76 = arith.constant dense<0.000000e+00> : vector<8xf32>
    %299 = vector.multi_reduction <add>, %296, %cst_76 [1] : vector<8x128xf32> to vector<8xf32>
    %300 = vector.shape_cast %299 : vector<8xf32> to vector<8x1xf32>
    %cst_77 = arith.constant 1.280000e+02 : f32
    %301 = vector.broadcast %cst_77 : f32 to vector<8x1xf32>
    %302 = arith.divf %300, %301 : vector<8x1xf32>
    %303 = vector.broadcast %302 : vector<8x1xf32> to vector<8x128xf32>
    %304 = arith.subf %296, %303 : vector<8x128xf32>
    %305 = arith.mulf %304, %304 : vector<8x128xf32>
    %cst_78 = arith.constant dense<0.000000e+00> : vector<8xf32>
    %306 = vector.multi_reduction <add>, %305, %cst_78 [1] : vector<8x128xf32> to vector<8xf32>
    %307 = vector.shape_cast %306 : vector<8xf32> to vector<8x1xf32>
    %cst_79 = arith.constant 1.280000e+02 : f32
    %308 = vector.broadcast %cst_79 : f32 to vector<8x1xf32>
    %309 = arith.divf %307, %308 : vector<8x1xf32>
    %310 = vector.broadcast %302 : vector<8x1xf32> to vector<8x128xf32>
    %311 = arith.subf %296, %310 : vector<8x128xf32>
    %cst_80 = arith.constant 9.99999974E-6 : f32
    %312 = vector.broadcast %cst_80 : f32 to vector<8x1xf32>
    %313 = arith.addf %309, %312 : vector<8x1xf32>
    %314 = math.rsqrt %313 : vector<8x1xf32>
    %315 = vector.broadcast %314 : vector<8x1xf32> to vector<8x128xf32>
    %316 = arith.mulf %311, %315 : vector<8x128xf32>
    %317 = vector.broadcast %297 : vector<1x128xf32> to vector<8x128xf32>
    %318 = arith.mulf %316, %317 : vector<8x128xf32>
    %319 = vector.broadcast %298 : vector<1x128xf32> to vector<8x128xf32>
    %320 = arith.addf %318, %319 : vector<8x128xf32>
    %cst_81 = arith.constant 0.333333343 : f32
    %321 = vector.broadcast %cst_81 : f32 to vector<8x128xf32>
    %322 = arith.mulf %320, %321 : vector<8x128xf32>
    %323 = arith.addf %189, %322 : vector<8x128xf32>
    %324 = arith.mulf %46, %25 : vector<8x128xf32>
    %325 = vector.broadcast %7 : vector<1x128xf32> to vector<8x128xf32>
    %326 = arith.mulf %324, %325 : vector<8x128xf32>
    %cst_82 = arith.constant dense<0.000000e+00> : vector<8xf32>
    %327 = vector.multi_reduction <add>, %326, %cst_82 [1] : vector<8x128xf32> to vector<8xf32>
    %328 = vector.shape_cast %327 : vector<8xf32> to vector<8x1xf32>
    %329 = vector.broadcast %14 : vector<1x128xf32> to vector<8x128xf32>
    %330 = arith.mulf %324, %329 : vector<8x128xf32>
    %cst_83 = arith.constant dense<0.000000e+00> : vector<8xf32>
    %331 = vector.multi_reduction <add>, %330, %cst_83 [1] : vector<8x128xf32> to vector<8xf32>
    %332 = vector.shape_cast %331 : vector<8xf32> to vector<8x1xf32>
    %333 = arith.mulf %46, %36 : vector<8x128xf32>
    %334 = vector.broadcast %7 : vector<1x128xf32> to vector<8x128xf32>
    %335 = arith.mulf %333, %334 : vector<8x128xf32>
    %cst_84 = arith.constant dense<0.000000e+00> : vector<8xf32>
    %336 = vector.multi_reduction <add>, %335, %cst_84 [1] : vector<8x128xf32> to vector<8xf32>
    %337 = vector.shape_cast %336 : vector<8xf32> to vector<8x1xf32>
    %338 = vector.broadcast %14 : vector<1x128xf32> to vector<8x128xf32>
    %339 = arith.mulf %333, %338 : vector<8x128xf32>
    %cst_85 = arith.constant dense<0.000000e+00> : vector<8xf32>
    %340 = vector.multi_reduction <add>, %339, %cst_85 [1] : vector<8x128xf32> to vector<8xf32>
    %341 = vector.shape_cast %340 : vector<8xf32> to vector<8x1xf32>
    %342 = arith.mulf %46, %47 : vector<8x128xf32>
    %343 = vector.broadcast %7 : vector<1x128xf32> to vector<8x128xf32>
    %344 = arith.mulf %342, %343 : vector<8x128xf32>
    %cst_86 = arith.constant dense<0.000000e+00> : vector<8xf32>
    %345 = vector.multi_reduction <add>, %344, %cst_86 [1] : vector<8x128xf32> to vector<8xf32>
    %346 = vector.shape_cast %345 : vector<8xf32> to vector<8x1xf32>
    %347 = vector.broadcast %14 : vector<1x128xf32> to vector<8x128xf32>
    %348 = arith.mulf %342, %347 : vector<8x128xf32>
    %cst_87 = arith.constant dense<0.000000e+00> : vector<8xf32>
    %349 = vector.multi_reduction <add>, %348, %cst_87 [1] : vector<8x128xf32> to vector<8xf32>
    %350 = vector.shape_cast %349 : vector<8xf32> to vector<8x1xf32>
    %351 = arith.maximumf %328, %337 : vector<8x1xf32>
    %352 = arith.maximumf %351, %346 : vector<8x1xf32>
    %353 = arith.subf %328, %352 : vector<8x1xf32>
    %354 = math.exp %353 : vector<8x1xf32>
    %355 = arith.subf %337, %352 : vector<8x1xf32>
    %356 = math.exp %355 : vector<8x1xf32>
    %357 = arith.subf %346, %352 : vector<8x1xf32>
    %358 = math.exp %357 : vector<8x1xf32>
    %359 = arith.addf %354, %356 : vector<8x1xf32>
    %360 = arith.addf %359, %358 : vector<8x1xf32>
    %361 = tpu.reciprocal %360 {approx = true} : vector<8x1xf32> -> vector<8x1xf32>
    %362 = arith.mulf %354, %361 : vector<8x1xf32>
    %cst_88 = arith.constant 0.333333343 : f32
    %363 = vector.broadcast %cst_88 : f32 to vector<8x1xf32>
    %364 = arith.mulf %362, %363 : vector<8x1xf32>
    %365 = arith.addf %231, %364 : vector<8x1xf32>
    %366 = arith.mulf %356, %361 : vector<8x1xf32>
    %cst_89 = arith.constant 0.333333343 : f32
    %367 = vector.broadcast %cst_89 : f32 to vector<8x1xf32>
    %368 = arith.mulf %366, %367 : vector<8x1xf32>
    %369 = arith.addf %235, %368 : vector<8x1xf32>
    %370 = arith.mulf %358, %361 : vector<8x1xf32>
    %cst_90 = arith.constant 0.333333343 : f32
    %371 = vector.broadcast %cst_90 : f32 to vector<8x1xf32>
    %372 = arith.mulf %370, %371 : vector<8x1xf32>
    %373 = arith.addf %239, %372 : vector<8x1xf32>
    %374 = arith.maximumf %332, %341 : vector<8x1xf32>
    %375 = arith.maximumf %374, %350 : vector<8x1xf32>
    %376 = arith.subf %332, %375 : vector<8x1xf32>
    %377 = math.exp %376 : vector<8x1xf32>
    %378 = arith.subf %341, %375 : vector<8x1xf32>
    %379 = math.exp %378 : vector<8x1xf32>
    %380 = arith.subf %350, %375 : vector<8x1xf32>
    %381 = math.exp %380 : vector<8x1xf32>
    %382 = arith.addf %377, %379 : vector<8x1xf32>
    %383 = arith.addf %382, %381 : vector<8x1xf32>
    %384 = tpu.reciprocal %383 {approx = true} : vector<8x1xf32> -> vector<8x1xf32>
    %385 = arith.mulf %377, %384 : vector<8x1xf32>
    %cst_91 = arith.constant 0.333333343 : f32
    %386 = vector.broadcast %cst_91 : f32 to vector<8x1xf32>
    %387 = arith.mulf %385, %386 : vector<8x1xf32>
    %388 = arith.addf %254, %387 : vector<8x1xf32>
    %389 = arith.mulf %379, %384 : vector<8x1xf32>
    %cst_92 = arith.constant 0.333333343 : f32
    %390 = vector.broadcast %cst_92 : f32 to vector<8x1xf32>
    %391 = arith.mulf %389, %390 : vector<8x1xf32>
    %392 = arith.addf %258, %391 : vector<8x1xf32>
    %393 = arith.mulf %381, %384 : vector<8x1xf32>
    %cst_93 = arith.constant 0.333333343 : f32
    %394 = vector.broadcast %cst_93 : f32 to vector<8x1xf32>
    %395 = arith.mulf %393, %394 : vector<8x1xf32>
    %396 = arith.addf %262, %395 : vector<8x1xf32>
    %cst_94 = arith.constant 0.000000e+00 : f32
    %397 = vector.broadcast %cst_94 : f32 to vector<8x128xf32>
    %398 = vector.broadcast %362 : vector<8x1xf32> to vector<8x128xf32>
    %399 = vector.broadcast %7 : vector<1x128xf32> to vector<8x128xf32>
    %400 = arith.mulf %398, %399 : vector<8x128xf32>
    %401 = vector.broadcast %385 : vector<8x1xf32> to vector<8x128xf32>
    %402 = vector.broadcast %14 : vector<1x128xf32> to vector<8x128xf32>
    %403 = arith.mulf %401, %402 : vector<8x128xf32>
    %404 = arith.addf %400, %403 : vector<8x128xf32>
    %405 = arith.mulf %404, %26 : vector<8x128xf32>
    %406 = arith.addf %397, %405 : vector<8x128xf32>
    %407 = vector.broadcast %366 : vector<8x1xf32> to vector<8x128xf32>
    %408 = vector.broadcast %7 : vector<1x128xf32> to vector<8x128xf32>
    %409 = arith.mulf %407, %408 : vector<8x128xf32>
    %410 = vector.broadcast %389 : vector<8x1xf32> to vector<8x128xf32>
    %411 = vector.broadcast %14 : vector<1x128xf32> to vector<8x128xf32>
    %412 = arith.mulf %410, %411 : vector<8x128xf32>
    %413 = arith.addf %409, %412 : vector<8x128xf32>
    %414 = arith.mulf %413, %37 : vector<8x128xf32>
    %415 = arith.addf %406, %414 : vector<8x128xf32>
    %416 = vector.broadcast %370 : vector<8x1xf32> to vector<8x128xf32>
    %417 = vector.broadcast %7 : vector<1x128xf32> to vector<8x128xf32>
    %418 = arith.mulf %416, %417 : vector<8x128xf32>
    %419 = vector.broadcast %393 : vector<8x1xf32> to vector<8x128xf32>
    %420 = vector.broadcast %14 : vector<1x128xf32> to vector<8x128xf32>
    %421 = arith.mulf %419, %420 : vector<8x128xf32>
    %422 = arith.addf %418, %421 : vector<8x128xf32>
    %423 = arith.mulf %422, %48 : vector<8x128xf32>
    %424 = arith.addf %415, %423 : vector<8x128xf32>
    %425 = arith.truncf %424 : vector<8x128xf32> to vector<8x128xbf16>
    %c0_95 = arith.constant 0 : index
    %c0_96 = arith.constant 0 : index
    %426 = vector.load %arg4[%c0_95, %c0_96] : memref<128x128xbf16, #tpu.memory_space<vmem>>, vector<128x128xbf16>
    %cst_97 = arith.constant dense<0.000000e+00> : vector<8x128xf32>
    %427 = tpu.matmul %425, %426, %cst_97 {dimension_numbers = #tpu.dot_dimension_numbers<[1], [0], [0], [1], [0, 0, 1, 1], [], []>} : vector<8x128xbf16>, vector<128x128xbf16>, vector<8x128xf32> -> vector<8x128xf32>
    %c0_98 = arith.constant 0 : index
    %c0_99 = arith.constant 0 : index
    %428 = vector.load %arg5[%c0_98, %c0_99] : memref<1x128xf32, #tpu.memory_space<vmem>>, vector<1x128xf32>
    %429 = vector.broadcast %428 : vector<1x128xf32> to vector<8x128xf32>
    %430 = arith.addf %427, %429 : vector<8x128xf32>
    %c0_100 = arith.constant 0 : index
    %c0_101 = arith.constant 0 : index
    %431 = vector.load %arg6[%c0_100, %c0_101] : memref<1x128xf32, #tpu.memory_space<vmem>>, vector<1x128xf32>
    %c0_102 = arith.constant 0 : index
    %c0_103 = arith.constant 0 : index
    %432 = vector.load %arg7[%c0_102, %c0_103] : memref<1x128xf32, #tpu.memory_space<vmem>>, vector<1x128xf32>
    %cst_104 = arith.constant dense<0.000000e+00> : vector<8xf32>
    %433 = vector.multi_reduction <add>, %430, %cst_104 [1] : vector<8x128xf32> to vector<8xf32>
    %434 = vector.shape_cast %433 : vector<8xf32> to vector<8x1xf32>
    %cst_105 = arith.constant 1.280000e+02 : f32
    %435 = vector.broadcast %cst_105 : f32 to vector<8x1xf32>
    %436 = arith.divf %434, %435 : vector<8x1xf32>
    %437 = vector.broadcast %436 : vector<8x1xf32> to vector<8x128xf32>
    %438 = arith.subf %430, %437 : vector<8x128xf32>
    %439 = arith.mulf %438, %438 : vector<8x128xf32>
    %cst_106 = arith.constant dense<0.000000e+00> : vector<8xf32>
    %440 = vector.multi_reduction <add>, %439, %cst_106 [1] : vector<8x128xf32> to vector<8xf32>
    %441 = vector.shape_cast %440 : vector<8xf32> to vector<8x1xf32>
    %cst_107 = arith.constant 1.280000e+02 : f32
    %442 = vector.broadcast %cst_107 : f32 to vector<8x1xf32>
    %443 = arith.divf %441, %442 : vector<8x1xf32>
    %444 = vector.broadcast %436 : vector<8x1xf32> to vector<8x128xf32>
    %445 = arith.subf %430, %444 : vector<8x128xf32>
    %cst_108 = arith.constant 9.99999974E-6 : f32
    %446 = vector.broadcast %cst_108 : f32 to vector<8x1xf32>
    %447 = arith.addf %443, %446 : vector<8x1xf32>
    %448 = math.rsqrt %447 : vector<8x1xf32>
    %449 = vector.broadcast %448 : vector<8x1xf32> to vector<8x128xf32>
    %450 = arith.mulf %445, %449 : vector<8x128xf32>
    %451 = vector.broadcast %431 : vector<1x128xf32> to vector<8x128xf32>
    %452 = arith.mulf %450, %451 : vector<8x128xf32>
    %453 = vector.broadcast %432 : vector<1x128xf32> to vector<8x128xf32>
    %454 = arith.addf %452, %453 : vector<8x128xf32>
    %cst_109 = arith.constant 0.333333343 : f32
    %455 = vector.broadcast %cst_109 : f32 to vector<8x128xf32>
    %456 = arith.mulf %454, %455 : vector<8x128xf32>
    %457 = arith.addf %323, %456 : vector<8x128xf32>
    %458 = arith.truncf %457 : vector<8x128xf32> to vector<8x128xbf16>
    %c0_110 = arith.constant 0 : index
    %c0_111 = arith.constant 0 : index
    %459 = vector.load %arg8[%c0_110, %c0_111] : memref<128x512xbf16, #tpu.memory_space<vmem>>, vector<128x512xbf16>
    %cst_112 = arith.constant dense<0.000000e+00> : vector<8x512xf32>
    %460 = tpu.matmul %458, %459, %cst_112 {dimension_numbers = #tpu.dot_dimension_numbers<[1], [0], [0], [1], [0, 0, 1, 1], [], []>} : vector<8x128xbf16>, vector<128x512xbf16>, vector<8x512xf32> -> vector<8x512xf32>
    %c0_113 = arith.constant 0 : index
    %c0_114 = arith.constant 0 : index
    %461 = vector.load %arg9[%c0_113, %c0_114] : memref<1x512xf32, #tpu.memory_space<vmem>>, vector<1x512xf32>
    %462 = vector.broadcast %461 : vector<1x512xf32> to vector<8x512xf32>
    %463 = arith.addf %460, %462 : vector<8x512xf32>
    %c0_115 = arith.constant 0 : index
    %c0_116 = arith.constant 0 : index
    %464 = vector.load %arg10[%c0_115, %c0_116] : memref<1x512xf32, #tpu.memory_space<vmem>>, vector<1x512xf32>
    %c0_117 = arith.constant 0 : index
    %c0_118 = arith.constant 0 : index
    %465 = vector.load %arg11[%c0_117, %c0_118] : memref<1x512xf32, #tpu.memory_space<vmem>>, vector<1x512xf32>
    %cst_119 = arith.constant dense<0.000000e+00> : vector<8xf32>
    %466 = vector.multi_reduction <add>, %463, %cst_119 [1] : vector<8x512xf32> to vector<8xf32>
    %467 = vector.shape_cast %466 : vector<8xf32> to vector<8x1xf32>
    %cst_120 = arith.constant 5.120000e+02 : f32
    %468 = vector.broadcast %cst_120 : f32 to vector<8x1xf32>
    %469 = arith.divf %467, %468 : vector<8x1xf32>
    %470 = vector.broadcast %469 : vector<8x1xf32> to vector<8x512xf32>
    %471 = arith.subf %463, %470 : vector<8x512xf32>
    %472 = arith.mulf %471, %471 : vector<8x512xf32>
    %cst_121 = arith.constant dense<0.000000e+00> : vector<8xf32>
    %473 = vector.multi_reduction <add>, %472, %cst_121 [1] : vector<8x512xf32> to vector<8xf32>
    %474 = vector.shape_cast %473 : vector<8xf32> to vector<8x1xf32>
    %cst_122 = arith.constant 5.120000e+02 : f32
    %475 = vector.broadcast %cst_122 : f32 to vector<8x1xf32>
    %476 = arith.divf %474, %475 : vector<8x1xf32>
    %477 = vector.broadcast %469 : vector<8x1xf32> to vector<8x512xf32>
    %478 = arith.subf %463, %477 : vector<8x512xf32>
    %cst_123 = arith.constant 9.99999974E-6 : f32
    %479 = vector.broadcast %cst_123 : f32 to vector<8x1xf32>
    %480 = arith.addf %476, %479 : vector<8x1xf32>
    %481 = math.rsqrt %480 : vector<8x1xf32>
    %482 = vector.broadcast %481 : vector<8x1xf32> to vector<8x512xf32>
    %483 = arith.mulf %478, %482 : vector<8x512xf32>
    %484 = vector.broadcast %464 : vector<1x512xf32> to vector<8x512xf32>
    %485 = arith.mulf %483, %484 : vector<8x512xf32>
    %486 = vector.broadcast %465 : vector<1x512xf32> to vector<8x512xf32>
    %487 = arith.addf %485, %486 : vector<8x512xf32>
    %cst_124 = arith.constant 0.000000e+00 : f32
    %488 = vector.broadcast %cst_124 : f32 to vector<8x512xf32>
    %489 = arith.maximumf %487, %488 : vector<8x512xf32>
    %490 = arith.truncf %489 : vector<8x512xf32> to vector<8x512xbf16>
    %c0_125 = arith.constant 0 : index
    %c0_126 = arith.constant 0 : index
    %491 = vector.load %arg12[%c0_125, %c0_126] : memref<512x256xbf16, #tpu.memory_space<vmem>>, vector<512x256xbf16>
    %cst_127 = arith.constant dense<0.000000e+00> : vector<8x256xf32>
    %492 = tpu.matmul %490, %491, %cst_127 {dimension_numbers = #tpu.dot_dimension_numbers<[1], [0], [0], [1], [0, 0, 1, 1], [], []>} : vector<8x512xbf16>, vector<512x256xbf16>, vector<8x256xf32> -> vector<8x256xf32>
    %c0_128 = arith.constant 0 : index
    %c0_129 = arith.constant 0 : index
    %493 = vector.load %arg13[%c0_128, %c0_129] : memref<1x256xf32, #tpu.memory_space<vmem>>, vector<1x256xf32>
    %494 = vector.broadcast %493 : vector<1x256xf32> to vector<8x256xf32>
    %495 = arith.addf %492, %494 : vector<8x256xf32>
    %c0_130 = arith.constant 0 : index
    %c0_131 = arith.constant 0 : index
    %496 = vector.load %arg14[%c0_130, %c0_131] : memref<1x256xf32, #tpu.memory_space<vmem>>, vector<1x256xf32>
    %c0_132 = arith.constant 0 : index
    %c0_133 = arith.constant 0 : index
    %497 = vector.load %arg15[%c0_132, %c0_133] : memref<1x256xf32, #tpu.memory_space<vmem>>, vector<1x256xf32>
    %cst_134 = arith.constant dense<0.000000e+00> : vector<8xf32>
    %498 = vector.multi_reduction <add>, %495, %cst_134 [1] : vector<8x256xf32> to vector<8xf32>
    %499 = vector.shape_cast %498 : vector<8xf32> to vector<8x1xf32>
    %cst_135 = arith.constant 2.560000e+02 : f32
    %500 = vector.broadcast %cst_135 : f32 to vector<8x1xf32>
    %501 = arith.divf %499, %500 : vector<8x1xf32>
    %502 = vector.broadcast %501 : vector<8x1xf32> to vector<8x256xf32>
    %503 = arith.subf %495, %502 : vector<8x256xf32>
    %504 = arith.mulf %503, %503 : vector<8x256xf32>
    %cst_136 = arith.constant dense<0.000000e+00> : vector<8xf32>
    %505 = vector.multi_reduction <add>, %504, %cst_136 [1] : vector<8x256xf32> to vector<8xf32>
    %506 = vector.shape_cast %505 : vector<8xf32> to vector<8x1xf32>
    %cst_137 = arith.constant 2.560000e+02 : f32
    %507 = vector.broadcast %cst_137 : f32 to vector<8x1xf32>
    %508 = arith.divf %506, %507 : vector<8x1xf32>
    %509 = vector.broadcast %501 : vector<8x1xf32> to vector<8x256xf32>
    %510 = arith.subf %495, %509 : vector<8x256xf32>
    %cst_138 = arith.constant 9.99999974E-6 : f32
    %511 = vector.broadcast %cst_138 : f32 to vector<8x1xf32>
    %512 = arith.addf %508, %511 : vector<8x1xf32>
    %513 = math.rsqrt %512 : vector<8x1xf32>
    %514 = vector.broadcast %513 : vector<8x1xf32> to vector<8x256xf32>
    %515 = arith.mulf %510, %514 : vector<8x256xf32>
    %516 = vector.broadcast %496 : vector<1x256xf32> to vector<8x256xf32>
    %517 = arith.mulf %515, %516 : vector<8x256xf32>
    %518 = vector.broadcast %497 : vector<1x256xf32> to vector<8x256xf32>
    %519 = arith.addf %517, %518 : vector<8x256xf32>
    %cst_139 = arith.constant 0.000000e+00 : f32
    %520 = vector.broadcast %cst_139 : f32 to vector<8x256xf32>
    %521 = arith.maximumf %519, %520 : vector<8x256xf32>
    %522 = arith.truncf %521 : vector<8x256xf32> to vector<8x256xbf16>
    %c0_140 = arith.constant 0 : index
    %c0_141 = arith.constant 0 : index
    %523 = vector.load %arg16[%c0_140, %c0_141] : memref<256x128xbf16, #tpu.memory_space<vmem>>, vector<256x128xbf16>
    %cst_142 = arith.constant dense<0.000000e+00> : vector<8x128xf32>
    %524 = tpu.matmul %522, %523, %cst_142 {dimension_numbers = #tpu.dot_dimension_numbers<[1], [0], [0], [1], [0, 0, 1, 1], [], []>} : vector<8x256xbf16>, vector<256x128xbf16>, vector<8x128xf32> -> vector<8x128xf32>
    %c0_143 = arith.constant 0 : index
    %c0_144 = arith.constant 0 : index
    %525 = vector.load %arg17[%c0_143, %c0_144] : memref<1x128xf32, #tpu.memory_space<vmem>>, vector<1x128xf32>
    %526 = vector.broadcast %525 : vector<1x128xf32> to vector<8x128xf32>
    %527 = arith.addf %524, %526 : vector<8x128xf32>
    %c0_145 = arith.constant 0 : index
    %c0_146 = arith.constant 0 : index
    %528 = vector.load %arg18[%c0_145, %c0_146] : memref<1x128xf32, #tpu.memory_space<vmem>>, vector<1x128xf32>
    %c0_147 = arith.constant 0 : index
    %c0_148 = arith.constant 0 : index
    %529 = vector.load %arg19[%c0_147, %c0_148] : memref<1x128xf32, #tpu.memory_space<vmem>>, vector<1x128xf32>
    %cst_149 = arith.constant dense<0.000000e+00> : vector<8xf32>
    %530 = vector.multi_reduction <add>, %527, %cst_149 [1] : vector<8x128xf32> to vector<8xf32>
    %531 = vector.shape_cast %530 : vector<8xf32> to vector<8x1xf32>
    %cst_150 = arith.constant 1.280000e+02 : f32
    %532 = vector.broadcast %cst_150 : f32 to vector<8x1xf32>
    %533 = arith.divf %531, %532 : vector<8x1xf32>
    %534 = vector.broadcast %533 : vector<8x1xf32> to vector<8x128xf32>
    %535 = arith.subf %527, %534 : vector<8x128xf32>
    %536 = arith.mulf %535, %535 : vector<8x128xf32>
    %cst_151 = arith.constant dense<0.000000e+00> : vector<8xf32>
    %537 = vector.multi_reduction <add>, %536, %cst_151 [1] : vector<8x128xf32> to vector<8xf32>
    %538 = vector.shape_cast %537 : vector<8xf32> to vector<8x1xf32>
    %cst_152 = arith.constant 1.280000e+02 : f32
    %539 = vector.broadcast %cst_152 : f32 to vector<8x1xf32>
    %540 = arith.divf %538, %539 : vector<8x1xf32>
    %541 = vector.broadcast %533 : vector<8x1xf32> to vector<8x128xf32>
    %542 = arith.subf %527, %541 : vector<8x128xf32>
    %cst_153 = arith.constant 9.99999974E-6 : f32
    %543 = vector.broadcast %cst_153 : f32 to vector<8x1xf32>
    %544 = arith.addf %540, %543 : vector<8x1xf32>
    %545 = math.rsqrt %544 : vector<8x1xf32>
    %546 = vector.broadcast %545 : vector<8x1xf32> to vector<8x128xf32>
    %547 = arith.mulf %542, %546 : vector<8x128xf32>
    %548 = vector.broadcast %528 : vector<1x128xf32> to vector<8x128xf32>
    %549 = arith.mulf %547, %548 : vector<8x128xf32>
    %550 = vector.broadcast %529 : vector<1x128xf32> to vector<8x128xf32>
    %551 = arith.addf %549, %550 : vector<8x128xf32>
    %cst_154 = arith.constant 0.000000e+00 : f32
    %552 = vector.broadcast %cst_154 : f32 to vector<8x128xf32>
    %553 = arith.maximumf %551, %552 : vector<8x128xf32>
    %c0_155 = arith.constant 0 : index
    %c0_156 = arith.constant 0 : index
    %554 = vector.load %arg20[%c0_155, %c0_156] : memref<1x128xf32, #tpu.memory_space<vmem>>, vector<1x128xf32>
    %555 = vector.broadcast %554 : vector<1x128xf32> to vector<8x128xf32>
    %556 = arith.mulf %553, %555 : vector<8x128xf32>
    %cst_157 = arith.constant dense<0.000000e+00> : vector<8xf32>
    %557 = vector.multi_reduction <add>, %556, %cst_157 [1] : vector<8x128xf32> to vector<8xf32>
    %558 = vector.shape_cast %557 : vector<8xf32> to vector<8x1xf32>
    %c0_158 = arith.constant 0 : index
    %c0_159 = arith.constant 0 : index
    %559 = vector.load %arg21[%c0_158, %c0_159] : memref<1x1xf32, #tpu.memory_space<vmem>>, vector<1x1xf32>
    %560 = vector.broadcast %559 : vector<1x1xf32> to vector<8x1xf32>
    %561 = arith.addf %558, %560 : vector<8x1xf32>
    %cst_160 = arith.constant -1.000000e+03 : f32
    %cst_161 = arith.constant 1.000000e+03 : f32
    %562 = vector.broadcast %cst_160 : f32 to vector<8x1xf32>
    %563 = arith.maximumf %562, %561 : vector<8x1xf32>
    %564 = vector.broadcast %cst_161 : f32 to vector<8x1xf32>
    %565 = arith.minimumf %564, %563 : vector<8x1xf32>
    %566 = tpu.iota {dimensions = array<i32: 1>} : vector<1x128xi32>
    %c0_i32_162 = arith.constant 0 : i32
    %567 = vector.broadcast %c0_i32_162 : i32 to vector<1x128xi32>
    %568 = arith.cmpi eq, %566, %567 : vector<1x128xi32>
    %569 = arith.extui %568 : vector<1x128xi1> to vector<1x128xi32>
    %570 = arith.sitofp %569 : vector<1x128xi32> to vector<1x128xf32>
    %571 = vector.broadcast %565 : vector<8x1xf32> to vector<8x128xf32>
    %572 = vector.broadcast %570 : vector<1x128xf32> to vector<8x128xf32>
    %573 = arith.mulf %571, %572 : vector<8x128xf32>
    %c1_i32 = arith.constant 1 : i32
    %574 = vector.broadcast %c1_i32 : i32 to vector<1x128xi32>
    %575 = arith.cmpi eq, %566, %574 : vector<1x128xi32>
    %576 = arith.extui %575 : vector<1x128xi1> to vector<1x128xi32>
    %577 = arith.sitofp %576 : vector<1x128xi32> to vector<1x128xf32>
    %578 = vector.broadcast %365 : vector<8x1xf32> to vector<8x128xf32>
    %579 = vector.broadcast %577 : vector<1x128xf32> to vector<8x128xf32>
    %580 = arith.mulf %578, %579 : vector<8x128xf32>
    %581 = arith.addf %573, %580 : vector<8x128xf32>
    %c2_i32 = arith.constant 2 : i32
    %582 = vector.broadcast %c2_i32 : i32 to vector<1x128xi32>
    %583 = arith.cmpi eq, %566, %582 : vector<1x128xi32>
    %584 = arith.extui %583 : vector<1x128xi1> to vector<1x128xi32>
    %585 = arith.sitofp %584 : vector<1x128xi32> to vector<1x128xf32>
    %586 = vector.broadcast %369 : vector<8x1xf32> to vector<8x128xf32>
    %587 = vector.broadcast %585 : vector<1x128xf32> to vector<8x128xf32>
    %588 = arith.mulf %586, %587 : vector<8x128xf32>
    %589 = arith.addf %581, %588 : vector<8x128xf32>
    %c3_i32 = arith.constant 3 : i32
    %590 = vector.broadcast %c3_i32 : i32 to vector<1x128xi32>
    %591 = arith.cmpi eq, %566, %590 : vector<1x128xi32>
    %592 = arith.extui %591 : vector<1x128xi1> to vector<1x128xi32>
    %593 = arith.sitofp %592 : vector<1x128xi32> to vector<1x128xf32>
    %594 = vector.broadcast %373 : vector<8x1xf32> to vector<8x128xf32>
    %595 = vector.broadcast %593 : vector<1x128xf32> to vector<8x128xf32>
    %596 = arith.mulf %594, %595 : vector<8x128xf32>
    %597 = arith.addf %589, %596 : vector<8x128xf32>
    %c4_i32 = arith.constant 4 : i32
    %598 = vector.broadcast %c4_i32 : i32 to vector<1x128xi32>
    %599 = arith.cmpi eq, %566, %598 : vector<1x128xi32>
    %600 = arith.extui %599 : vector<1x128xi1> to vector<1x128xi32>
    %601 = arith.sitofp %600 : vector<1x128xi32> to vector<1x128xf32>
    %602 = vector.broadcast %388 : vector<8x1xf32> to vector<8x128xf32>
    %603 = vector.broadcast %601 : vector<1x128xf32> to vector<8x128xf32>
    %604 = arith.mulf %602, %603 : vector<8x128xf32>
    %605 = arith.addf %597, %604 : vector<8x128xf32>
    %c5_i32 = arith.constant 5 : i32
    %606 = vector.broadcast %c5_i32 : i32 to vector<1x128xi32>
    %607 = arith.cmpi eq, %566, %606 : vector<1x128xi32>
    %608 = arith.extui %607 : vector<1x128xi1> to vector<1x128xi32>
    %609 = arith.sitofp %608 : vector<1x128xi32> to vector<1x128xf32>
    %610 = vector.broadcast %392 : vector<8x1xf32> to vector<8x128xf32>
    %611 = vector.broadcast %609 : vector<1x128xf32> to vector<8x128xf32>
    %612 = arith.mulf %610, %611 : vector<8x128xf32>
    %613 = arith.addf %605, %612 : vector<8x128xf32>
    %c6_i32 = arith.constant 6 : i32
    %614 = vector.broadcast %c6_i32 : i32 to vector<1x128xi32>
    %615 = arith.cmpi eq, %566, %614 : vector<1x128xi32>
    %616 = arith.extui %615 : vector<1x128xi1> to vector<1x128xi32>
    %617 = arith.sitofp %616 : vector<1x128xi32> to vector<1x128xf32>
    %618 = vector.broadcast %396 : vector<8x1xf32> to vector<8x128xf32>
    %619 = vector.broadcast %617 : vector<1x128xf32> to vector<8x128xf32>
    %620 = arith.mulf %618, %619 : vector<8x128xf32>
    %621 = arith.addf %613, %620 : vector<8x128xf32>
    %c0_163 = arith.constant 0 : index
    %c0_164 = arith.constant 0 : index
    %622 = vector.load %arg22[%c0_163, %c0_164] : memref<8x128xf32, #tpu.memory_space<vmem>>, vector<8x128xf32>
    tpu.vector_store %arg22[%c0_163, %c0_164], %621 {strides = array<i32>} : memref<8x128xf32, #tpu.memory_space<vmem>>, vector<8x128xf32>,
    return
  }
  func.func @transform_0(%arg0: i32) -> (i32, i32) {
    %c0_i32 = arith.constant 0 : i32
    %c0_i32_0 = arith.constant 0 : i32
    return %arg0, %c0_i32 : i32, i32
  }
  func.func @transform_1(%arg0: i32) -> (i32, i32) {
    %c0_i32 = arith.constant 0 : i32
    %c0_i32_0 = arith.constant 0 : i32
    %c0_i32_1 = arith.constant 0 : i32
    return %c0_i32, %c0_i32_0 : i32, i32
  }
  func.func @transform_2(%arg0: i32) -> (i32, i32) {
    %c0_i32 = arith.constant 0 : i32
    %c0_i32_0 = arith.constant 0 : i32
    %c0_i32_1 = arith.constant 0 : i32
    return %c0_i32, %c0_i32_0 : i32, i32
  }
  func.func @transform_3(%arg0: i32) -> (i32, i32) {
    %c0_i32 = arith.constant 0 : i32
    %c0_i32_0 = arith.constant 0 : i32
    %c0_i32_1 = arith.constant 0 : i32
    return %c0_i32, %c0_i32_0 : i32, i32
  }
  func.func @transform_4(%arg0: i32) -> (i32, i32) {
    %c0_i32 = arith.constant 0 : i32
    %c0_i32_0 = arith.constant 0 : i32
    %c0_i32_1 = arith.constant 0 : i32
    return %c0_i32, %c0_i32_0 : i32, i32
  }
  func.func @transform_5(%arg0: i32) -> (i32, i32) {
    %c0_i32 = arith.constant 0 : i32
    %c0_i32_0 = arith.constant 0 : i32
    %c0_i32_1 = arith.constant 0 : i32
    return %c0_i32, %c0_i32_0 : i32, i32
  }
  func.func @transform_6(%arg0: i32) -> (i32, i32) {
    %c0_i32 = arith.constant 0 : i32
    %c0_i32_0 = arith.constant 0 : i32
    %c0_i32_1 = arith.constant 0 : i32
    return %c0_i32, %c0_i32_0 : i32, i32
  }
  func.func @transform_7(%arg0: i32) -> (i32, i32) {
    %c0_i32 = arith.constant 0 : i32
    %c0_i32_0 = arith.constant 0 : i32
    %c0_i32_1 = arith.constant 0 : i32
    return %c0_i32, %c0_i32_0 : i32, i32
  }
  func.func @transform_8(%arg0: i32) -> (i32, i32) {
    %c0_i32 = arith.constant 0 : i32
    %c0_i32_0 = arith.constant 0 : i32
    %c0_i32_1 = arith.constant 0 : i32
    return %c0_i32, %c0_i32_0 : i32, i32
  }
  func.func @transform_9(%arg0: i32) -> (i32, i32) {
    %c0_i32 = arith.constant 0 : i32
    %c0_i32_0 = arith.constant 0 : i32
    %c0_i32_1 = arith.constant 0 : i32
    return %c0_i32, %c0_i32_0 : i32, i32
  }
  func.func @transform_10(%arg0: i32) -> (i32, i32) {
    %c0_i32 = arith.constant 0 : i32
    %c0_i32_0 = arith.constant 0 : i32
    %c0_i32_1 = arith.constant 0 : i32
    return %c0_i32, %c0_i32_0 : i32, i32
  }
  func.func @transform_11(%arg0: i32) -> (i32, i32) {
    %c0_i32 = arith.constant 0 : i32
    %c0_i32_0 = arith.constant 0 : i32
    %c0_i32_1 = arith.constant 0 : i32
    return %c0_i32, %c0_i32_0 : i32, i32
  }
  func.func @transform_12(%arg0: i32) -> (i32, i32) {
    %c0_i32 = arith.constant 0 : i32
    %c0_i32_0 = arith.constant 0 : i32
    %c0_i32_1 = arith.constant 0 : i32
    return %c0_i32, %c0_i32_0 : i32, i32
  }
  func.func @transform_13(%arg0: i32) -> (i32, i32) {
    %c0_i32 = arith.constant 0 : i32
    %c0_i32_0 = arith.constant 0 : i32
    %c0_i32_1 = arith.constant 0 : i32
    return %c0_i32, %c0_i32_0 : i32, i32
  }
  func.func @transform_14(%arg0: i32) -> (i32, i32) {
    %c0_i32 = arith.constant 0 : i32
    %c0_i32_0 = arith.constant 0 : i32
    %c0_i32_1 = arith.constant 0 : i32
    return %c0_i32, %c0_i32_0 : i32, i32
  }
  func.func @transform_15(%arg0: i32) -> (i32, i32) {
    %c0_i32 = arith.constant 0 : i32
    %c0_i32_0 = arith.constant 0 : i32
    %c0_i32_1 = arith.constant 0 : i32
    return %c0_i32, %c0_i32_0 : i32, i32
  }
  func.func @transform_16(%arg0: i32) -> (i32, i32) {
    %c0_i32 = arith.constant 0 : i32
    %c0_i32_0 = arith.constant 0 : i32
    %c0_i32_1 = arith.constant 0 : i32
    return %c0_i32, %c0_i32_0 : i32, i32
  }
  func.func @transform_17(%arg0: i32) -> (i32, i32) {
    %c0_i32 = arith.constant 0 : i32
    %c0_i32_0 = arith.constant 0 : i32
    %c0_i32_1 = arith.constant 0 : i32
    return %c0_i32, %c0_i32_0 : i32, i32
  }
  func.func @transform_18(%arg0: i32) -> (i32, i32) {
    %c0_i32 = arith.constant 0 : i32
    %c0_i32_0 = arith.constant 0 : i32
    %c0_i32_1 = arith.constant 0 : i32
    return %c0_i32, %c0_i32_0 : i32, i32
  }
  func.func @transform_19(%arg0: i32) -> (i32, i32) {
    %c0_i32 = arith.constant 0 : i32
    %c0_i32_0 = arith.constant 0 : i32
    %c0_i32_1 = arith.constant 0 : i32
    return %c0_i32, %c0_i32_0 : i32, i32
  }
  func.func @transform_20(%arg0: i32) -> (i32, i32) {
    %c0_i32 = arith.constant 0 : i32
    %c0_i32_0 = arith.constant 0 : i32
    %c0_i32_1 = arith.constant 0 : i32
    return %c0_i32, %c0_i32_0 : i32, i32
  }
  func.func @transform_21(%arg0: i32) -> (i32, i32) {
    %c0_i32 = arith.constant 0 : i32
    %c0_i32_0 = arith.constant 0 : i32
    return %arg0, %c0_i32 : i32, i32
  }
}

</mosaic_0001>

<llo_original>
// kernel: tpu_custom_call.1
$region0: #{tpu_custom_call.1}
  #allocation0 [shape = 'u32[]', space=smem, size = 0x4, offset = 0x4, fixed_abs, tag = 'smem constant byte address 0x4 - core index']
  #allocation1 [shape = 'u32[72,128]{1,0:T(1,128)}', space=vmem, size = 0x9000, scoped, tag = 'internal scratch']
  #allocation2 [shape = 'f32[1,1]{1,0:T(1,128)S(1)}', space=vmem, size = 0x200, scoped, tag = 'scoped memory for tpu_custom_call.1']
  %s0 = inlined_call_operand.hbm [shape: bf16[13,384], index: 0, kind: input, shape index: {}]
  %s1 = inlined_call_operand.hbm [shape: bf16[128,384], index: 1, kind: input, shape index: {}]
  %s2 = inlined_call_operand.hbm [shape: f32[1,384], index: 2, kind: input, shape index: {}]
  %s3 = inlined_call_operand.hbm [shape: bf16[128,128], index: 3, kind: input, shape index: {}]
  %s4 = inlined_call_operand.hbm [shape: f32[1,128], index: 4, kind: input, shape index: {}]
  %s5 = inlined_call_operand.hbm [shape: f32[1,128], index: 5, kind: input, shape index: {}]
  %s6 = inlined_call_operand.hbm [shape: f32[1,128], index: 6, kind: input, shape index: {}]
  %s7 = inlined_call_operand.hbm [shape: bf16[128,512], index: 7, kind: input, shape index: {}]
  %s8 = inlined_call_operand.vmem [shape: f32[1,512], index: 8, kind: input, shape index: {}]
  %s9 = inlined_call_operand.vmem [shape: f32[1,512], index: 9, kind: input, shape index: {}]
  %s10 = inlined_call_operand.hbm [shape: f32[1,512], index: 10, kind: input, shape index: {}]
  %s11 = inlined_call_operand.hbm [shape: bf16[512,256], index: 11, kind: input, shape index: {}]
  %s12 = inlined_call_operand.vmem [shape: f32[1,256], index: 12, kind: input, shape index: {}]
  %s13 = inlined_call_operand.vmem [shape: f32[1,256], index: 13, kind: input, shape index: {}]
  %s14 = inlined_call_operand.vmem [shape: f32[1,256], index: 14, kind: input, shape index: {}]
  %s15 = inlined_call_operand.hbm [shape: bf16[256,128], index: 15, kind: input, shape index: {}]
  %s16 = inlined_call_operand.vmem [shape: f32[1,128], index: 16, kind: input, shape index: {}]
  %s17 = inlined_call_operand.vmem [shape: f32[1,128], index: 17, kind: input, shape index: {}]
  %s18 = inlined_call_operand.vmem [shape: f32[1,128], index: 18, kind: input, shape index: {}]
  %s19 = inlined_call_operand.vmem [shape: f32[1,128], index: 19, kind: input, shape index: {}]
  %s20 = inlined_call_operand.<no memory space> [shape: f32[1,1], index: 20, kind: input, shape index: {}]
  %s21 = inlined_call_operand.hbm [shape: f32[13,128], index: 21, kind: output, shape index: {}]
  %s22 = sld [smem:[#allocation0]]
  $region161: #{tpu_custom_call.1} parent=0
    _
  %s24 = ssub.s32 1, %s22
  %s25 = scalar_select 0, %s24, %s22
  %v26 = vstv %s20
  %27 = vst [vmem:[#allocation2] sm:$0x1] %v26
  $region1: #{tpu_custom_call.1} parent=0
    #allocation3 [shape = 'u8[12288]{0}', space=vmem, size = 0x3000, scoped, tag = 'input window, operand 0']
    #allocation4 [shape = 's32[2]{0}', space=sflag, size = 0x8, scoped, tag = 'scoped memory for tpu_custom_call.1']
    #allocation5 [shape = 's32[2]{0}', space=sflag, size = 0x8, scoped, tag = 'scoped memory for tpu_custom_call.1']
    #allocation6 [shape = 'u8[98304]{0}', space=vmem, size = 0x18000, scoped, tag = 'input window, operand 1, single buffered']
    #allocation7 [shape = 's32[1]{0}', space=sflag, size = 0x4, scoped, tag = 'scoped memory for tpu_custom_call.1']
    #allocation8 [shape = 'u8[1536]{0}', space=vmem, size = 0x800, scoped, tag = 'input window, operand 2, single buffered']
    #allocation9 [shape = 'u8[32768]{0}', space=vmem, size = 0x8000, scoped, tag = 'input window, operand 3, single buffered']
    #allocation10 [shape = 's32[1]{0}', space=sflag, size = 0x4, scoped, tag = 'scoped memory for tpu_custom_call.1']
    #allocation11 [shape = 'u8[512]{0}', space=vmem, size = 0x400, scoped, tag = 'input window, operand 4, single buffered']
    #allocation12 [shape = 'u8[512]{0}', space=vmem, size = 0x400, scoped, tag = 'input window, operand 5, single buffered']
    #allocation13 [shape = 's32[1]{0}', space=sflag, size = 0x4, scoped, tag = 'scoped memory for tpu_custom_call.1']
    #allocation14 [shape = 'u8[512]{0}', space=vmem, size = 0x400, scoped, tag = 'input window, operand 6, single buffered']
    #allocation15 [shape = 'u8[131072]{0}', space=vmem, size = 0x20000, scoped, tag = 'input window, operand 7, single buffered']
    #allocation16 [shape = 's32[1]{0}', space=sflag, size = 0x4, scoped, tag = 'scoped memory for tpu_custom_call.1']
    #allocation17 [shape = 'u8[2048]{0}', space=vmem, size = 0x800, scoped, tag = 'input window, operand 10, single buffered']
    #allocation18 [shape = 'u8[262144]{0}', space=vmem, size = 0x40000, scoped, tag = 'input window, operand 11, single buffered']
    #allocation19 [shape = 's32[1]{0}', space=sflag, size = 0x4, scoped, tag = 'scoped memory for tpu_custom_call.1']
    #allocation20 [shape = 'u8[65536]{0}', space=vmem, size = 0x10000, scoped, tag = 'input window, operand 15, single buffered']
    #allocation21 [shape = 'u8[8192]{0}', space=vmem, size = 0x2000, scoped, tag = 'output window, operand 0']
    %28 = vsyncpa [#allocation4], 0
    %s29 = scalar_lea.sflag [#allocation4], 1
    %30 = vsyncpa %s29, 0
    %31 = vsyncpa [#allocation7], 0
    %32 = vsyncpa [#allocation10], 0
    %33 = vsyncpa [#allocation13], 0
    %34 = vsyncpa [#allocation16], 0
    %35 = vsyncpa [#allocation19], 0
    %36 = vsyncpa [#allocation5], 0
    %s37 = scalar_lea.sflag [#allocation5], 1
    %38 = vsyncpa %s37, 0
    loop: start=0, step=1, limit=4
    $region2: #{tpu_custom_call.1} parent=1 // loop_pre_header
      _
    $region3: #{tpu_custom_call.1} parent=1 // loop_header
      %s40 = sphi 0, %s44
      %p41 = scmp.ge.s32.totalorder %s40, 4
      %s50 = sphi 0, %s52
      %s53 = sphi 0, %s50
      %s54 = sphi 0, %s53
      %s70 = sphi 0, %s54
      %s74 = sphi 0, %s74
      %s76 = sphi 0, %s74
      %s77 = sphi 0, %s76
      %s91 = sphi 0, %s77
      %s95 = sphi 0, %s95
      %s97 = sphi 0, %s95
      %s98 = sphi 0, %s97
      %s112 = sphi 0, %s98
      %s116 = sphi 0, %s116
      %s118 = sphi 0, %s116
      %s119 = sphi 0, %s118
      %s133 = sphi 0, %s119
      %s137 = sphi 0, %s137
      %s139 = sphi 0, %s137
      %s140 = sphi 0, %s139
      %s154 = sphi 0, %s140
      %s158 = sphi 0, %s158
      %s160 = sphi 0, %s158
      %s161 = sphi 0, %s160
      %s175 = sphi 0, %s161
      %s179 = sphi 0, %s179
      %s181 = sphi 0, %s179
      %s182 = sphi 0, %s181
      %s196 = sphi 0, %s182
      %s200 = sphi 0, %s200
      %s202 = sphi 0, %s200
      %s203 = sphi 0, %s202
      %s217 = sphi 0, %s203
      %s221 = sphi 0, %s221
      %s223 = sphi 0, %s221
      %s224 = sphi 0, %s223
      %s238 = sphi 0, %s224
      %s242 = sphi 0, %s242
      %s244 = sphi 0, %s242
      %s245 = sphi 0, %s244
      %s259 = sphi 0, %s245
      %s263 = sphi 0, %s263
      %s265 = sphi 0, %s263
      %s266 = sphi 0, %s265
      %s280 = sphi 0, %s266
      %s284 = sphi 0, %s284
      %s286 = sphi 0, %s284
      %s287 = sphi 0, %s286
      %s301 = sphi 0, %s287
      %s305 = sphi 0, %s305
      %s307 = sphi 0, %s305
      %s308 = sphi 0, %s307
      %s322 = sphi 0, %s308
      %s326 = sphi 0, %s326
      %s328 = sphi 0, %s326
      %s329 = sphi 0, %s328
      %s343 = sphi 0, %s329
      %s347 = sphi 0, %s347
      %s349 = sphi 0, %s347
      %s350 = sphi 0, %s349
      %s364 = sphi 0, %s350
      %s368 = sphi 0, %s368
      %s370 = sphi 0, %s368
      %s371 = sphi 0, %s370
      %s385 = sphi 0, %s371
      %s389 = sphi 0, %s389
      %s391 = sphi 0, %s389
      %s392 = sphi 0, %s391
      %s406 = sphi 0, %s392
      %s410 = sphi 0, %s410
      %s412 = sphi 0, %s410
      %s413 = sphi 0, %s412
      %s427 = sphi 0, %s413
      %s431 = sphi 0, %s431
      %s433 = sphi 0, %s431
      %s434 = sphi 0, %s433
      %s448 = sphi 0, %s434
      %s452 = sphi 0, %s452
      %s454 = sphi 0, %s452
      %s455 = sphi 0, %s454
      %s469 = sphi 0, %s455
      %s473 = sphi 0, %s473
      %s475 = sphi 0, %s473
      %s476 = sphi 0, %s475
      %s490 = sphi 0, %s476
      %s496 = sphi 0, %s498
      %s499 = sphi 0, %s496
      %s500 = sphi 0, %s499
      %s516 = sphi 0, %s500
    $region4: #{tpu_custom_call.1} parent=1 // loop_header_branch
      %43 = sbr.rel (%p41) target = $region8
    $region5: #{tpu_custom_call.1} parent=1 // loop_body
      %s45 = ssub.s32 %s40, 1
      %s46 = ssub.s32 %s40, 2
      %s47 = sadd.s32 %s40, 1
      %s48 = ssub.s32 %s40, %s47
      %p49 = scmp.eq.s32.totalorder %s48, 0
      %s51 = sadd.s32 %s50, 1
      %s52 = scalar_select %p49, %s50, %s51
      %p55 = pneg %p49
      %p56 = scmp.eq.s32.totalorder %s40, 1
      %p57 = por %p55, %p56
      %p58 = scmp.ne.s32.totalorder %s50, %s53
      %p59 = scmp.eq.s32.totalorder %s40, 0
      %p60 = por %p58, %p59
      %p61 = scmp.ne.s32.totalorder %s50, %s53
      %p62 = scmp.eq.s32.totalorder %s45, 1
      %p63 = por %p61, %p62
      %p64 = scmp.ne.s32.totalorder %s53, %s54
      %p65 = scmp.eq.s32.totalorder %s45, 0
      %p66 = por %p64, %p65
      %p67 = scmp.ne.s32.totalorder %s53, %s54
      %p68 = scmp.eq.s32.totalorder %s46, 1
      %p69 = por %p67, %p68
      %p71 = scmp.ne.s32.totalorder %s54, %s70
      %p72 = scmp.eq.s32.totalorder %s46, 0
      %p73 = por %p71, %p72
      %s75 = sadd.s32 %s74, 1
      %p78 = scmp.eq.s32.totalorder %s40, 1
      %p79 = scmp.ne.s32.totalorder %s74, %s76
      %p80 = scmp.eq.s32.totalorder %s40, 0
      %p81 = por %p79, %p80
      %p82 = scmp.ne.s32.totalorder %s74, %s76
      %p83 = scmp.eq.s32.totalorder %s45, 1
      %p84 = por %p82, %p83
      %p85 = scmp.ne.s32.totalorder %s76, %s77
      %p86 = scmp.eq.s32.totalorder %s45, 0
      %p87 = por %p85, %p86
      %p88 = scmp.ne.s32.totalorder %s76, %s77
      %p89 = scmp.eq.s32.totalorder %s46, 1
      %p90 = por %p88, %p89
      %p92 = scmp.ne.s32.totalorder %s77, %s91
      %p93 = scmp.eq.s32.totalorder %s46, 0
      %p94 = por %p92, %p93
      %s96 = sadd.s32 %s95, 1
      %p99 = scmp.eq.s32.totalorder %s40, 1
      %p100 = scmp.ne.s32.totalorder %s95, %s97
      %p101 = scmp.eq.s32.totalorder %s40, 0
      %p102 = por %p100, %p101
      %p103 = scmp.ne.s32.totalorder %s95, %s97
      %p104 = scmp.eq.s32.totalorder %s45, 1
      %p105 = por %p103, %p104
      %p106 = scmp.ne.s32.totalorder %s97, %s98
      %p107 = scmp.eq.s32.totalorder %s45, 0
      %p108 = por %p106, %p107
      %p109 = scmp.ne.s32.totalorder %s97, %s98
      %p110 = scmp.eq.s32.totalorder %s46, 1
      %p111 = por %p109, %p110
      %p113 = scmp.ne.s32.totalorder %s98, %s112
      %p114 = scmp.eq.s32.totalorder %s46, 0
      %p115 = por %p113, %p114
      %s117 = sadd.s32 %s116, 1
      %p120 = scmp.eq.s32.totalorder %s40, 1
      %p121 = scmp.ne.s32.totalorder %s116, %s118
      %p122 = scmp.eq.s32.totalorder %s40, 0
      %p123 = por %p121, %p122
      %p124 = scmp.ne.s32.totalorder %s116, %s118
      %p125 = scmp.eq.s32.totalorder %s45, 1
      %p126 = por %p124, %p125
      %p127 = scmp.ne.s32.totalorder %s118, %s119
      %p128 = scmp.eq.s32.totalorder %s45, 0
      %p129 = por %p127, %p128
      %p130 = scmp.ne.s32.totalorder %s118, %s119
      %p131 = scmp.eq.s32.totalorder %s46, 1
      %p132 = por %p130, %p131
      %p134 = scmp.ne.s32.totalorder %s119, %s133
      %p135 = scmp.eq.s32.totalorder %s46, 0
      %p136 = por %p134, %p135
      %s138 = sadd.s32 %s137, 1
      %p141 = scmp.eq.s32.totalorder %s40, 1
      %p142 = scmp.ne.s32.totalorder %s137, %s139
      %p143 = scmp.eq.s32.totalorder %s40, 0
      %p144 = por %p142, %p143
      %p145 = scmp.ne.s32.totalorder %s137, %s139
      %p146 = scmp.eq.s32.totalorder %s45, 1
      %p147 = por %p145, %p146
      %p148 = scmp.ne.s32.totalorder %s139, %s140
      %p149 = scmp.eq.s32.totalorder %s45, 0
      %p150 = por %p148, %p149
      %p151 = scmp.ne.s32.totalorder %s139, %s140
      %p152 = scmp.eq.s32.totalorder %s46, 1
      %p153 = por %p151, %p152
      %p155 = scmp.ne.s32.totalorder %s140, %s154
      %p156 = scmp.eq.s32.totalorder %s46, 0
      %p157 = por %p155, %p156
      %s159 = sadd.s32 %s158, 1
      %p162 = scmp.eq.s32.totalorder %s40, 1
      %p163 = scmp.ne.s32.totalorder %s158, %s160
      %p164 = scmp.eq.s32.totalorder %s40, 0
      %p165 = por %p163, %p164
      %p166 = scmp.ne.s32.totalorder %s158, %s160
      %p167 = scmp.eq.s32.totalorder %s45, 1
      %p168 = por %p166, %p167
      %p169 = scmp.ne.s32.totalorder %s160, %s161
      %p170 = scmp.eq.s32.totalorder %s45, 0
      %p171 = por %p169, %p170
      %p172 = scmp.ne.s32.totalorder %s160, %s161
      %p173 = scmp.eq.s32.totalorder %s46, 1
      %p174 = por %p172, %p173
      %p176 = scmp.ne.s32.totalorder %s161, %s175
      %p177 = scmp.eq.s32.totalorder %s46, 0
      %p178 = por %p176, %p177
      %s180 = sadd.s32 %s179, 1
      %p183 = scmp.eq.s32.totalorder %s40, 1
      %p184 = scmp.ne.s32.totalorder %s179, %s181
      %p185 = scmp.eq.s32.totalorder %s40, 0
      %p186 = por %p184, %p185
      %p187 = scmp.ne.s32.totalorder %s179, %s181
      %p188 = scmp.eq.s32.totalorder %s45, 1
      %p189 = por %p187, %p188
      %p190 = scmp.ne.s32.totalorder %s181, %s182
      %p191 = scmp.eq.s32.totalorder %s45, 0
      %p192 = por %p190, %p191
      %p193 = scmp.ne.s32.totalorder %s181, %s182
      %p194 = scmp.eq.s32.totalorder %s46, 1
      %p195 = por %p193, %p194
      %p197 = scmp.ne.s32.totalorder %s182, %s196
      %p198 = scmp.eq.s32.totalorder %s46, 0
      %p199 = por %p197, %p198
      %s201 = sadd.s32 %s200, 1
      %p204 = scmp.eq.s32.totalorder %s40, 1
      %p205 = scmp.ne.s32.totalorder %s200, %s202
      %p206 = scmp.eq.s32.totalorder %s40, 0
      %p207 = por %p205, %p206
      %p208 = scmp.ne.s32.totalorder %s200, %s202
      %p209 = scmp.eq.s32.totalorder %s45, 1
      %p210 = por %p208, %p209
      %p211 = scmp.ne.s32.totalorder %s202, %s203
      %p212 = scmp.eq.s32.totalorder %s45, 0
      %p213 = por %p211, %p212
      %p214 = scmp.ne.s32.totalorder %s202, %s203
      %p215 = scmp.eq.s32.totalorder %s46, 1
      %p216 = por %p214, %p215
      %p218 = scmp.ne.s32.totalorder %s203, %s217
      %p219 = scmp.eq.s32.totalorder %s46, 0
      %p220 = por %p218, %p219
      %s222 = sadd.s32 %s221, 1
      %p225 = scmp.eq.s32.totalorder %s40, 1
      %p226 = scmp.ne.s32.totalorder %s221, %s223
      %p227 = scmp.eq.s32.totalorder %s40, 0
      %p228 = por %p226, %p227
      %p229 = scmp.ne.s32.totalorder %s221, %s223
      %p230 = scmp.eq.s32.totalorder %s45, 1
      %p231 = por %p229, %p230
      %p232 = scmp.ne.s32.totalorder %s223, %s224
      %p233 = scmp.eq.s32.totalorder %s45, 0
      %p234 = por %p232, %p233
      %p235 = scmp.ne.s32.totalorder %s223, %s224
      %p236 = scmp.eq.s32.totalorder %s46, 1
      %p237 = por %p235, %p236
      %p239 = scmp.ne.s32.totalorder %s224, %s238
      %p240 = scmp.eq.s32.totalorder %s46, 0
      %p241 = por %p239, %p240
      %s243 = sadd.s32 %s242, 1
      %p246 = scmp.eq.s32.totalorder %s40, 1
      %p247 = scmp.ne.s32.totalorder %s242, %s244
      %p248 = scmp.eq.s32.totalorder %s40, 0
      %p249 = por %p247, %p248
      %p250 = scmp.ne.s32.totalorder %s242, %s244
      %p251 = scmp.eq.s32.totalorder %s45, 1
      %p252 = por %p250, %p251
      %p253 = scmp.ne.s32.totalorder %s244, %s245
      %p254 = scmp.eq.s32.totalorder %s45, 0
      %p255 = por %p253, %p254
      %p256 = scmp.ne.s32.totalorder %s244, %s245
      %p257 = scmp.eq.s32.totalorder %s46, 1
      %p258 = por %p256, %p257
      %p260 = scmp.ne.s32.totalorder %s245, %s259
      %p261 = scmp.eq.s32.totalorder %s46, 0
      %p262 = por %p260, %p261
      %s264 = sadd.s32 %s263, 1
      %p267 = scmp.eq.s32.totalorder %s40, 1
      %p268 = scmp.ne.s32.totalorder %s263, %s265
      %p269 = scmp.eq.s32.totalorder %s40, 0
      %p270 = por %p268, %p269
      %p271 = scmp.ne.s32.totalorder %s263, %s265
      %p272 = scmp.eq.s32.totalorder %s45, 1
      %p273 = por %p271, %p272
      %p274 = scmp.ne.s32.totalorder %s265, %s266
      %p275 = scmp.eq.s32.totalorder %s45, 0
      %p276 = por %p274, %p275
      %p277 = scmp.ne.s32.totalorder %s265, %s266
      %p278 = scmp.eq.s32.totalorder %s46, 1
      %p279 = por %p277, %p278
      %p281 = scmp.ne.s32.totalorder %s266, %s280
      %p282 = scmp.eq.s32.totalorder %s46, 0
      %p283 = por %p281, %p282
      %s285 = sadd.s32 %s284, 1
      %p288 = scmp.eq.s32.totalorder %s40, 1
      %p289 = scmp.ne.s32.totalorder %s284, %s286
      %p290 = scmp.eq.s32.totalorder %s40, 0
      %p291 = por %p289, %p290
      %p292 = scmp.ne.s32.totalorder %s284, %s286
      %p293 = scmp.eq.s32.totalorder %s45, 1
      %p294 = por %p292, %p293
      %p295 = scmp.ne.s32.totalorder %s286, %s287
      %p296 = scmp.eq.s32.totalorder %s45, 0
      %p297 = por %p295, %p296
      %p298 = scmp.ne.s32.totalorder %s286, %s287
      %p299 = scmp.eq.s32.totalorder %s46, 1
      %p300 = por %p298, %p299
      %p302 = scmp.ne.s32.totalorder %s287, %s301
      %p303 = scmp.eq.s32.totalorder %s46, 0
      %p304 = por %p302, %p303
      %s306 = sadd.s32 %s305, 1
      %p309 = scmp.eq.s32.totalorder %s40, 1
      %p310 = scmp.ne.s32.totalorder %s305, %s307
      %p311 = scmp.eq.s32.totalorder %s40, 0
      %p312 = por %p310, %p311
      %p313 = scmp.ne.s32.totalorder %s305, %s307
      %p314 = scmp.eq.s32.totalorder %s45, 1
      %p315 = por %p313, %p314
      %p316 = scmp.ne.s32.totalorder %s307, %s308
      %p317 = scmp.eq.s32.totalorder %s45, 0
      %p318 = por %p316, %p317
      %p319 = scmp.ne.s32.totalorder %s307, %s308
      %p320 = scmp.eq.s32.totalorder %s46, 1
      %p321 = por %p319, %p320
      %p323 = scmp.ne.s32.totalorder %s308, %s322
      %p324 = scmp.eq.s32.totalorder %s46, 0
      %p325 = por %p323, %p324
      %s327 = sadd.s32 %s326, 1
      %p330 = scmp.eq.s32.totalorder %s40, 1
      %p331 = scmp.ne.s32.totalorder %s326, %s328
      %p332 = scmp.eq.s32.totalorder %s40, 0
      %p333 = por %p331, %p332
      %p334 = scmp.ne.s32.totalorder %s326, %s328
      %p335 = scmp.eq.s32.totalorder %s45, 1
      %p336 = por %p334, %p335
      %p337 = scmp.ne.s32.totalorder %s328, %s329
      %p338 = scmp.eq.s32.totalorder %s45, 0
      %p339 = por %p337, %p338
      %p340 = scmp.ne.s32.totalorder %s328, %s329
      %p341 = scmp.eq.s32.totalorder %s46, 1
      %p342 = por %p340, %p341
      %p344 = scmp.ne.s32.totalorder %s329, %s343
      %p345 = scmp.eq.s32.totalorder %s46, 0
      %p346 = por %p344, %p345
      %s348 = sadd.s32 %s347, 1
      %p351 = scmp.eq.s32.totalorder %s40, 1
      %p352 = scmp.ne.s32.totalorder %s347, %s349
      %p353 = scmp.eq.s32.totalorder %s40, 0
      %p354 = por %p352, %p353
      %p355 = scmp.ne.s32.totalorder %s347, %s349
      %p356 = scmp.eq.s32.totalorder %s45, 1
      %p357 = por %p355, %p356
      %p358 = scmp.ne.s32.totalorder %s349, %s350
      %p359 = scmp.eq.s32.totalorder %s45, 0
      %p360 = por %p358, %p359
      %p361 = scmp.ne.s32.totalorder %s349, %s350
      %p362 = scmp.eq.s32.totalorder %s46, 1
      %p363 = por %p361, %p362
      %p365 = scmp.ne.s32.totalorder %s350, %s364
      %p366 = scmp.eq.s32.totalorder %s46, 0
      %p367 = por %p365, %p366
      %s369 = sadd.s32 %s368, 1
      %p372 = scmp.eq.s32.totalorder %s40, 1
      %p373 = scmp.ne.s32.totalorder %s368, %s370
      %p374 = scmp.eq.s32.totalorder %s40, 0
      %p375 = por %p373, %p374
      %p376 = scmp.ne.s32.totalorder %s368, %s370
      %p377 = scmp.eq.s32.totalorder %s45, 1
      %p378 = por %p376, %p377
      %p379 = scmp.ne.s32.totalorder %s370, %s371
      %p380 = scmp.eq.s32.totalorder %s45, 0
      %p381 = por %p379, %p380
      %p382 = scmp.ne.s32.totalorder %s370, %s371
      %p383 = scmp.eq.s32.totalorder %s46, 1
      %p384 = por %p382, %p383
      %p386 = scmp.ne.s32.totalorder %s371, %s385
      %p387 = scmp.eq.s32.totalorder %s46, 0
      %p388 = por %p386, %p387
      %s390 = sadd.s32 %s389, 1
      %p393 = scmp.eq.s32.totalorder %s40, 1
      %p394 = scmp.ne.s32.totalorder %s389, %s391
      %p395 = scmp.eq.s32.totalorder %s40, 0
      %p396 = por %p394, %p395
      %p397 = scmp.ne.s32.totalorder %s389, %s391
      %p398 = scmp.eq.s32.totalorder %s45, 1
      %p399 = por %p397, %p398
      %p400 = scmp.ne.s32.totalorder %s391, %s392
      %p401 = scmp.eq.s32.totalorder %s45, 0
      %p402 = por %p400, %p401
      %p403 = scmp.ne.s32.totalorder %s391, %s392
      %p404 = scmp.eq.s32.totalorder %s46, 1
      %p405 = por %p403, %p404
      %p407 = scmp.ne.s32.totalorder %s392, %s406
      %p408 = scmp.eq.s32.totalorder %s46, 0
      %p409 = por %p407, %p408
      %s411 = sadd.s32 %s410, 1
      %p414 = scmp.eq.s32.totalorder %s40, 1
      %p415 = scmp.ne.s32.totalorder %s410, %s412
      %p416 = scmp.eq.s32.totalorder %s40, 0
      %p417 = por %p415, %p416
      %p418 = scmp.ne.s32.totalorder %s410, %s412
      %p419 = scmp.eq.s32.totalorder %s45, 1
      %p420 = por %p418, %p419
      %p421 = scmp.ne.s32.totalorder %s412, %s413
      %p422 = scmp.eq.s32.totalorder %s45, 0
      %p423 = por %p421, %p422
      %p424 = scmp.ne.s32.totalorder %s412, %s413
      %p425 = scmp.eq.s32.totalorder %s46, 1
      %p426 = por %p424, %p425
      %p428 = scmp.ne.s32.totalorder %s413, %s427
      %p429 = scmp.eq.s32.totalorder %s46, 0
      %p430 = por %p428, %p429
      %s432 = sadd.s32 %s431, 1
      %p435 = scmp.eq.s32.totalorder %s40, 1
      %p436 = scmp.ne.s32.totalorder %s431, %s433
      %p437 = scmp.eq.s32.totalorder %s40, 0
      %p438 = por %p436, %p437
      %p439 = scmp.ne.s32.totalorder %s431, %s433
      %p440 = scmp.eq.s32.totalorder %s45, 1
      %p441 = por %p439, %p440
      %p442 = scmp.ne.s32.totalorder %s433, %s434
      %p443 = scmp.eq.s32.totalorder %s45, 0
      %p444 = por %p442, %p443
      %p445 = scmp.ne.s32.totalorder %s433, %s434
      %p446 = scmp.eq.s32.totalorder %s46, 1
      %p447 = por %p445, %p446
      %p449 = scmp.ne.s32.totalorder %s434, %s448
      %p450 = scmp.eq.s32.totalorder %s46, 0
      %p451 = por %p449, %p450
      %s453 = sadd.s32 %s452, 1
      %p456 = scmp.eq.s32.totalorder %s40, 1
      %p457 = scmp.ne.s32.totalorder %s452, %s454
      %p458 = scmp.eq.s32.totalorder %s40, 0
      %p459 = por %p457, %p458
      %p460 = scmp.ne.s32.totalorder %s452, %s454
      %p461 = scmp.eq.s32.totalorder %s45, 1
      %p462 = por %p460, %p461
      %p463 = scmp.ne.s32.totalorder %s454, %s455
      %p464 = scmp.eq.s32.totalorder %s45, 0
      %p465 = por %p463, %p464
      %p466 = scmp.ne.s32.totalorder %s454, %s455
      %p467 = scmp.eq.s32.totalorder %s46, 1
      %p468 = por %p466, %p467
      %p470 = scmp.ne.s32.totalorder %s455, %s469
      %p471 = scmp.eq.s32.totalorder %s46, 0
      %p472 = por %p470, %p471
      %s474 = sadd.s32 %s473, 1
      %p477 = scmp.eq.s32.totalorder %s40, 1
      %p478 = scmp.ne.s32.totalorder %s473, %s475
      %p479 = scmp.eq.s32.totalorder %s40, 0
      %p480 = por %p478, %p479
      %p481 = scmp.ne.s32.totalorder %s473, %s475
      %p482 = scmp.eq.s32.totalorder %s45, 1
      %p483 = por %p481, %p482
      %p484 = scmp.ne.s32.totalorder %s475, %s476
      %p485 = scmp.eq.s32.totalorder %s45, 0
      %p486 = por %p484, %p485
      %p487 = scmp.ne.s32.totalorder %s475, %s476
      %p488 = scmp.eq.s32.totalorder %s46, 1
      %p489 = por %p487, %p488
      %p491 = scmp.ne.s32.totalorder %s476, %s490
      %p492 = scmp.eq.s32.totalorder %s46, 0
      %p493 = por %p491, %p492
      %s494 = ssub.s32 %s40, %s47
      %p495 = scmp.eq.s32.totalorder %s494, 0
      %s497 = sadd.s32 %s496, 1
      %s498 = scalar_select %p495, %s496, %s497
      %p501 = pneg %p495
      %p502 = scmp.eq.s32.totalorder %s40, 1
      %p503 = por %p501, %p502
      %p504 = scmp.ne.s32.totalorder %s496, %s499
      %p505 = scmp.eq.s32.totalorder %s40, 0
      %p506 = por %p504, %p505
      %p507 = scmp.ne.s32.totalorder %s496, %s499
      %p508 = scmp.eq.s32.totalorder %s45, 1
      %p509 = por %p507, %p508
      %p510 = scmp.ne.s32.totalorder %s499, %s500
      %p511 = scmp.eq.s32.totalorder %s45, 0
      %p512 = por %p510, %p511
      %p513 = scmp.ne.s32.totalorder %s499, %s500
      %p514 = scmp.eq.s32.totalorder %s46, 1
      %p515 = por %p513, %p514
      %p517 = scmp.ne.s32.totalorder %s500, %s516
      %p518 = scmp.eq.s32.totalorder %s46, 0
      %p519 = por %p517, %p518
      %p520 = scmp.le.s32.totalorder 1, %s40
      %p521 = scmp.lt.s32.totalorder %s40, 3
      %p522 = pnand %p520, %p521
      %p523 = pneg %p522
      // Predicated region
      $region9: #{tpu_custom_call.1} parent=5 // pred_check
        _
      $region10: #{tpu_custom_call.1} parent=5 // pred_check_branch
        %525 = sbr.rel (%p522) target = $region12
      $region11: #{tpu_custom_call.1} parent=5 // pred_region
        %s526 = ssub.s32 %s40, 1
        // Predicated region
        $region13: #{tpu_custom_call.1} parent=11 // pred_check
          %p527 = pneg %p87
        $region14: #{tpu_custom_call.1} parent=11 // pred_check_branch
          %529 = sbr.rel (%p527) target = $region16
        $region15: #{tpu_custom_call.1} parent=11 // pred_region
          %531 = vsyncadd [#allocation7], 0
          %s532 = sshll.u32 %s1, 4
          %s533 = int_to_ptr.hbm [resolvable:$true] %s532
          %s534 = sshll.u32 [#allocation6], 4
          %s535 = int_to_ptr.vmem [resolvable:$true] %s534
          %540 = dma.hbm_to_vmem [thread:$0]  %s533, 3072, %s535, [#allocation7], 192, 192, 12
        $region16: #{tpu_custom_call.1} parent=11 // pred_fallthru
          _
        // Predicated region
        $region17: #{tpu_custom_call.1} parent=11 // pred_check
          %p541 = pneg %p108
        $region18: #{tpu_custom_call.1} parent=11 // pred_check_branch
          %543 = sbr.rel (%p541) target = $region20
        $region19: #{tpu_custom_call.1} parent=11 // pred_region
          %545 = vsyncadd [#allocation7], 0
          %s547 = sshll.u32 %s2, 4
          %s548 = int_to_ptr.hbm [resolvable:$true] %s547
          %s549 = sshll.u32 [#allocation8], 4
          %s550 = int_to_ptr.vmem [resolvable:$true] %s549
          %552 = dma.hbm_to_vmem [thread:$0]  %s548, 48, %s550, [#allocation7]
        $region20: #{tpu_custom_call.1} parent=11 // pred_fallthru
          _
        // Predicated region
        $region21: #{tpu_custom_call.1} parent=11 // pred_check
          %p553 = pneg %p129
        $region22: #{tpu_custom_call.1} parent=11 // pred_check_branch
          %555 = sbr.rel (%p553) target = $region24
        $region23: #{tpu_custom_call.1} parent=11 // pred_region
          %557 = vsyncadd [#allocation10], 0
          %s558 = sshll.u32 %s3, 4
          %s559 = int_to_ptr.hbm [resolvable:$true] %s558
          %s560 = sshll.u32 [#allocation9], 4
          %s561 = int_to_ptr.vmem [resolvable:$true] %s560
          %566 = dma.hbm_to_vmem [thread:$0]  %s559, 1024, %s561, [#allocation10], 64, 64, 4
        $region24: #{tpu_custom_call.1} parent=11 // pred_fallthru
          _
        // Predicated region
        $region25: #{tpu_custom_call.1} parent=11 // pred_check
          %p567 = pneg %p150
        $region26: #{tpu_custom_call.1} parent=11 // pred_check_branch
          %569 = sbr.rel (%p567) target = $region28
        $region27: #{tpu_custom_call.1} parent=11 // pred_region
          %571 = vsyncadd [#allocation10], 0
          %s573 = sshll.u32 %s4, 4
          %s574 = int_to_ptr.hbm [resolvable:$true] %s573
          %s575 = sshll.u32 [#allocation11], 4
          %s576 = int_to_ptr.vmem [resolvable:$true] %s575
          %578 = dma.hbm_to_vmem [thread:$0]  %s574, 16, %s576, [#allocation10]
        $region28: #{tpu_custom_call.1} parent=11 // pred_fallthru
          _
        // Predicated region
        $region29: #{tpu_custom_call.1} parent=11 // pred_check
          %p579 = pneg %p171
        $region30: #{tpu_custom_call.1} parent=11 // pred_check_branch
          %581 = sbr.rel (%p579) target = $region32
        $region31: #{tpu_custom_call.1} parent=11 // pred_region
          %583 = vsyncadd [#allocation13], 0
          %s585 = sshll.u32 %s5, 4
          %s586 = int_to_ptr.hbm [resolvable:$true] %s585
          %s587 = sshll.u32 [#allocation12], 4
          %s588 = int_to_ptr.vmem [resolvable:$true] %s587
          %590 = dma.hbm_to_vmem [thread:$0]  %s586, 16, %s588, [#allocation13]
        $region32: #{tpu_custom_call.1} parent=11 // pred_fallthru
          _
        // Predicated region
        $region33: #{tpu_custom_call.1} parent=11 // pred_check
          %p591 = pneg %p192
        $region34: #{tpu_custom_call.1} parent=11 // pred_check_branch
          %593 = sbr.rel (%p591) target = $region36
        $region35: #{tpu_custom_call.1} parent=11 // pred_region
          %595 = vsyncadd [#allocation13], 0
          %s597 = sshll.u32 %s6, 4
          %s598 = int_to_ptr.hbm [resolvable:$true] %s597
          %s599 = sshll.u32 [#allocation14], 4
          %s600 = int_to_ptr.vmem [resolvable:$true] %s599
          %602 = dma.hbm_to_vmem [thread:$0]  %s598, 16, %s600, [#allocation13]
        $region36: #{tpu_custom_call.1} parent=11 // pred_fallthru
          _
        // Predicated region
        $region37: #{tpu_custom_call.1} parent=11 // pred_check
          %p603 = pneg %p213
        $region38: #{tpu_custom_call.1} parent=11 // pred_check_branch
          %605 = sbr.rel (%p603) target = $region40
        $region39: #{tpu_custom_call.1} parent=11 // pred_region
          %607 = vsyncadd [#allocation16], 0
          %s608 = sshll.u32 %s7, 4
          %s609 = int_to_ptr.hbm [resolvable:$true] %s608
          %s610 = sshll.u32 [#allocation15], 4
          %s611 = int_to_ptr.vmem [resolvable:$true] %s610
          %616 = dma.hbm_to_vmem [thread:$0]  %s609, 4096, %s611, [#allocation16], 256, 256, 16
        $region40: #{tpu_custom_call.1} parent=11 // pred_fallthru
          _
        // Predicated region
        $region41: #{tpu_custom_call.1} parent=11 // pred_check
          %p617 = pneg %p234
        $region42: #{tpu_custom_call.1} parent=11 // pred_check_branch
          %619 = sbr.rel (%p617) target = $region44
        $region43: #{tpu_custom_call.1} parent=11 // pred_region
          _
        $region44: #{tpu_custom_call.1} parent=11 // pred_fallthru
          _
        // Predicated region
        $region45: #{tpu_custom_call.1} parent=11 // pred_check
          %p620 = pneg %p255
        $region46: #{tpu_custom_call.1} parent=11 // pred_check_branch
          %622 = sbr.rel (%p620) target = $region48
        $region47: #{tpu_custom_call.1} parent=11 // pred_region
          _
        $region48: #{tpu_custom_call.1} parent=11 // pred_fallthru
          _
        // Predicated region
        $region49: #{tpu_custom_call.1} parent=11 // pred_check
          %p623 = pneg %p276
        $region50: #{tpu_custom_call.1} parent=11 // pred_check_branch
          %625 = sbr.rel (%p623) target = $region52
        $region51: #{tpu_custom_call.1} parent=11 // pred_region
          %627 = vsyncadd [#allocation16], 0
          %s629 = sshll.u32 %s10, 4
          %s630 = int_to_ptr.hbm [resolvable:$true] %s629
          %s631 = sshll.u32 [#allocation17], 4
          %s632 = int_to_ptr.vmem [resolvable:$true] %s631
          %634 = dma.hbm_to_vmem [thread:$0]  %s630, 64, %s632, [#allocation16]
        $region52: #{tpu_custom_call.1} parent=11 // pred_fallthru
          _
        // Predicated region
        $region53: #{tpu_custom_call.1} parent=11 // pred_check
          %p635 = pneg %p297
        $region54: #{tpu_custom_call.1} parent=11 // pred_check_branch
          %637 = sbr.rel (%p635) target = $region56
        $region55: #{tpu_custom_call.1} parent=11 // pred_region
          %639 = vsyncadd [#allocation19], 0
          %s640 = sshll.u32 %s11, 4
          %s641 = int_to_ptr.hbm [resolvable:$true] %s640
          %s642 = sshll.u32 [#allocation18], 4
          %s643 = int_to_ptr.vmem [resolvable:$true] %s642
          %648 = dma.hbm_to_vmem [thread:$0]  %s641, 8192, %s643, [#allocation19], 128, 128, 8
        $region56: #{tpu_custom_call.1} parent=11 // pred_fallthru
          _
        // Predicated region
        $region57: #{tpu_custom_call.1} parent=11 // pred_check
          %p649 = pneg %p318
        $region58: #{tpu_custom_call.1} parent=11 // pred_check_branch
          %651 = sbr.rel (%p649) target = $region60
        $region59: #{tpu_custom_call.1} parent=11 // pred_region
          _
        $region60: #{tpu_custom_call.1} parent=11 // pred_fallthru
          _
        // Predicated region
        $region61: #{tpu_custom_call.1} parent=11 // pred_check
          %p652 = pneg %p339
        $region62: #{tpu_custom_call.1} parent=11 // pred_check_branch
          %654 = sbr.rel (%p652) target = $region64
        $region63: #{tpu_custom_call.1} parent=11 // pred_region
          _
        $region64: #{tpu_custom_call.1} parent=11 // pred_fallthru
          _
        // Predicated region
        $region65: #{tpu_custom_call.1} parent=11 // pred_check
          %p655 = pneg %p360
        $region66: #{tpu_custom_call.1} parent=11 // pred_check_branch
          %657 = sbr.rel (%p655) target = $region68
        $region67: #{tpu_custom_call.1} parent=11 // pred_region
          _
        $region68: #{tpu_custom_call.1} parent=11 // pred_fallthru
          _
        // Predicated region
        $region69: #{tpu_custom_call.1} parent=11 // pred_check
          %p658 = pneg %p381
        $region70: #{tpu_custom_call.1} parent=11 // pred_check_branch
          %660 = sbr.rel (%p658) target = $region72
        $region71: #{tpu_custom_call.1} parent=11 // pred_region
          %662 = vsyncadd [#allocation19], 0
          %s663 = sshll.u32 %s15, 4
          %s664 = int_to_ptr.hbm [resolvable:$true] %s663
          %s665 = sshll.u32 [#allocation20], 4
          %s666 = int_to_ptr.vmem [resolvable:$true] %s665
          %671 = dma.hbm_to_vmem [thread:$0]  %s664, 2048, %s666, [#allocation19], 64, 64, 4
        $region72: #{tpu_custom_call.1} parent=11 // pred_fallthru
          _
        // Predicated region
        $region73: #{tpu_custom_call.1} parent=11 // pred_check
          %p672 = pneg %p402
        $region74: #{tpu_custom_call.1} parent=11 // pred_check_branch
          %674 = sbr.rel (%p672) target = $region76
        $region75: #{tpu_custom_call.1} parent=11 // pred_region
          _
        $region76: #{tpu_custom_call.1} parent=11 // pred_fallthru
          _
        // Predicated region
        $region77: #{tpu_custom_call.1} parent=11 // pred_check
          %p675 = pneg %p423
        $region78: #{tpu_custom_call.1} parent=11 // pred_check_branch
          %677 = sbr.rel (%p675) target = $region80
        $region79: #{tpu_custom_call.1} parent=11 // pred_region
          _
        $region80: #{tpu_custom_call.1} parent=11 // pred_fallthru
          _
        // Predicated region
        $region81: #{tpu_custom_call.1} parent=11 // pred_check
          %p678 = pneg %p444
        $region82: #{tpu_custom_call.1} parent=11 // pred_check_branch
          %680 = sbr.rel (%p678) target = $region84
        $region83: #{tpu_custom_call.1} parent=11 // pred_region
          _
        $region84: #{tpu_custom_call.1} parent=11 // pred_fallthru
          _
        // Predicated region
        $region85: #{tpu_custom_call.1} parent=11 // pred_check
          %p681 = pneg %p465
        $region86: #{tpu_custom_call.1} parent=11 // pred_check_branch
          %683 = sbr.rel (%p681) target = $region88
        $region87: #{tpu_custom_call.1} parent=11 // pred_region
          _
        $region88: #{tpu_custom_call.1} parent=11 // pred_fallthru
          _
        // Predicated region
        $region89: #{tpu_custom_call.1} parent=11 // pred_check
          %p684 = pneg %p486
        $region90: #{tpu_custom_call.1} parent=11 // pred_check_branch
          %686 = sbr.rel (%p684) target = $region92
        $region91: #{tpu_custom_call.1} parent=11 // pred_region
          _
        $region92: #{tpu_custom_call.1} parent=11 // pred_fallthru
          _
      $region12: #{tpu_custom_call.1} parent=5 // pred_fallthru
        _
      %p687 = scmp.lt.s32.totalorder %s40, 2
      // Predicated region
      $region93: #{tpu_custom_call.1} parent=5 // pred_check
        %p688 = pneg %p687
      $region94: #{tpu_custom_call.1} parent=5 // pred_check_branch
        %690 = sbr.rel (%p688) target = $region96
      $region95: #{tpu_custom_call.1} parent=5 // pred_region
        // Predicated region
        $region97: #{tpu_custom_call.1} parent=95 // pred_check
          %p691 = pneg %p60
        $region98: #{tpu_custom_call.1} parent=95 // pred_check_branch
          %693 = sbr.rel (%p691) target = $region100
        $region99: #{tpu_custom_call.1} parent=95 // pred_region
          %s694 = sand.u32 %s50, 1
          %s695 = scalar_lea.sflag [#allocation4], %s694
          %s696 = sand.u32 %s50, 1
          %s697 = smul.addr %s696, 12
          %s698 = scalar_lea.vmem [#allocation3], %s697
          %700 = vsyncadd %s695, 0
          %s701 = smul.addr %s40, 3
          %s702 = smul.addr %s701, 4
          %s703 = scalar_lea.hbm %s0, %s702
          %s705 = sshll.u32 %s703, 4
          %s706 = int_to_ptr.hbm [resolvable:$true] %s705
          %s707 = sshll.u32 %s698, 4
          %s708 = int_to_ptr.vmem [resolvable:$true] %s707
          %710 = dma.hbm_to_vmem [thread:$0]  %s706, 192, %s708, %s695
        $region100: #{tpu_custom_call.1} parent=95 // pred_fallthru
          _
      $region96: #{tpu_custom_call.1} parent=5 // pred_fallthru
        _
      %p711 = scmp.le.s32.totalorder 1, %s40
      %p712 = scmp.lt.s32.totalorder %s40, 3
      %p713 = pnand %p711, %p712
      %p714 = pneg %p713
      // Predicated region
      $region101: #{tpu_custom_call.1} parent=5 // pred_check
        _
      $region102: #{tpu_custom_call.1} parent=5 // pred_check_branch
        %716 = sbr.rel (%p713) target = $region104
      $region103: #{tpu_custom_call.1} parent=5 // pred_region
        %s717 = ssub.s32 %s40, 1
        %s718 = sand.u32 %s53, 1
        %s719 = scalar_lea.sflag [#allocation4], %s718
        %s720 = sand.u32 %s53, 1
        %s721 = smul.addr %s720, 12
        %s722 = scalar_lea.vmem [#allocation3], %s721
        // Predicated region
        $region105: #{tpu_custom_call.1} parent=103 // pred_check
          %p723 = pneg %p66
        $region106: #{tpu_custom_call.1} parent=103 // pred_check_branch
          %725 = sbr.rel (%p723) target = $region108
        $region107: #{tpu_custom_call.1} parent=103 // pred_region
          %727 = dma.done %s719, 192
        $region108: #{tpu_custom_call.1} parent=103 // pred_fallthru
          _
        // Predicated region
        $region109: #{tpu_custom_call.1} parent=103 // pred_check
          %p728 = pneg %p87
        $region110: #{tpu_custom_call.1} parent=103 // pred_check_branch
          %730 = sbr.rel (%p728) target = $region112
        $region111: #{tpu_custom_call.1} parent=103 // pred_region
          %732 = dma.done [#allocation7], 3072
        $region112: #{tpu_custom_call.1} parent=103 // pred_fallthru
          _
        // Predicated region
        $region113: #{tpu_custom_call.1} parent=103 // pred_check
          %p733 = pneg %p108
        $region114: #{tpu_custom_call.1} parent=103 // pred_check_branch
          %735 = sbr.rel (%p733) target = $region116
        $region115: #{tpu_custom_call.1} parent=103 // pred_region
          %737 = dma.done [#allocation7], 48
        $region116: #{tpu_custom_call.1} parent=103 // pred_fallthru
          _
        // Predicated region
        $region117: #{tpu_custom_call.1} parent=103 // pred_check
          %p738 = pneg %p129
        $region118: #{tpu_custom_call.1} parent=103 // pred_check_branch
          %740 = sbr.rel (%p738) target = $region120
        $region119: #{tpu_custom_call.1} parent=103 // pred_region
          %742 = dma.done [#allocation10], 1024
        $region120: #{tpu_custom_call.1} parent=103 // pred_fallthru
          _
        // Predicated region
        $region121: #{tpu_custom_call.1} parent=103 // pred_check
          %p743 = pneg %p150
        $region122: #{tpu_custom_call.1} parent=103 // pred_check_branch
          %745 = sbr.rel (%p743) target = $region124
        $region123: #{tpu_custom_call.1} parent=103 // pred_region
          %747 = dma.done [#allocation10], 16
        $region124: #{tpu_custom_call.1} parent=103 // pred_fallthru
          _
        // Predicated region
        $region125: #{tpu_custom_call.1} parent=103 // pred_check
          %p748 = pneg %p171
        $region126: #{tpu_custom_call.1} parent=103 // pred_check_branch
          %750 = sbr.rel (%p748) target = $region128
        $region127: #{tpu_custom_call.1} parent=103 // pred_region
          %752 = dma.done [#allocation13], 16
        $region128: #{tpu_custom_call.1} parent=103 // pred_fallthru
          _
        // Predicated region
        $region129: #{tpu_custom_call.1} parent=103 // pred_check
          %p753 = pneg %p192
        $region130: #{tpu_custom_call.1} parent=103 // pred_check_branch
          %755 = sbr.rel (%p753) target = $region132
        $region131: #{tpu_custom_call.1} parent=103 // pred_region
          %757 = dma.done [#allocation13], 16
        $region132: #{tpu_custom_call.1} parent=103 // pred_fallthru
          _
        // Predicated region
        $region133: #{tpu_custom_call.1} parent=103 // pred_check
          %p758 = pneg %p213
        $region134: #{tpu_custom_call.1} parent=103 // pred_check_branch
          %760 = sbr.rel (%p758) target = $region136
        $region135: #{tpu_custom_call.1} parent=103 // pred_region
          %762 = dma.done [#allocation16], 4096
        $region136: #{tpu_custom_call.1} parent=103 // pred_fallthru
          _
        // Predicated region
        $region137: #{tpu_custom_call.1} parent=103 // pred_check
          %p763 = pneg %p276
        $region138: #{tpu_custom_call.1} parent=103 // pred_check_branch
          %765 = sbr.rel (%p763) target = $region140
        $region139: #{tpu_custom_call.1} parent=103 // pred_region
          %767 = dma.done [#allocation16], 64
        $region140: #{tpu_custom_call.1} parent=103 // pred_fallthru
          _
        // Predicated region
        $region141: #{tpu_custom_call.1} parent=103 // pred_check
          %p768 = pneg %p297
        $region142: #{tpu_custom_call.1} parent=103 // pred_check_branch
          %770 = sbr.rel (%p768) target = $region144
        $region143: #{tpu_custom_call.1} parent=103 // pred_region
          %772 = dma.done [#allocation19], 8192
        $region144: #{tpu_custom_call.1} parent=103 // pred_fallthru
          _
        // Predicated region
        $region145: #{tpu_custom_call.1} parent=103 // pred_check
          %p773 = pneg %p381
        $region146: #{tpu_custom_call.1} parent=103 // pred_check_branch
          %775 = sbr.rel (%p773) target = $region148
        $region147: #{tpu_custom_call.1} parent=103 // pred_region
          %777 = dma.done [#allocation19], 2048
        $region148: #{tpu_custom_call.1} parent=103 // pred_fallthru
          _
        %s778 = sand.u32 %s53, 1
        %s779 = scalar_lea.sflag [#allocation4], %s778
        %s780 = sand.u32 %s53, 1
        %s781 = smul.addr %s780, 12
        %s782 = scalar_lea.vmem [#allocation3], %s781
        %p783 = pneg %p66
        %p784 = pneg %p63
        %p785 = pneg %p87
        %p786 = pneg %p84
        %p787 = pneg %p108
        %p788 = pneg %p105
        %p789 = pneg %p129
        %p790 = pneg %p126
        %p791 = pneg %p150
        %p792 = pneg %p147
        %p793 = pneg %p171
        %p794 = pneg %p168
        %p795 = pneg %p192
        %p796 = pneg %p189
        %p797 = pneg %p213
        %p798 = pneg %p210
        %p799 = pneg %p234
        %p800 = pneg %p231
        %p801 = pneg %p255
        %p802 = pneg %p252
        %p803 = pneg %p276
        %p804 = pneg %p273
        %p805 = pneg %p297
        %p806 = pneg %p294
        %p807 = pneg %p318
        %p808 = pneg %p315
        %p809 = pneg %p339
        %p810 = pneg %p336
        %p811 = pneg %p360
        %p812 = pneg %p357
        %p813 = pneg %p381
        %p814 = pneg %p378
        %p815 = pneg %p402
        %p816 = pneg %p399
        %p817 = pneg %p423
        %p818 = pneg %p420
        %p819 = pneg %p444
        %p820 = pneg %p441
        %p821 = pneg %p465
        %p822 = pneg %p462
        %p823 = pneg %p486
        %p824 = pneg %p483
        %p825 = pneg %p512
        %p826 = pneg %p509
        %s827 = sand.u32 %s499, 1
        %s828 = scalar_lea.sflag [#allocation5], %s827
        %s829 = sand.u32 %s499, 1
        %s830 = smul.addr %s829, 8
        %s831 = scalar_lea.vmem [#allocation21], %s830
        %v832 = vlaneseq
        %v833 = vand.u32 %v832, 127
        %vm834 = vcmp.ge.s32.totalorder %v833, 0
        %vm835 = vcmp.lt.s32.totalorder %v833, 64
        %vm836 = vmand %vm834, %vm835
        %v837 = vsel %vm836, 1, 0
        %v838 = vcvt.s32.f32 %v837
        %vm839 = vcmp.ge.s32.totalorder %v833, 64
        %vm840 = vcmp.lt.s32.totalorder %v833, 128
        %vm841 = vmand %vm839, %vm840
        %v842 = vsel %vm841, 1, 0
        %v843 = vcvt.s32.f32 %v842
        %v844 = vld [vmem:[%s722] sm:$0xff]
        %v845 = vld [vmem:[%s722 + $0x8] sm:$0xf]
        %v846 = vld [vmem:[#allocation6] sm:$0xff]
        %v847 = vld [vmem:[#allocation6 + $0x8] sm:$0xf]
        %v848 = vld [vmem:[#allocation6 + $0xc] sm:$0xff]
        %v849 = vld [vmem:[#allocation6 + $0x14] sm:$0xf]
        %v850 = vld [vmem:[#allocation6 + $0x18] sm:$0xff]
        %v851 = vld [vmem:[#allocation6 + $0x20] sm:$0xf]
        %v852 = vld [vmem:[#allocation6 + $0x24] sm:$0xff]
        %v853 = vld [vmem:[#allocation6 + $0x2c] sm:$0xf]
        %v854 = vld [vmem:[#allocation6 + $0x30] sm:$0xff]
        %v855 = vld [vmem:[#allocation6 + $0x38] sm:$0xf]
        %v856 = vld [vmem:[#allocation6 + $0x3c] sm:$0xff]
        %v857 = vld [vmem:[#allocation6 + $0x44] sm:$0xf]
        %v858 = vld [vmem:[#allocation6 + $0x48] sm:$0xff]
        %v859 = vld [vmem:[#allocation6 + $0x50] sm:$0xf]
        %v860 = vld [vmem:[#allocation6 + $0x54] sm:$0xff]
        %v861 = vld [vmem:[#allocation6 + $0x5c] sm:$0xf]
        %v862 = vld [vmem:[#allocation6 + $0x60] sm:$0xff]
        %v863 = vld [vmem:[#allocation6 + $0x68] sm:$0xf]
        %v864 = vld [vmem:[#allocation6 + $0x6c] sm:$0xff]
        %v865 = vld [vmem:[#allocation6 + $0x74] sm:$0xf]
        %v866 = vld [vmem:[#allocation6 + $0x78] sm:$0xff]
        %v867 = vld [vmem:[#allocation6 + $0x80] sm:$0xf]
        %v868 = vld [vmem:[#allocation6 + $0x84] sm:$0xff]
        %v869 = vld [vmem:[#allocation6 + $0x8c] sm:$0xf]
        %v870 = vld [vmem:[#allocation6 + $0x90] sm:$0xff]
        %v871 = vld [vmem:[#allocation6 + $0x98] sm:$0xf]
        %v872 = vld [vmem:[#allocation6 + $0x9c] sm:$0xff]
        %v873 = vld [vmem:[#allocation6 + $0xa4] sm:$0xf]
        %v874 = vld [vmem:[#allocation6 + $0xa8] sm:$0xff]
        %v875 = vld [vmem:[#allocation6 + $0xb0] sm:$0xf]
        %v876 = vld [vmem:[#allocation6 + $0xb4] sm:$0xff]
        %v877 = vld [vmem:[#allocation6 + $0xbc] sm:$0xf]
        %v878 = vld [vmem:[#allocation8] sm:$0x7]
        %v880 = vperm.slane %v878, 0
        %v881 = vperm.slane %v878, 1
        %v882 = vperm.slane %v878, 2
        %v918 = vunpack.c.l.b16 %v846
        %v919 = vunpack.c.h.b16 %v846
        %v920 = vunpack.c.l.b16 %v847
        %v921 = vunpack.c.l.b16 %v848
        %v922 = vunpack.c.h.b16 %v848
        %v923 = vunpack.c.l.b16 %v849
        %v924 = vunpack.c.l.b16 %v850
        %v925 = vunpack.c.h.b16 %v850
        %v926 = vunpack.c.l.b16 %v851
        %v927 = vunpack.c.l.b16 %v852
        %v928 = vunpack.c.h.b16 %v852
        %v929 = vunpack.c.l.b16 %v853
        %v930 = vunpack.c.l.b16 %v854
        %v931 = vunpack.c.h.b16 %v854
        %v932 = vunpack.c.l.b16 %v855
        %v933 = vunpack.c.l.b16 %v856
        %v934 = vunpack.c.h.b16 %v856
        %v935 = vunpack.c.l.b16 %v857
        %v936 = vunpack.c.l.b16 %v858
        %v937 = vunpack.c.h.b16 %v858
        %v938 = vunpack.c.l.b16 %v859
        %v939 = vunpack.c.l.b16 %v860
        %v940 = vunpack.c.h.b16 %v860
        %v941 = vunpack.c.l.b16 %v861
        %v942 = vunpack.c.l.b16 %v862
        %v943 = vunpack.c.h.b16 %v862
        %v944 = vunpack.c.l.b16 %v863
        %v945 = vunpack.c.l.b16 %v864
        %v946 = vunpack.c.h.b16 %v864
        %v947 = vunpack.c.l.b16 %v865
        %v948 = vunpack.c.l.b16 %v866
        %v949 = vunpack.c.h.b16 %v866
        %v950 = vunpack.c.l.b16 %v867
        %v951 = vunpack.c.l.b16 %v868
        %v952 = vunpack.c.h.b16 %v868
        %v953 = vunpack.c.l.b16 %v869
        %v954 = vunpack.c.l.b16 %v870
        %v955 = vunpack.c.h.b16 %v870
        %v956 = vunpack.c.l.b16 %v871
        %v957 = vunpack.c.l.b16 %v872
        %v958 = vunpack.c.h.b16 %v872
        %v959 = vunpack.c.l.b16 %v873
        %v960 = vunpack.c.l.b16 %v874
        %v961 = vunpack.c.h.b16 %v874
        %v962 = vunpack.c.l.b16 %v875
        %v963 = vunpack.c.l.b16 %v876
        %v964 = vunpack.c.h.b16 %v876
        %v965 = vunpack.c.l.b16 %v877
        %v966 = vpack.c.b16 %v921, %v918
        %v967 = vpack.c.b16 %v922, %v919
        %v968 = vpack.c.b16 %v923, %v920
        %v969 = vpack.c.b16 %v927, %v924
        %v970 = vpack.c.b16 %v928, %v925
        %v971 = vpack.c.b16 %v929, %v926
        %v972 = vpack.c.b16 %v933, %v930
        %v973 = vpack.c.b16 %v934, %v931
        %v974 = vpack.c.b16 %v935, %v932
        %v975 = vpack.c.b16 %v939, %v936
        %v976 = vpack.c.b16 %v940, %v937
        %v977 = vpack.c.b16 %v941, %v938
        %v978 = vpack.c.b16 %v945, %v942
        %v979 = vpack.c.b16 %v946, %v943
        %v980 = vpack.c.b16 %v947, %v944
        %v981 = vpack.c.b16 %v951, %v948
        %v982 = vpack.c.b16 %v952, %v949
        %v983 = vpack.c.b16 %v953, %v950
        %v984 = vpack.c.b16 %v957, %v954
        %v985 = vpack.c.b16 %v958, %v955
        %v986 = vpack.c.b16 %v959, %v956
        %v987 = vpack.c.b16 %v963, %v960
        %v988 = vpack.c.b16 %v964, %v961
        %v989 = vpack.c.b16 %v965, %v962
        %1014 = vmatpush.bf16.msra.mxu0 %v987
        %1015 = vmatpush.bf16.msra.mxu0 %v984
        %1016 = vmatpush.bf16.msra.mxu0 %v981
        %1017 = vmatpush.bf16.msra.mxu0 %v978
        %1018 = vmatpush.bf16.msra.mxu0 %v975
        %1019 = vmatpush.bf16.msra.mxu0 %v972
        %1020 = vmatpush.bf16.msra.mxu0 %v969
        %1021 = vmatpush.bf16.msra.mxu0 %v966
        %1022 = vmatmul.bf16.gmra.mxu0 %v844
        %v1023 = vpop.f32.mrf.mxu0
        %v1024 = vadd.f32 %v880, %v1023
        %v1025 = vpop.f32.mrf.mxu0
        %1026 = vdwg.mxu0
        %1027 = vmatpush.bf16.msra.mxu0 %v988
        %1028 = vmatpush.bf16.msra.mxu0 %v985
        %1029 = vmatpush.bf16.msra.mxu0 %v982
        %1030 = vmatpush.bf16.msra.mxu0 %v979
        %1031 = vmatpush.bf16.msra.mxu0 %v976
        %1032 = vmatpush.bf16.msra.mxu0 %v973
        %1033 = vmatpush.bf16.msra.mxu0 %v970
        %1034 = vmatpush.bf16.msra.mxu0 %v967
        %1035 = vmatmul.bf16.gmra.mxu0 %v844
        %v1036 = vpop.f32.mrf.mxu0
        %v1037 = vadd.f32 %v881, %v1036
        %v1038 = vpop.f32.mrf.mxu0
        %1039 = vdwg.mxu0
        %1040 = vmatpush.bf16.msra.mxu0 %v989
        %1041 = vmatpush.bf16.msra.mxu0 %v986
        %1042 = vmatpush.bf16.msra.mxu0 %v983
        %1043 = vmatpush.bf16.msra.mxu0 %v980
        %1044 = vmatpush.bf16.msra.mxu0 %v977
        %1045 = vmatpush.bf16.msra.mxu0 %v974
        %1046 = vmatpush.bf16.msra.mxu0 %v971
        %1047 = vmatpush.bf16.msra.mxu0 %v968
        %1048 = vmatmul.bf16.gmra.mxu0 %v844
        %v1049 = vpop.f32.mrf.mxu0
        %v1050 = vadd.f32 %v882, %v1049
        %v1051 = vpop.f32.mrf.mxu0
        %1052 = vdwg.mxu0
        %v1053 = vmul.f32 %v1024, 0.125
        %v1055 = vunpack.c.h.b16 %v844
        %v1056 = vpack.c.b16 %v1055, %v1055
        %1058 = vmatpush.bf16.msra.mxu0 %v987
        %1059 = vmatpush.bf16.msra.mxu0 %v984
        %1060 = vmatpush.bf16.msra.mxu0 %v981
        %1061 = vmatpush.bf16.msra.mxu0 %v978
        %1062 = vmatpush.bf16.msra.mxu0 %v975
        %1063 = vmatpush.bf16.msra.mxu0 %v972
        %1064 = vmatpush.bf16.msra.mxu0 %v969
        %1065 = vmatpush.bf16.msra.mxu0 %v966
        %1066 = vmatmul.bf16.gmra.mxu0 %v1056
        %v1067 = vpop.f32.mrf.mxu0
        %v1068 = vadd.f32 %v880, %v1067
        %v1069 = vpop.f32.mrf.mxu0
        %1070 = vdwg.mxu0
        %1071 = vmatpush.bf16.msra.mxu0 %v988
        %1072 = vmatpush.bf16.msra.mxu0 %v985
        %1073 = vmatpush.bf16.msra.mxu0 %v982
        %1074 = vmatpush.bf16.msra.mxu0 %v979
        %1075 = vmatpush.bf16.msra.mxu0 %v976
        %1076 = vmatpush.bf16.msra.mxu0 %v973
        %1077 = vmatpush.bf16.msra.mxu0 %v970
        %1078 = vmatpush.bf16.msra.mxu0 %v967
        %1079 = vmatmul.bf16.gmra.mxu0 %v1056
        %v1080 = vpop.f32.mrf.mxu0
        %v1081 = vadd.f32 %v881, %v1080
        %v1082 = vpop.f32.mrf.mxu0
        %1083 = vdwg.mxu0
        %1084 = vmatpush.bf16.msra.mxu0 %v989
        %1085 = vmatpush.bf16.msra.mxu0 %v986
        %1086 = vmatpush.bf16.msra.mxu0 %v983
        %1087 = vmatpush.bf16.msra.mxu0 %v980
        %1088 = vmatpush.bf16.msra.mxu0 %v977
        %1089 = vmatpush.bf16.msra.mxu0 %v974
        %1090 = vmatpush.bf16.msra.mxu0 %v971
        %1091 = vmatpush.bf16.msra.mxu0 %v968
        %1092 = vmatmul.bf16.gmra.mxu0 %v1056
        %v1093 = vpop.f32.mrf.mxu0
        %v1094 = vadd.f32 %v882, %v1093
        %v1095 = vpop.f32.mrf.mxu0
        %1096 = vdwg.mxu0
        %v1097 = vmul.f32 %v1068, 0.125
        %1098 = vmatpush.bf16.msra.mxu0 %v987
        %1099 = vmatpush.bf16.msra.mxu0 %v984
        %1100 = vmatpush.bf16.msra.mxu0 %v981
        %1101 = vmatpush.bf16.msra.mxu0 %v978
        %1102 = vmatpush.bf16.msra.mxu0 %v975
        %1103 = vmatpush.bf16.msra.mxu0 %v972
        %1104 = vmatpush.bf16.msra.mxu0 %v969
        %1105 = vmatpush.bf16.msra.mxu0 %v966
        %1106 = vmatmul.bf16.gmra.mxu0 %v845
        %v1107 = vpop.f32.mrf.mxu0
        %v1108 = vadd.f32 %v880, %v1107
        %v1109 = vpop.f32.mrf.mxu0
        %1110 = vdwg.mxu0
        %1111 = vmatpush.bf16.msra.mxu0 %v988
        %1112 = vmatpush.bf16.msra.mxu0 %v985
        %1113 = vmatpush.bf16.msra.mxu0 %v982
        %1114 = vmatpush.bf16.msra.mxu0 %v979
        %1115 = vmatpush.bf16.msra.mxu0 %v976
        %1116 = vmatpush.bf16.msra.mxu0 %v973
        %1117 = vmatpush.bf16.msra.mxu0 %v970
        %1118 = vmatpush.bf16.msra.mxu0 %v967
        %1119 = vmatmul.bf16.gmra.mxu0 %v845
        %v1120 = vpop.f32.mrf.mxu0
        %v1121 = vadd.f32 %v881, %v1120
        %v1122 = vpop.f32.mrf.mxu0
        %1123 = vdwg.mxu0
        %1124 = vmatpush.bf16.msra.mxu0 %v989
        %1125 = vmatpush.bf16.msra.mxu0 %v986
        %1126 = vmatpush.bf16.msra.mxu0 %v983
        %1127 = vmatpush.bf16.msra.mxu0 %v980
        %1128 = vmatpush.bf16.msra.mxu0 %v977
        %1129 = vmatpush.bf16.msra.mxu0 %v974
        %1130 = vmatpush.bf16.msra.mxu0 %v971
        %1131 = vmatpush.bf16.msra.mxu0 %v968
        %1132 = vmatmul.bf16.gmra.mxu0 %v845
        %v1133 = vpop.f32.mrf.mxu0
        %v1134 = vadd.f32 %v882, %v1133
        %v1135 = vpop.f32.mrf.mxu0
        %1136 = vdwg.mxu0
        %v1137 = vmul.f32 %v1108, 0.125
        %v1138 = vmul.f32 %v1053, %v1037
        %v1139 = vmul.f32 %v1138, %v838
        %1140 = vadd.xlane.f32.xlu0 %v1139
        %v1141 = vpop.xlane.xlu0 %1140
        %v1142 = vmul.f32 %v1138, %v843
        %1143 = vadd.xlane.f32.xlu0 %v1142
        %v1144 = vpop.xlane.xlu0 %1143
        %v1145 = vmul.f32 %v1053, %v1081
        %v1146 = vmul.f32 %v1145, %v838
        %1147 = vadd.xlane.f32.xlu0 %v1146
        %v1148 = vpop.xlane.xlu0 %1147
        %v1149 = vmul.f32 %v1145, %v843
        %1150 = vadd.xlane.f32.xlu0 %v1149
        %v1151 = vpop.xlane.xlu0 %1150
        %v1152 = vmul.f32 %v1053, %v1121
        %v1153 = vmul.f32 %v1152, %v838
        %1154 = vadd.xlane.f32.xlu0 %v1153
        %v1155 = vpop.xlane.xlu0 %1154
        %v1156 = vmul.f32 %v1152, %v843
        %1157 = vadd.xlane.f32.xlu0 %v1156
        %v1158 = vpop.xlane.xlu0 %1157
        %v1159 = vmax.f32 %v1141, %v1148
        %v1160 = vmax.f32 %v1159, %v1155
        %v1161 = vsub.f32 %v1141, %v1160
        %v1162 = vmul.f32 %v1161, 1.442695
        %v1163 = vpow.pop %v1162
        %v1164 = vsub.f32 %v1148, %v1160
        %v1165 = vmul.f32 %v1164, 1.442695
        %v1166 = vpow.pop %v1165
        %v1167 = vsub.f32 %v1155, %v1160
        %v1168 = vmul.f32 %v1167, 1.442695
        %v1169 = vpow.pop %v1168
        %v1170 = vadd.f32 %v1163, %v1166
        %v1171 = vadd.f32 %v1170, %v1169
        %v1172 = vrcp.pop %v1171
        %v1173 = vmul.f32 %v1163, %v1172
        %v1174 = vmul.f32 %v1173, 0.33333334
        %v1175 = vadd.f32 %v1174, 0.0
        %v1176 = vmul.f32 %v1166, %v1172
        %v1177 = vmul.f32 %v1176, 0.33333334
        %v1178 = vadd.f32 %v1177, 0.0
        %v1179 = vmul.f32 %v1169, %v1172
        %v1180 = vmul.f32 %v1179, 0.33333334
        %v1181 = vadd.f32 %v1180, 0.0
        %v1182 = vmax.f32 %v1144, %v1151
        %v1183 = vmax.f32 %v1182, %v1158
        %v1184 = vsub.f32 %v1144, %v1183
        %v1185 = vmul.f32 %v1184, 1.442695
        %v1186 = vpow.pop %v1185
        %v1187 = vsub.f32 %v1151, %v1183
        %v1188 = vmul.f32 %v1187, 1.442695
        %v1189 = vpow.pop %v1188
        %v1190 = vsub.f32 %v1158, %v1183
        %v1191 = vmul.f32 %v1190, 1.442695
        %v1192 = vpow.pop %v1191
        %v1193 = vadd.f32 %v1186, %v1189
        %v1194 = vadd.f32 %v1193, %v1192
        %v1195 = vrcp.pop %v1194
        %v1196 = vmul.f32 %v1186, %v1195
        %v1197 = vmul.f32 %v1196, 0.33333334
        %v1198 = vadd.f32 %v1197, 0.0
        %v1199 = vmul.f32 %v1189, %v1195
        %v1200 = vmul.f32 %v1199, 0.33333334
        %v1201 = vadd.f32 %v1200, 0.0
        %v1202 = vmul.f32 %v1192, %v1195
        %v1203 = vmul.f32 %v1202, 0.33333334
        %v1204 = vadd.f32 %v1203, 0.0
        %v1205 = vmul.f32 %v1173, %v838
        %v1206 = vmul.f32 %v1196, %v843
        %v1207 = vadd.f32 %v1205, %v1206
        %v1208 = vmul.f32 %v1207, %v1050
        %v1209 = vadd.f32 %v1208, 0.0
        %v1210 = vmul.f32 %v1176, %v838
        %v1211 = vmul.f32 %v1199, %v843
        %v1212 = vadd.f32 %v1210, %v1211
        %v1213 = vmul.f32 %v1212, %v1094
        %v1214 = vadd.f32 %v1209, %v1213
        %v1215 = vmul.f32 %v1179, %v838
        %v1216 = vmul.f32 %v1202, %v843
        %v1217 = vadd.f32 %v1215, %v1216
        %v1218 = vmul.f32 %v1217, %v1134
        %v1219 = vadd.f32 %v1214, %v1218
        %v1220 = vpack.c.bf16 %v1219, %v1219
        %v1221 = vld [vmem:[#allocation9] sm:$0xf]
        %v1222 = vld [vmem:[#allocation9 + $0x4] sm:$0xf]
        %v1223 = vld [vmem:[#allocation9 + $0x8] sm:$0xf]
        %v1224 = vld [vmem:[#allocation9 + $0xc] sm:$0xf]
        %v1225 = vld [vmem:[#allocation9 + $0x10] sm:$0xf]
        %v1226 = vld [vmem:[#allocation9 + $0x14] sm:$0xf]
        %v1227 = vld [vmem:[#allocation9 + $0x18] sm:$0xf]
        %v1228 = vld [vmem:[#allocation9 + $0x1c] sm:$0xf]
        %v1229 = vld [vmem:[#allocation9 + $0x20] sm:$0xf]
        %v1230 = vld [vmem:[#allocation9 + $0x24] sm:$0xf]
        %v1231 = vld [vmem:[#allocation9 + $0x28] sm:$0xf]
        %v1232 = vld [vmem:[#allocation9 + $0x2c] sm:$0xf]
        %v1233 = vld [vmem:[#allocation9 + $0x30] sm:$0xf]
        %v1234 = vld [vmem:[#allocation9 + $0x34] sm:$0xf]
        %v1235 = vld [vmem:[#allocation9 + $0x38] sm:$0xf]
        %v1236 = vld [vmem:[#allocation9 + $0x3c] sm:$0xf]
        %v1237 = vld [vmem:[#allocation11] sm:$0x1]
        %v1239 = vperm.slane %v1237, 0
        %v1257 = vunpack.c.l.b16 %v1221
        %v1258 = vunpack.c.l.b16 %v1222
        %v1259 = vunpack.c.l.b16 %v1223
        %v1260 = vunpack.c.l.b16 %v1224
        %v1261 = vunpack.c.l.b16 %v1225
        %v1262 = vunpack.c.l.b16 %v1226
        %v1263 = vunpack.c.l.b16 %v1227
        %v1264 = vunpack.c.l.b16 %v1228
        %v1265 = vunpack.c.l.b16 %v1229
        %v1266 = vunpack.c.l.b16 %v1230
        %v1267 = vunpack.c.l.b16 %v1231
        %v1268 = vunpack.c.l.b16 %v1232
        %v1269 = vunpack.c.l.b16 %v1233
        %v1270 = vunpack.c.l.b16 %v1234
        %v1271 = vunpack.c.l.b16 %v1235
        %v1272 = vunpack.c.l.b16 %v1236
        %v1273 = vpack.c.b16 %v1258, %v1257
        %v1274 = vpack.c.b16 %v1260, %v1259
        %v1275 = vpack.c.b16 %v1262, %v1261
        %v1276 = vpack.c.b16 %v1264, %v1263
        %v1277 = vpack.c.b16 %v1266, %v1265
        %v1278 = vpack.c.b16 %v1268, %v1267
        %v1279 = vpack.c.b16 %v1270, %v1269
        %v1280 = vpack.c.b16 %v1272, %v1271
        %1289 = vmatpush.bf16.msra.mxu0 %v1280
        %1290 = vmatpush.bf16.msra.mxu0 %v1279
        %1291 = vmatpush.bf16.msra.mxu0 %v1278
        %1292 = vmatpush.bf16.msra.mxu0 %v1277
        %1293 = vmatpush.bf16.msra.mxu0 %v1276
        %1294 = vmatpush.bf16.msra.mxu0 %v1275
        %1295 = vmatpush.bf16.msra.mxu0 %v1274
        %1296 = vmatpush.bf16.msra.mxu0 %v1273
        %1297 = vmatmul.bf16.gmra.mxu0 %v1220
        %v1298 = vpop.f32.mrf.mxu0
        %v1299 = vadd.f32 %v1239, %v1298
        %v1300 = vpop.f32.mrf.mxu0
        %1301 = vdwg.mxu0
        %v1302 = vld [vmem:[#allocation12] sm:$0x1]
        %v1303 = vld [vmem:[#allocation14] sm:$0x1]
        %1304 = vadd.xlane.f32.xlu0 %v1299
        %v1305 = vpop.xlane.xlu0 %1304
        %v1306 = vrcp.pop 128.0
        %v1307 = vmul.f32 128.0, %v1306
        %v1308 = vsub.f32 1.0, %v1307
        %v1309 = vmul.f32 %v1306, %v1308
        %v1310 = vadd.f32 %v1306, %v1309
        %vm1311 = vweird.f32 %v1306
        %v1312 = vsel %vm1311, %v1306, %v1310
        %v1313 = vmul.f32 %v1305, %v1312
        %v1314 = vsub.f32 %v1299, %v1313
        %v1315 = vmul.f32 %v1314, %v1314
        %1316 = vadd.xlane.f32.xlu0 %v1315
        %v1317 = vpop.xlane.xlu0 %1316
        %v1318 = vmul.f32 %v1317, %v1312
        %v1319 = vadd.f32 %v1318, 1e-05
        %v1320 = vrsqrt.pop %v1319
        %v1321 = vmul.f32 %v1320, %v1319
        %v1322 = vmul.f32 %v1321, %v1320
        %v1323 = vmul.f32 0.5, %v1322
        %v1324 = vsub.f32 1.5, %v1323
        %v1325 = vmul.f32 %v1320, %v1324
        %vm1326 = vweird.f32 %v1319
        %vm1327 = vweird.f32 %v1320
        %vm1328 = vmor %vm1326, %vm1327
        %v1329 = vsel %vm1328, %v1320, %v1325
        %v1330 = vmul.f32 %v1314, %v1329
        %v1332 = vperm.slane %v1302, 0
        %v1334 = vmul.f32 %v1330, %v1332
        %v1336 = vperm.slane %v1303, 0
        %v1338 = vadd.f32 %v1334, %v1336
        %v1339 = vmul.f32 %v1338, 0.33333334
        %v1340 = vadd.f32 %v1339, 0.0
        %v1341 = vmul.f32 %v1097, %v1037
        %v1342 = vmul.f32 %v1341, %v838
        %1343 = vadd.xlane.f32.xlu0 %v1342
        %v1344 = vpop.xlane.xlu0 %1343
        %v1345 = vmul.f32 %v1341, %v843
        %1346 = vadd.xlane.f32.xlu0 %v1345
        %v1347 = vpop.xlane.xlu0 %1346
        %v1348 = vmul.f32 %v1097, %v1081
        %v1349 = vmul.f32 %v1348, %v838
        %1350 = vadd.xlane.f32.xlu0 %v1349
        %v1351 = vpop.xlane.xlu0 %1350
        %v1352 = vmul.f32 %v1348, %v843
        %1353 = vadd.xlane.f32.xlu0 %v1352
        %v1354 = vpop.xlane.xlu0 %1353
        %v1355 = vmul.f32 %v1097, %v1121
        %v1356 = vmul.f32 %v1355, %v838
        %1357 = vadd.xlane.f32.xlu0 %v1356
        %v1358 = vpop.xlane.xlu0 %1357
        %v1359 = vmul.f32 %v1355, %v843
        %1360 = vadd.xlane.f32.xlu0 %v1359
        %v1361 = vpop.xlane.xlu0 %1360
        %v1362 = vmax.f32 %v1344, %v1351
        %v1363 = vmax.f32 %v1362, %v1358
        %v1364 = vsub.f32 %v1344, %v1363
        %v1365 = vmul.f32 %v1364, 1.442695
        %v1366 = vpow.pop %v1365
        %v1367 = vsub.f32 %v1351, %v1363
        %v1368 = vmul.f32 %v1367, 1.442695
        %v1369 = vpow.pop %v1368
        %v1370 = vsub.f32 %v1358, %v1363
        %v1371 = vmul.f32 %v1370, 1.442695
        %v1372 = vpow.pop %v1371
        %v1373 = vadd.f32 %v1366, %v1369
        %v1374 = vadd.f32 %v1373, %v1372
        %v1375 = vrcp.pop %v1374
        %v1376 = vmul.f32 %v1366, %v1375
        %v1377 = vmul.f32 %v1376, 0.33333334
        %v1378 = vadd.f32 %v1175, %v1377
        %v1379 = vmul.f32 %v1369, %v1375
        %v1380 = vmul.f32 %v1379, 0.33333334
        %v1381 = vadd.f32 %v1178, %v1380
        %v1382 = vmul.f32 %v1372, %v1375
        %v1383 = vmul.f32 %v1382, 0.33333334
        %v1384 = vadd.f32 %v1181, %v1383
        %v1385 = vmax.f32 %v1347, %v1354
        %v1386 = vmax.f32 %v1385, %v1361
        %v1387 = vsub.f32 %v1347, %v1386
        %v1388 = vmul.f32 %v1387, 1.442695
        %v1389 = vpow.pop %v1388
        %v1390 = vsub.f32 %v1354, %v1386
        %v1391 = vmul.f32 %v1390, 1.442695
        %v1392 = vpow.pop %v1391
        %v1393 = vsub.f32 %v1361, %v1386
        %v1394 = vmul.f32 %v1393, 1.442695
        %v1395 = vpow.pop %v1394
        %v1396 = vadd.f32 %v1389, %v1392
        %v1397 = vadd.f32 %v1396, %v1395
        %v1398 = vrcp.pop %v1397
        %v1399 = vmul.f32 %v1389, %v1398
        %v1400 = vmul.f32 %v1399, 0.33333334
        %v1401 = vadd.f32 %v1198, %v1400
        %v1402 = vmul.f32 %v1392, %v1398
        %v1403 = vmul.f32 %v1402, 0.33333334
        %v1404 = vadd.f32 %v1201, %v1403
        %v1405 = vmul.f32 %v1395, %v1398
        %v1406 = vmul.f32 %v1405, 0.33333334
        %v1407 = vadd.f32 %v1204, %v1406
        %v1408 = vmul.f32 %v1376, %v838
        %v1409 = vmul.f32 %v1399, %v843
        %v1410 = vadd.f32 %v1408, %v1409
        %v1411 = vmul.f32 %v1410, %v1050
        %v1412 = vadd.f32 %v1411, 0.0
        %v1413 = vmul.f32 %v1379, %v838
        %v1414 = vmul.f32 %v1402, %v843
        %v1415 = vadd.f32 %v1413, %v1414
        %v1416 = vmul.f32 %v1415, %v1094
        %v1417 = vadd.f32 %v1412, %v1416
        %v1418 = vmul.f32 %v1382, %v838
        %v1419 = vmul.f32 %v1405, %v843
        %v1420 = vadd.f32 %v1418, %v1419
        %v1421 = vmul.f32 %v1420, %v1134
        %v1422 = vadd.f32 %v1417, %v1421
        %v1423 = vpack.c.bf16 %v1422, %v1422
        %1424 = vmatpush.bf16.msra.mxu0 %v1280
        %1425 = vmatpush.bf16.msra.mxu0 %v1279
        %1426 = vmatpush.bf16.msra.mxu0 %v1278
        %1427 = vmatpush.bf16.msra.mxu0 %v1277
        %1428 = vmatpush.bf16.msra.mxu0 %v1276
        %1429 = vmatpush.bf16.msra.mxu0 %v1275
        %1430 = vmatpush.bf16.msra.mxu0 %v1274
        %1431 = vmatpush.bf16.msra.mxu0 %v1273
        %1432 = vmatmul.bf16.gmra.mxu0 %v1423
        %v1433 = vpop.f32.mrf.mxu0
        %v1434 = vadd.f32 %v1239, %v1433
        %v1435 = vpop.f32.mrf.mxu0
        %1436 = vdwg.mxu0
        %1437 = vadd.xlane.f32.xlu0 %v1434
        %v1438 = vpop.xlane.xlu0 %1437
        %v1439 = vmul.f32 %v1438, %v1312
        %v1440 = vsub.f32 %v1434, %v1439
        %v1441 = vmul.f32 %v1440, %v1440
        %1442 = vadd.xlane.f32.xlu0 %v1441
        %v1443 = vpop.xlane.xlu0 %1442
        %v1444 = vmul.f32 %v1443, %v1312
        %v1445 = vadd.f32 %v1444, 1e-05
        %v1446 = vrsqrt.pop %v1445
        %v1447 = vmul.f32 %v1446, %v1445
        %v1448 = vmul.f32 %v1447, %v1446
        %v1449 = vmul.f32 0.5, %v1448
        %v1450 = vsub.f32 1.5, %v1449
        %v1451 = vmul.f32 %v1446, %v1450
        %vm1452 = vweird.f32 %v1445
        %vm1453 = vweird.f32 %v1446
        %vm1454 = vmor %vm1452, %vm1453
        %v1455 = vsel %vm1454, %v1446, %v1451
        %v1456 = vmul.f32 %v1440, %v1455
        %v1457 = vmul.f32 %v1456, %v1332
        %v1458 = vadd.f32 %v1457, %v1336
        %v1459 = vmul.f32 %v1458, 0.33333334
        %v1460 = vadd.f32 %v1340, %v1459
        %v1461 = vmul.f32 %v1137, %v1037
        %v1462 = vmul.f32 %v1461, %v838
        %1463 = vadd.xlane.f32.xlu0 %v1462
        %v1464 = vpop.xlane.xlu0 %1463
        %v1465 = vmul.f32 %v1461, %v843
        %1466 = vadd.xlane.f32.xlu0 %v1465
        %v1467 = vpop.xlane.xlu0 %1466
        %v1468 = vmul.f32 %v1137, %v1081
        %v1469 = vmul.f32 %v1468, %v838
        %1470 = vadd.xlane.f32.xlu0 %v1469
        %v1471 = vpop.xlane.xlu0 %1470
        %v1472 = vmul.f32 %v1468, %v843
        %1473 = vadd.xlane.f32.xlu0 %v1472
        %v1474 = vpop.xlane.xlu0 %1473
        %v1475 = vmul.f32 %v1137, %v1121
        %v1476 = vmul.f32 %v1475, %v838
        %1477 = vadd.xlane.f32.xlu0 %v1476
        %v1478 = vpop.xlane.xlu0 %1477
        %v1479 = vmul.f32 %v1475, %v843
        %1480 = vadd.xlane.f32.xlu0 %v1479
        %v1481 = vpop.xlane.xlu0 %1480
        %v1482 = vmax.f32 %v1464, %v1471
        %v1483 = vmax.f32 %v1482, %v1478
        %v1484 = vsub.f32 %v1464, %v1483
        %v1485 = vmul.f32 %v1484, 1.442695
        %v1486 = vpow.pop %v1485
        %v1487 = vsub.f32 %v1471, %v1483
        %v1488 = vmul.f32 %v1487, 1.442695
        %v1489 = vpow.pop %v1488
        %v1490 = vsub.f32 %v1478, %v1483
        %v1491 = vmul.f32 %v1490, 1.442695
        %v1492 = vpow.pop %v1491
        %v1493 = vadd.f32 %v1486, %v1489
        %v1494 = vadd.f32 %v1493, %v1492
        %v1495 = vrcp.pop %v1494
        %v1496 = vmul.f32 %v1486, %v1495
        %v1497 = vmul.f32 %v1496, 0.33333334
        %v1498 = vadd.f32 %v1378, %v1497
        %v1499 = vmul.f32 %v1489, %v1495
        %v1500 = vmul.f32 %v1499, 0.33333334
        %v1501 = vadd.f32 %v1381, %v1500
        %v1502 = vmul.f32 %v1492, %v1495
        %v1503 = vmul.f32 %v1502, 0.33333334
        %v1504 = vadd.f32 %v1384, %v1503
        %v1505 = vmax.f32 %v1467, %v1474
        %v1506 = vmax.f32 %v1505, %v1481
        %v1507 = vsub.f32 %v1467, %v1506
        %v1508 = vmul.f32 %v1507, 1.442695
        %v1509 = vpow.pop %v1508
        %v1510 = vsub.f32 %v1474, %v1506
        %v1511 = vmul.f32 %v1510, 1.442695
        %v1512 = vpow.pop %v1511
        %v1513 = vsub.f32 %v1481, %v1506
        %v1514 = vmul.f32 %v1513, 1.442695
        %v1515 = vpow.pop %v1514
        %v1516 = vadd.f32 %v1509, %v1512
        %v1517 = vadd.f32 %v1516, %v1515
        %v1518 = vrcp.pop %v1517
        %v1519 = vmul.f32 %v1509, %v1518
        %v1520 = vmul.f32 %v1519, 0.33333334
        %v1521 = vadd.f32 %v1401, %v1520
        %v1522 = vmul.f32 %v1512, %v1518
        %v1523 = vmul.f32 %v1522, 0.33333334
        %v1524 = vadd.f32 %v1404, %v1523
        %v1525 = vmul.f32 %v1515, %v1518
        %v1526 = vmul.f32 %v1525, 0.33333334
        %v1527 = vadd.f32 %v1407, %v1526
        %v1528 = vmul.f32 %v1496, %v838
        %v1529 = vmul.f32 %v1519, %v843
        %v1530 = vadd.f32 %v1528, %v1529
        %v1531 = vmul.f32 %v1530, %v1050
        %v1532 = vadd.f32 %v1531, 0.0
        %v1533 = vmul.f32 %v1499, %v838
        %v1534 = vmul.f32 %v1522, %v843
        %v1535 = vadd.f32 %v1533, %v1534
        %v1536 = vmul.f32 %v1535, %v1094
        %v1537 = vadd.f32 %v1532, %v1536
        %v1538 = vmul.f32 %v1502, %v838
        %v1539 = vmul.f32 %v1525, %v843
        %v1540 = vadd.f32 %v1538, %v1539
        %v1541 = vmul.f32 %v1540, %v1134
        %v1542 = vadd.f32 %v1537, %v1541
        %v1543 = vpack.c.bf16 %v1542, %v1542
        %1544 = vmatpush.bf16.msra.mxu0 %v1280
        %1545 = vmatpush.bf16.msra.mxu0 %v1279
        %1546 = vmatpush.bf16.msra.mxu0 %v1278
        %1547 = vmatpush.bf16.msra.mxu0 %v1277
        %1548 = vmatpush.bf16.msra.mxu0 %v1276
        %1549 = vmatpush.bf16.msra.mxu0 %v1275
        %1550 = vmatpush.bf16.msra.mxu0 %v1274
        %1551 = vmatpush.bf16.msra.mxu0 %v1273
        %1552 = vmatmul.bf16.gmra.mxu0 %v1543
        %v1553 = vpop.f32.mrf.mxu0
        %v1554 = vadd.f32 %v1239, %v1553
        %v1555 = vpop.f32.mrf.mxu0
        %1556 = vdwg.mxu0
        %1557 = vadd.xlane.f32.xlu0 %v1554
        %v1558 = vpop.xlane.xlu0 %1557
        %v1559 = vmul.f32 %v1558, %v1312
        %v1560 = vsub.f32 %v1554, %v1559
        %v1561 = vmul.f32 %v1560, %v1560
        %1562 = vadd.xlane.f32.xlu0 %v1561
        %v1563 = vpop.xlane.xlu0 %1562
        %v1564 = vmul.f32 %v1563, %v1312
        %v1565 = vadd.f32 %v1564, 1e-05
        %v1566 = vrsqrt.pop %v1565
        %v1567 = vmul.f32 %v1566, %v1565
        %v1568 = vmul.f32 %v1567, %v1566
        %v1569 = vmul.f32 0.5, %v1568
        %v1570 = vsub.f32 1.5, %v1569
        %v1571 = vmul.f32 %v1566, %v1570
        %vm1572 = vweird.f32 %v1565
        %vm1573 = vweird.f32 %v1566
        %vm1574 = vmor %vm1572, %vm1573
        %v1575 = vsel %vm1574, %v1566, %v1571
        %v1576 = vmul.f32 %v1560, %v1575
        %v1577 = vmul.f32 %v1576, %v1332
        %v1578 = vadd.f32 %v1577, %v1336
        %v1579 = vmul.f32 %v1578, 0.33333334
        %v1580 = vadd.f32 %v1460, %v1579
        %v1581 = vpack.c.bf16 %v1580, %v1580
        %v1582 = vld [vmem:[#allocation15] sm:$0xff]
        %v1583 = vld [vmem:[#allocation15 + $0x8] sm:$0xff]
        %v1584 = vld [vmem:[#allocation15 + $0x10] sm:$0xff]
        %v1585 = vld [vmem:[#allocation15 + $0x18] sm:$0xff]
        %v1586 = vld [vmem:[#allocation15 + $0x20] sm:$0xff]
        %v1587 = vld [vmem:[#allocation15 + $0x28] sm:$0xff]
        %v1588 = vld [vmem:[#allocation15 + $0x30] sm:$0xff]
        %v1589 = vld [vmem:[#allocation15 + $0x38] sm:$0xff]
        %v1590 = vld [vmem:[#allocation15 + $0x40] sm:$0xff]
        %v1591 = vld [vmem:[#allocation15 + $0x48] sm:$0xff]
        %v1592 = vld [vmem:[#allocation15 + $0x50] sm:$0xff]
        %v1593 = vld [vmem:[#allocation15 + $0x58] sm:$0xff]
        %v1594 = vld [vmem:[#allocation15 + $0x60] sm:$0xff]
        %v1595 = vld [vmem:[#allocation15 + $0x68] sm:$0xff]
        %v1596 = vld [vmem:[#allocation15 + $0x70] sm:$0xff]
        %v1597 = vld [vmem:[#allocation15 + $0x78] sm:$0xff]
        %v1598 = vld [vmem:[#allocation15 + $0x80] sm:$0xff]
        %v1599 = vld [vmem:[#allocation15 + $0x88] sm:$0xff]
        %v1600 = vld [vmem:[#allocation15 + $0x90] sm:$0xff]
        %v1601 = vld [vmem:[#allocation15 + $0x98] sm:$0xff]
        %v1602 = vld [vmem:[#allocation15 + $0xa0] sm:$0xff]
        %v1603 = vld [vmem:[#allocation15 + $0xa8] sm:$0xff]
        %v1604 = vld [vmem:[#allocation15 + $0xb0] sm:$0xff]
        %v1605 = vld [vmem:[#allocation15 + $0xb8] sm:$0xff]
        %v1606 = vld [vmem:[#allocation15 + $0xc0] sm:$0xff]
        %v1607 = vld [vmem:[#allocation15 + $0xc8] sm:$0xff]
        %v1608 = vld [vmem:[#allocation15 + $0xd0] sm:$0xff]
        %v1609 = vld [vmem:[#allocation15 + $0xd8] sm:$0xff]
        %v1610 = vld [vmem:[#allocation15 + $0xe0] sm:$0xff]
        %v1611 = vld [vmem:[#allocation15 + $0xe8] sm:$0xff]
        %v1612 = vld [vmem:[#allocation15 + $0xf0] sm:$0xff]
        %v1613 = vld [vmem:[#allocation15 + $0xf8] sm:$0xff]
        %v1614 = vld [vmem:[%s8] sm:$0xf]
        %v1616 = vperm.slane %v1614, 0
        %v1617 = vperm.slane %v1614, 1
        %v1618 = vperm.slane %v1614, 2
        %v1619 = vperm.slane %v1614, 3
        %v1656 = vunpack.c.l.b16 %v1582
        %v1657 = vunpack.c.h.b16 %v1582
        %v1658 = vunpack.c.l.b16 %v1583
        %v1659 = vunpack.c.h.b16 %v1583
        %v1660 = vunpack.c.l.b16 %v1584
        %v1661 = vunpack.c.h.b16 %v1584
        %v1662 = vunpack.c.l.b16 %v1585
        %v1663 = vunpack.c.h.b16 %v1585
        %v1664 = vunpack.c.l.b16 %v1586
        %v1665 = vunpack.c.h.b16 %v1586
        %v1666 = vunpack.c.l.b16 %v1587
        %v1667 = vunpack.c.h.b16 %v1587
        %v1668 = vunpack.c.l.b16 %v1588
        %v1669 = vunpack.c.h.b16 %v1588
        %v1670 = vunpack.c.l.b16 %v1589
        %v1671 = vunpack.c.h.b16 %v1589
        %v1672 = vunpack.c.l.b16 %v1590
        %v1673 = vunpack.c.h.b16 %v1590
        %v1674 = vunpack.c.l.b16 %v1591
        %v1675 = vunpack.c.h.b16 %v1591
        %v1676 = vunpack.c.l.b16 %v1592
        %v1677 = vunpack.c.h.b16 %v1592
        %v1678 = vunpack.c.l.b16 %v1593
        %v1679 = vunpack.c.h.b16 %v1593
        %v1680 = vunpack.c.l.b16 %v1594
        %v1681 = vunpack.c.h.b16 %v1594
        %v1682 = vunpack.c.l.b16 %v1595
        %v1683 = vunpack.c.h.b16 %v1595
        %v1684 = vunpack.c.l.b16 %v1596
        %v1685 = vunpack.c.h.b16 %v1596
        %v1686 = vunpack.c.l.b16 %v1597
        %v1687 = vunpack.c.h.b16 %v1597
        %v1688 = vunpack.c.l.b16 %v1598
        %v1689 = vunpack.c.h.b16 %v1598
        %v1690 = vunpack.c.l.b16 %v1599
        %v1691 = vunpack.c.h.b16 %v1599
        %v1692 = vunpack.c.l.b16 %v1600
        %v1693 = vunpack.c.h.b16 %v1600
        %v1694 = vunpack.c.l.b16 %v1601
        %v1695 = vunpack.c.h.b16 %v1601
        %v1696 = vunpack.c.l.b16 %v1602
        %v1697 = vunpack.c.h.b16 %v1602
        %v1698 = vunpack.c.l.b16 %v1603
        %v1699 = vunpack.c.h.b16 %v1603
        %v1700 = vunpack.c.l.b16 %v1604
        %v1701 = vunpack.c.h.b16 %v1604
        %v1702 = vunpack.c.l.b16 %v1605
        %v1703 = vunpack.c.h.b16 %v1605
        %v1704 = vunpack.c.l.b16 %v1606
        %v1705 = vunpack.c.h.b16 %v1606
        %v1706 = vunpack.c.l.b16 %v1607
        %v1707 = vunpack.c.h.b16 %v1607
        %v1708 = vunpack.c.l.b16 %v1608
        %v1709 = vunpack.c.h.b16 %v1608
        %v1710 = vunpack.c.l.b16 %v1609
        %v1711 = vunpack.c.h.b16 %v1609
        %v1712 = vunpack.c.l.b16 %v1610
        %v1713 = vunpack.c.h.b16 %v1610
        %v1714 = vunpack.c.l.b16 %v1611
        %v1715 = vunpack.c.h.b16 %v1611
        %v1716 = vunpack.c.l.b16 %v1612
        %v1717 = vunpack.c.h.b16 %v1612
        %v1718 = vunpack.c.l.b16 %v1613
        %v1719 = vunpack.c.h.b16 %v1613
        %v1720 = vpack.c.b16 %v1660, %v1656
        %v1721 = vpack.c.b16 %v1661, %v1657
        %v1722 = vpack.c.b16 %v1662, %v1658
        %v1723 = vpack.c.b16 %v1663, %v1659
        %v1724 = vpack.c.b16 %v1668, %v1664
        %v1725 = vpack.c.b16 %v1669, %v1665
        %v1726 = vpack.c.b16 %v1670, %v1666
        %v1727 = vpack.c.b16 %v1671, %v1667
        %v1728 = vpack.c.b16 %v1676, %v1672
        %v1729 = vpack.c.b16 %v1677, %v1673
        %v1730 = vpack.c.b16 %v1678, %v1674
        %v1731 = vpack.c.b16 %v1679, %v1675
        %v1732 = vpack.c.b16 %v1684, %v1680
        %v1733 = vpack.c.b16 %v1685, %v1681
        %v1734 = vpack.c.b16 %v1686, %v1682
        %v1735 = vpack.c.b16 %v1687, %v1683
        %v1736 = vpack.c.b16 %v1692, %v1688
        %v1737 = vpack.c.b16 %v1693, %v1689
        %v1738 = vpack.c.b16 %v1694, %v1690
        %v1739 = vpack.c.b16 %v1695, %v1691
        %v1740 = vpack.c.b16 %v1700, %v1696
        %v1741 = vpack.c.b16 %v1701, %v1697
        %v1742 = vpack.c.b16 %v1702, %v1698
        %v1743 = vpack.c.b16 %v1703, %v1699
        %v1744 = vpack.c.b16 %v1708, %v1704
        %v1745 = vpack.c.b16 %v1709, %v1705
        %v1746 = vpack.c.b16 %v1710, %v1706
        %v1747 = vpack.c.b16 %v1711, %v1707
        %v1748 = vpack.c.b16 %v1716, %v1712
        %v1749 = vpack.c.b16 %v1717, %v1713
        %v1750 = vpack.c.b16 %v1718, %v1714
        %v1751 = vpack.c.b16 %v1719, %v1715
        %1784 = vmatpush.bf16.msra.mxu0 %v1748
        %1785 = vmatpush.bf16.msra.mxu0 %v1744
        %1786 = vmatpush.bf16.msra.mxu0 %v1740
        %1787 = vmatpush.bf16.msra.mxu0 %v1736
        %1788 = vmatpush.bf16.msra.mxu0 %v1732
        %1789 = vmatpush.bf16.msra.mxu0 %v1728
        %1790 = vmatpush.bf16.msra.mxu0 %v1724
        %1791 = vmatpush.bf16.msra.mxu0 %v1720
        %1792 = vmatmul.bf16.gmra.mxu0 %v1581
        %v1793 = vpop.f32.mrf.mxu0
        %v1794 = vadd.f32 %v1616, %v1793
        %v1795 = vpop.f32.mrf.mxu0
        %1796 = vdwg.mxu0
        %1797 = vmatpush.bf16.msra.mxu0 %v1749
        %1798 = vmatpush.bf16.msra.mxu0 %v1745
        %1799 = vmatpush.bf16.msra.mxu0 %v1741
        %1800 = vmatpush.bf16.msra.mxu0 %v1737
        %1801 = vmatpush.bf16.msra.mxu0 %v1733
        %1802 = vmatpush.bf16.msra.mxu0 %v1729
        %1803 = vmatpush.bf16.msra.mxu0 %v1725
        %1804 = vmatpush.bf16.msra.mxu0 %v1721
        %1805 = vmatmul.bf16.gmra.mxu0 %v1581
        %v1806 = vpop.f32.mrf.mxu0
        %v1807 = vadd.f32 %v1617, %v1806
        %v1808 = vpop.f32.mrf.mxu0
        %1809 = vdwg.mxu0
        %1810 = vmatpush.bf16.msra.mxu0 %v1750
        %1811 = vmatpush.bf16.msra.mxu0 %v1746
        %1812 = vmatpush.bf16.msra.mxu0 %v1742
        %1813 = vmatpush.bf16.msra.mxu0 %v1738
        %1814 = vmatpush.bf16.msra.mxu0 %v1734
        %1815 = vmatpush.bf16.msra.mxu0 %v1730
        %1816 = vmatpush.bf16.msra.mxu0 %v1726
        %1817 = vmatpush.bf16.msra.mxu0 %v1722
        %1818 = vmatmul.bf16.gmra.mxu0 %v1581
        %v1819 = vpop.f32.mrf.mxu0
        %v1820 = vadd.f32 %v1618, %v1819
        %v1821 = vpop.f32.mrf.mxu0
        %1822 = vdwg.mxu0
        %1823 = vmatpush.bf16.msra.mxu0 %v1751
        %1824 = vmatpush.bf16.msra.mxu0 %v1747
        %1825 = vmatpush.bf16.msra.mxu0 %v1743
        %1826 = vmatpush.bf16.msra.mxu0 %v1739
        %1827 = vmatpush.bf16.msra.mxu0 %v1735
        %1828 = vmatpush.bf16.msra.mxu0 %v1731
        %1829 = vmatpush.bf16.msra.mxu0 %v1727
        %1830 = vmatpush.bf16.msra.mxu0 %v1723
        %1831 = vmatmul.bf16.gmra.mxu0 %v1581
        %v1832 = vpop.f32.mrf.mxu0
        %v1833 = vadd.f32 %v1619, %v1832
        %v1834 = vpop.f32.mrf.mxu0
        %1835 = vdwg.mxu0
        %v1836 = vld [vmem:[%s9] sm:$0xf]
        %v1837 = vld [vmem:[#allocation17] sm:$0xf]
        %v1838 = vadd.f32 %v1794, %v1807
        %v1839 = vadd.f32 %v1838, %v1820
        %v1840 = vadd.f32 %v1839, %v1833
        %1841 = vadd.xlane.f32.xlu0 %v1840
        %v1842 = vpop.xlane.xlu0 %1841
        %v1843 = vrcp.pop 512.0
        %v1844 = vmul.f32 512.0, %v1843
        %v1845 = vsub.f32 1.0, %v1844
        %v1846 = vmul.f32 %v1843, %v1845
        %v1847 = vadd.f32 %v1843, %v1846
        %vm1848 = vweird.f32 %v1843
        %v1849 = vsel %vm1848, %v1843, %v1847
        %v1850 = vmul.f32 %v1842, %v1849
        %v1851 = vsub.f32 %v1794, %v1850
        %v1852 = vsub.f32 %v1807, %v1850
        %v1853 = vsub.f32 %v1820, %v1850
        %v1854 = vsub.f32 %v1833, %v1850
        %v1855 = vmul.f32 %v1851, %v1851
        %v1856 = vmul.f32 %v1852, %v1852
        %v1857 = vmul.f32 %v1853, %v1853
        %v1858 = vmul.f32 %v1854, %v1854
        %v1859 = vadd.f32 %v1855, %v1856
        %v1860 = vadd.f32 %v1859, %v1857
        %v1861 = vadd.f32 %v1860, %v1858
        %1862 = vadd.xlane.f32.xlu0 %v1861
        %v1863 = vpop.xlane.xlu0 %1862
        %v1864 = vmul.f32 %v1863, %v1849
        %v1865 = vadd.f32 %v1864, 1e-05
        %v1866 = vrsqrt.pop %v1865
        %v1867 = vmul.f32 %v1866, %v1865
        %v1868 = vmul.f32 %v1867, %v1866
        %v1869 = vmul.f32 0.5, %v1868
        %v1870 = vsub.f32 1.5, %v1869
        %v1871 = vmul.f32 %v1866, %v1870
        %vm1872 = vweird.f32 %v1865
        %vm1873 = vweird.f32 %v1866
        %vm1874 = vmor %vm1872, %vm1873
        %v1875 = vsel %vm1874, %v1866, %v1871
        %v1876 = vmul.f32 %v1851, %v1875
        %v1877 = vmul.f32 %v1852, %v1875
        %v1878 = vmul.f32 %v1853, %v1875
        %v1879 = vmul.f32 %v1854, %v1875
        %v1881 = vperm.slane %v1836, 0
        %v1882 = vperm.slane %v1836, 1
        %v1883 = vperm.slane %v1836, 2
        %v1884 = vperm.slane %v1836, 3
        %v1889 = vmul.f32 %v1876, %v1881
        %v1890 = vmul.f32 %v1877, %v1882
        %v1891 = vmul.f32 %v1878, %v1883
        %v1892 = vmul.f32 %v1879, %v1884
        %v1894 = vperm.slane %v1837, 0
        %v1895 = vperm.slane %v1837, 1
        %v1896 = vperm.slane %v1837, 2
        %v1897 = vperm.slane %v1837, 3
        %v1902 = vadd.f32 %v1889, %v1894
        %v1903 = vadd.f32 %v1890, %v1895
        %v1904 = vadd.f32 %v1891, %v1896
        %v1905 = vadd.f32 %v1892, %v1897
        %v1906 = vmax.f32 %v1902, 0.0
        %v1907 = vmax.f32 %v1903, 0.0
        %v1908 = vmax.f32 %v1904, 0.0
        %v1909 = vmax.f32 %v1905, 0.0
        %v1910 = vpack.c.bf16 %v1906, %v1906
        %v1911 = vpack.c.bf16 %v1907, %v1907
        %v1912 = vpack.c.bf16 %v1908, %v1908
        %v1913 = vpack.c.bf16 %v1909, %v1909
        %v1914 = vld [vmem:[#allocation18] sm:$0xff]
        %v1915 = vld [vmem:[#allocation18 + $0x8] sm:$0xff]
        %v1916 = vld [vmem:[#allocation18 + $0x10] sm:$0xff]
        %v1917 = vld [vmem:[#allocation18 + $0x18] sm:$0xff]
        %v1918 = vld [vmem:[#allocation18 + $0x20] sm:$0xff]
        %v1919 = vld [vmem:[#allocation18 + $0x28] sm:$0xff]
        %v1920 = vld [vmem:[#allocation18 + $0x30] sm:$0xff]
        %v1921 = vld [vmem:[#allocation18 + $0x38] sm:$0xff]
        %v1922 = vld [vmem:[#allocation18 + $0x40] sm:$0xff]
        %v1923 = vld [vmem:[#allocation18 + $0x48] sm:$0xff]
        %v1924 = vld [vmem:[#allocation18 + $0x50] sm:$0xff]
        %v1925 = vld [vmem:[#allocation18 + $0x58] sm:$0xff]
        %v1926 = vld [vmem:[#allocation18 + $0x60] sm:$0xff]
        %v1927 = vld [vmem:[#allocation18 + $0x68] sm:$0xff]
        %v1928 = vld [vmem:[#allocation18 + $0x70] sm:$0xff]
        %v1929 = vld [vmem:[#allocation18 + $0x78] sm:$0xff]
        %v1930 = vld [vmem:[#allocation18 + $0x80] sm:$0xff]
        %v1931 = vld [vmem:[#allocation18 + $0x88] sm:$0xff]
        %v1932 = vld [vmem:[#allocation18 + $0x90] sm:$0xff]
        %v1933 = vld [vmem:[#allocation18 + $0x98] sm:$0xff]
        %v1934 = vld [vmem:[#allocation18 + $0xa0] sm:$0xff]
        %v1935 = vld [vmem:[#allocation18 + $0xa8] sm:$0xff]
        %v1936 = vld [vmem:[#allocation18 + $0xb0] sm:$0xff]
        %v1937 = vld [vmem:[#allocation18 + $0xb8] sm:$0xff]
        %v1938 = vld [vmem:[#allocation18 + $0xc0] sm:$0xff]
        %v1939 = vld [vmem:[#allocation18 + $0xc8] sm:$0xff]
        %v1940 = vld [vmem:[#allocation18 + $0xd0] sm:$0xff]
        %v1941 = vld [vmem:[#allocation18 + $0xd8] sm:$0xff]
        %v1942 = vld [vmem:[#allocation18 + $0xe0] sm:$0xff]
        %v1943 = vld [vmem:[#allocation18 + $0xe8] sm:$0xff]
        %v1944 = vld [vmem:[#allocation18 + $0xf0] sm:$0xff]
        %v1945 = vld [vmem:[#allocation18 + $0xf8] sm:$0xff]
        %v1946 = vld [vmem:[#allocation18 + $0x100] sm:$0xff]
        %v1947 = vld [vmem:[#allocation18 + $0x108] sm:$0xff]
        %v1948 = vld [vmem:[#allocation18 + $0x110] sm:$0xff]
        %v1949 = vld [vmem:[#allocation18 + $0x118] sm:$0xff]
        %v1950 = vld [vmem:[#allocation18 + $0x120] sm:$0xff]
        %v1951 = vld [vmem:[#allocation18 + $0x128] sm:$0xff]
        %v1952 = vld [vmem:[#allocation18 + $0x130] sm:$0xff]
        %v1953 = vld [vmem:[#allocation18 + $0x138] sm:$0xff]
        %v1954 = vld [vmem:[#allocation18 + $0x140] sm:$0xff]
        %v1955 = vld [vmem:[#allocation18 + $0x148] sm:$0xff]
        %v1956 = vld [vmem:[#allocation18 + $0x150] sm:$0xff]
        %v1957 = vld [vmem:[#allocation18 + $0x158] sm:$0xff]
        %v1958 = vld [vmem:[#allocation18 + $0x160] sm:$0xff]
        %v1959 = vld [vmem:[#allocation18 + $0x168] sm:$0xff]
        %v1960 = vld [vmem:[#allocation18 + $0x170] sm:$0xff]
        %v1961 = vld [vmem:[#allocation18 + $0x178] sm:$0xff]
        %v1962 = vld [vmem:[#allocation18 + $0x180] sm:$0xff]
        %v1963 = vld [vmem:[#allocation18 + $0x188] sm:$0xff]
        %v1964 = vld [vmem:[#allocation18 + $0x190] sm:$0xff]
        %v1965 = vld [vmem:[#allocation18 + $0x198] sm:$0xff]
        %v1966 = vld [vmem:[#allocation18 + $0x1a0] sm:$0xff]
        %v1967 = vld [vmem:[#allocation18 + $0x1a8] sm:$0xff]
        %v1968 = vld [vmem:[#allocation18 + $0x1b0] sm:$0xff]
        %v1969 = vld [vmem:[#allocation18 + $0x1b8] sm:$0xff]
        %v1970 = vld [vmem:[#allocation18 + $0x1c0] sm:$0xff]
        %v1971 = vld [vmem:[#allocation18 + $0x1c8] sm:$0xff]
        %v1972 = vld [vmem:[#allocation18 + $0x1d0] sm:$0xff]
        %v1973 = vld [vmem:[#allocation18 + $0x1d8] sm:$0xff]
        %v1974 = vld [vmem:[#allocation18 + $0x1e0] sm:$0xff]
        %v1975 = vld [vmem:[#allocation18 + $0x1e8] sm:$0xff]
        %v1976 = vld [vmem:[#allocation18 + $0x1f0] sm:$0xff]
        %v1977 = vld [vmem:[#allocation18 + $0x1f8] sm:$0xff]
        %v1978 = vld [vmem:[%s12] sm:$0x3]
        %v1980 = vperm.slane %v1978, 0
        %v1981 = vperm.slane %v1978, 1
        %v2048 = vunpack.c.l.b16 %v1914
        %v2049 = vunpack.c.h.b16 %v1914
        %v2050 = vunpack.c.l.b16 %v1915
        %v2051 = vunpack.c.h.b16 %v1915
        %v2052 = vunpack.c.l.b16 %v1916
        %v2053 = vunpack.c.h.b16 %v1916
        %v2054 = vunpack.c.l.b16 %v1917
        %v2055 = vunpack.c.h.b16 %v1917
        %v2056 = vunpack.c.l.b16 %v1918
        %v2057 = vunpack.c.h.b16 %v1918
        %v2058 = vunpack.c.l.b16 %v1919
        %v2059 = vunpack.c.h.b16 %v1919
        %v2060 = vunpack.c.l.b16 %v1920
        %v2061 = vunpack.c.h.b16 %v1920
        %v2062 = vunpack.c.l.b16 %v1921
        %v2063 = vunpack.c.h.b16 %v1921
        %v2064 = vunpack.c.l.b16 %v1922
        %v2065 = vunpack.c.h.b16 %v1922
        %v2066 = vunpack.c.l.b16 %v1923
        %v2067 = vunpack.c.h.b16 %v1923
        %v2068 = vunpack.c.l.b16 %v1924
        %v2069 = vunpack.c.h.b16 %v1924
        %v2070 = vunpack.c.l.b16 %v1925
        %v2071 = vunpack.c.h.b16 %v1925
        %v2072 = vunpack.c.l.b16 %v1926
        %v2073 = vunpack.c.h.b16 %v1926
        %v2074 = vunpack.c.l.b16 %v1927
        %v2075 = vunpack.c.h.b16 %v1927
        %v2076 = vunpack.c.l.b16 %v1928
        %v2077 = vunpack.c.h.b16 %v1928
        %v2078 = vunpack.c.l.b16 %v1929
        %v2079 = vunpack.c.h.b16 %v1929
        %v2080 = vunpack.c.l.b16 %v1930
        %v2081 = vunpack.c.h.b16 %v1930
        %v2082 = vunpack.c.l.b16 %v1931
        %v2083 = vunpack.c.h.b16 %v1931
        %v2084 = vunpack.c.l.b16 %v1932
        %v2085 = vunpack.c.h.b16 %v1932
        %v2086 = vunpack.c.l.b16 %v1933
        %v2087 = vunpack.c.h.b16 %v1933
        %v2088 = vunpack.c.l.b16 %v1934
        %v2089 = vunpack.c.h.b16 %v1934
        %v2090 = vunpack.c.l.b16 %v1935
        %v2091 = vunpack.c.h.b16 %v1935
        %v2092 = vunpack.c.l.b16 %v1936
        %v2093 = vunpack.c.h.b16 %v1936
        %v2094 = vunpack.c.l.b16 %v1937
        %v2095 = vunpack.c.h.b16 %v1937
        %v2096 = vunpack.c.l.b16 %v1938
        %v2097 = vunpack.c.h.b16 %v1938
        %v2098 = vunpack.c.l.b16 %v1939
        %v2099 = vunpack.c.h.b16 %v1939
        %v2100 = vunpack.c.l.b16 %v1940
        %v2101 = vunpack.c.h.b16 %v1940
        %v2102 = vunpack.c.l.b16 %v1941
        %v2103 = vunpack.c.h.b16 %v1941
        %v2104 = vunpack.c.l.b16 %v1942
        %v2105 = vunpack.c.h.b16 %v1942
        %v2106 = vunpack.c.l.b16 %v1943
        %v2107 = vunpack.c.h.b16 %v1943
        %v2108 = vunpack.c.l.b16 %v1944
        %v2109 = vunpack.c.h.b16 %v1944
        %v2110 = vunpack.c.l.b16 %v1945
        %v2111 = vunpack.c.h.b16 %v1945
        %v2112 = vunpack.c.l.b16 %v1946
        %v2113 = vunpack.c.h.b16 %v1946
        %v2114 = vunpack.c.l.b16 %v1947
        %v2115 = vunpack.c.h.b16 %v1947
        %v2116 = vunpack.c.l.b16 %v1948
        %v2117 = vunpack.c.h.b16 %v1948
        %v2118 = vunpack.c.l.b16 %v1949
        %v2119 = vunpack.c.h.b16 %v1949
        %v2120 = vunpack.c.l.b16 %v1950
        %v2121 = vunpack.c.h.b16 %v1950
        %v2122 = vunpack.c.l.b16 %v1951
        %v2123 = vunpack.c.h.b16 %v1951
        %v2124 = vunpack.c.l.b16 %v1952
        %v2125 = vunpack.c.h.b16 %v1952
        %v2126 = vunpack.c.l.b16 %v1953
        %v2127 = vunpack.c.h.b16 %v1953
        %v2128 = vunpack.c.l.b16 %v1954
        %v2129 = vunpack.c.h.b16 %v1954
        %v2130 = vunpack.c.l.b16 %v1955
        %v2131 = vunpack.c.h.b16 %v1955
        %v2132 = vunpack.c.l.b16 %v1956
        %v2133 = vunpack.c.h.b16 %v1956
        %v2134 = vunpack.c.l.b16 %v1957
        %v2135 = vunpack.c.h.b16 %v1957
        %v2136 = vunpack.c.l.b16 %v1958
        %v2137 = vunpack.c.h.b16 %v1958
        %v2138 = vunpack.c.l.b16 %v1959
        %v2139 = vunpack.c.h.b16 %v1959
        %v2140 = vunpack.c.l.b16 %v1960
        %v2141 = vunpack.c.h.b16 %v1960
        %v2142 = vunpack.c.l.b16 %v1961
        %v2143 = vunpack.c.h.b16 %v1961
        %v2144 = vunpack.c.l.b16 %v1962
        %v2145 = vunpack.c.h.b16 %v1962
        %v2146 = vunpack.c.l.b16 %v1963
        %v2147 = vunpack.c.h.b16 %v1963
        %v2148 = vunpack.c.l.b16 %v1964
        %v2149 = vunpack.c.h.b16 %v1964
        %v2150 = vunpack.c.l.b16 %v1965
        %v2151 = vunpack.c.h.b16 %v1965
        %v2152 = vunpack.c.l.b16 %v1966
        %v2153 = vunpack.c.h.b16 %v1966
        %v2154 = vunpack.c.l.b16 %v1967
        %v2155 = vunpack.c.h.b16 %v1967
        %v2156 = vunpack.c.l.b16 %v1968
        %v2157 = vunpack.c.h.b16 %v1968
        %v2158 = vunpack.c.l.b16 %v1969
        %v2159 = vunpack.c.h.b16 %v1969
        %v2160 = vunpack.c.l.b16 %v1970
        %v2161 = vunpack.c.h.b16 %v1970
        %v2162 = vunpack.c.l.b16 %v1971
        %v2163 = vunpack.c.h.b16 %v1971
        %v2164 = vunpack.c.l.b16 %v1972
        %v2165 = vunpack.c.h.b16 %v1972
        %v2166 = vunpack.c.l.b16 %v1973
        %v2167 = vunpack.c.h.b16 %v1973
        %v2168 = vunpack.c.l.b16 %v1974
        %v2169 = vunpack.c.h.b16 %v1974
        %v2170 = vunpack.c.l.b16 %v1975
        %v2171 = vunpack.c.h.b16 %v1975
        %v2172 = vunpack.c.l.b16 %v1976
        %v2173 = vunpack.c.h.b16 %v1976
        %v2174 = vunpack.c.l.b16 %v1977
        %v2175 = vunpack.c.h.b16 %v1977
        %v2176 = vpack.c.b16 %v2050, %v2048
        %v2177 = vpack.c.b16 %v2051, %v2049
        %v2178 = vpack.c.b16 %v2054, %v2052
        %v2179 = vpack.c.b16 %v2055, %v2053
        %v2180 = vpack.c.b16 %v2058, %v2056
        %v2181 = vpack.c.b16 %v2059, %v2057
        %v2182 = vpack.c.b16 %v2062, %v2060
        %v2183 = vpack.c.b16 %v2063, %v2061
        %v2184 = vpack.c.b16 %v2066, %v2064
        %v2185 = vpack.c.b16 %v2067, %v2065
        %v2186 = vpack.c.b16 %v2070, %v2068
        %v2187 = vpack.c.b16 %v2071, %v2069
        %v2188 = vpack.c.b16 %v2074, %v2072
        %v2189 = vpack.c.b16 %v2075, %v2073
        %v2190 = vpack.c.b16 %v2078, %v2076
        %v2191 = vpack.c.b16 %v2079, %v2077
        %v2192 = vpack.c.b16 %v2082, %v2080
        %v2193 = vpack.c.b16 %v2083, %v2081
        %v2194 = vpack.c.b16 %v2086, %v2084
        %v2195 = vpack.c.b16 %v2087, %v2085
        %v2196 = vpack.c.b16 %v2090, %v2088
        %v2197 = vpack.c.b16 %v2091, %v2089
        %v2198 = vpack.c.b16 %v2094, %v2092
        %v2199 = vpack.c.b16 %v2095, %v2093
        %v2200 = vpack.c.b16 %v2098, %v2096
        %v2201 = vpack.c.b16 %v2099, %v2097
        %v2202 = vpack.c.b16 %v2102, %v2100
        %v2203 = vpack.c.b16 %v2103, %v2101
        %v2204 = vpack.c.b16 %v2106, %v2104
        %v2205 = vpack.c.b16 %v2107, %v2105
        %v2206 = vpack.c.b16 %v2110, %v2108
        %v2207 = vpack.c.b16 %v2111, %v2109
        %v2208 = vpack.c.b16 %v2114, %v2112
        %v2209 = vpack.c.b16 %v2115, %v2113
        %v2210 = vpack.c.b16 %v2118, %v2116
        %v2211 = vpack.c.b16 %v2119, %v2117
        %v2212 = vpack.c.b16 %v2122, %v2120
        %v2213 = vpack.c.b16 %v2123, %v2121
        %v2214 = vpack.c.b16 %v2126, %v2124
        %v2215 = vpack.c.b16 %v2127, %v2125
        %v2216 = vpack.c.b16 %v2130, %v2128
        %v2217 = vpack.c.b16 %v2131, %v2129
        %v2218 = vpack.c.b16 %v2134, %v2132
        %v2219 = vpack.c.b16 %v2135, %v2133
        %v2220 = vpack.c.b16 %v2138, %v2136
        %v2221 = vpack.c.b16 %v2139, %v2137
        %v2222 = vpack.c.b16 %v2142, %v2140
        %v2223 = vpack.c.b16 %v2143, %v2141
        %v2224 = vpack.c.b16 %v2146, %v2144
        %v2225 = vpack.c.b16 %v2147, %v2145
        %v2226 = vpack.c.b16 %v2150, %v2148
        %v2227 = vpack.c.b16 %v2151, %v2149
        %v2228 = vpack.c.b16 %v2154, %v2152
        %v2229 = vpack.c.b16 %v2155, %v2153
        %v2230 = vpack.c.b16 %v2158, %v2156
        %v2231 = vpack.c.b16 %v2159, %v2157
        %v2232 = vpack.c.b16 %v2162, %v2160
        %v2233 = vpack.c.b16 %v2163, %v2161
        %v2234 = vpack.c.b16 %v2166, %v2164
        %v2235 = vpack.c.b16 %v2167, %v2165
        %v2236 = vpack.c.b16 %v2170, %v2168
        %v2237 = vpack.c.b16 %v2171, %v2169
        %v2238 = vpack.c.b16 %v2174, %v2172
        %v2239 = vpack.c.b16 %v2175, %v2173
        %2304 = vmatpush.bf16.msra.mxu0 %v2190
        %2305 = vmatpush.bf16.msra.mxu0 %v2188
        %2306 = vmatpush.bf16.msra.mxu0 %v2186
        %2307 = vmatpush.bf16.msra.mxu0 %v2184
        %2308 = vmatpush.bf16.msra.mxu0 %v2182
        %2309 = vmatpush.bf16.msra.mxu0 %v2180
        %2310 = vmatpush.bf16.msra.mxu0 %v2178
        %2311 = vmatpush.bf16.msra.mxu0 %v2176
        %2312 = vmatmul.bf16.gmra.mxu0 %v1910
        %v2313 = vpop.f32.mrf.mxu0
        %v2314 = vadd.f32 %v1980, %v2313
        %v2315 = vpop.f32.mrf.mxu0
        %2316 = vdwg.mxu0
        %2317 = vmatpush.bf16.msra.mxu0 %v2206
        %2318 = vmatpush.bf16.msra.mxu0 %v2204
        %2319 = vmatpush.bf16.msra.mxu0 %v2202
        %2320 = vmatpush.bf16.msra.mxu0 %v2200
        %2321 = vmatpush.bf16.msra.mxu0 %v2198
        %2322 = vmatpush.bf16.msra.mxu0 %v2196
        %2323 = vmatpush.bf16.msra.mxu0 %v2194
        %2324 = vmatpush.bf16.msra.mxu0 %v2192
        %2325 = vmatmul.bf16.gmra.mxu0 %v1911
        %v2326 = vpop.f32.mrf.mxu0
        %v2327 = vadd.f32 %v2314, %v2326
        %v2328 = vpop.f32.mrf.mxu0
        %2329 = vdwg.mxu0
        %2330 = vmatpush.bf16.msra.mxu0 %v2222
        %2331 = vmatpush.bf16.msra.mxu0 %v2220
        %2332 = vmatpush.bf16.msra.mxu0 %v2218
        %2333 = vmatpush.bf16.msra.mxu0 %v2216
        %2334 = vmatpush.bf16.msra.mxu0 %v2214
        %2335 = vmatpush.bf16.msra.mxu0 %v2212
        %2336 = vmatpush.bf16.msra.mxu0 %v2210
        %2337 = vmatpush.bf16.msra.mxu0 %v2208
        %2338 = vmatmul.bf16.gmra.mxu0 %v1912
        %v2339 = vpop.f32.mrf.mxu0
        %v2340 = vadd.f32 %v2327, %v2339
        %v2341 = vpop.f32.mrf.mxu0
        %2342 = vdwg.mxu0
        %2343 = vmatpush.bf16.msra.mxu0 %v2238
        %2344 = vmatpush.bf16.msra.mxu0 %v2236
        %2345 = vmatpush.bf16.msra.mxu0 %v2234
        %2346 = vmatpush.bf16.msra.mxu0 %v2232
        %2347 = vmatpush.bf16.msra.mxu0 %v2230
        %2348 = vmatpush.bf16.msra.mxu0 %v2228
        %2349 = vmatpush.bf16.msra.mxu0 %v2226
        %2350 = vmatpush.bf16.msra.mxu0 %v2224
        %2351 = vmatmul.bf16.gmra.mxu0 %v1913
        %v2352 = vpop.f32.mrf.mxu0
        %v2353 = vadd.f32 %v2340, %v2352
        %v2354 = vpop.f32.mrf.mxu0
        %2355 = vdwg.mxu0
        %2356 = vmatpush.bf16.msra.mxu0 %v2191
        %2357 = vmatpush.bf16.msra.mxu0 %v2189
        %2358 = vmatpush.bf16.msra.mxu0 %v2187
        %2359 = vmatpush.bf16.msra.mxu0 %v2185
        %2360 = vmatpush.bf16.msra.mxu0 %v2183
        %2361 = vmatpush.bf16.msra.mxu0 %v2181
        %2362 = vmatpush.bf16.msra.mxu0 %v2179
        %2363 = vmatpush.bf16.msra.mxu0 %v2177
        %2364 = vmatmul.bf16.gmra.mxu0 %v1910
        %v2365 = vpop.f32.mrf.mxu0
        %v2366 = vadd.f32 %v1981, %v2365
        %v2367 = vpop.f32.mrf.mxu0
        %2368 = vdwg.mxu0
        %2369 = vmatpush.bf16.msra.mxu0 %v2207
        %2370 = vmatpush.bf16.msra.mxu0 %v2205
        %2371 = vmatpush.bf16.msra.mxu0 %v2203
        %2372 = vmatpush.bf16.msra.mxu0 %v2201
        %2373 = vmatpush.bf16.msra.mxu0 %v2199
        %2374 = vmatpush.bf16.msra.mxu0 %v2197
        %2375 = vmatpush.bf16.msra.mxu0 %v2195
        %2376 = vmatpush.bf16.msra.mxu0 %v2193
        %2377 = vmatmul.bf16.gmra.mxu0 %v1911
        %v2378 = vpop.f32.mrf.mxu0
        %v2379 = vadd.f32 %v2366, %v2378
        %v2380 = vpop.f32.mrf.mxu0
        %2381 = vdwg.mxu0
        %2382 = vmatpush.bf16.msra.mxu0 %v2223
        %2383 = vmatpush.bf16.msra.mxu0 %v2221
        %2384 = vmatpush.bf16.msra.mxu0 %v2219
        %2385 = vmatpush.bf16.msra.mxu0 %v2217
        %2386 = vmatpush.bf16.msra.mxu0 %v2215
        %2387 = vmatpush.bf16.msra.mxu0 %v2213
        %2388 = vmatpush.bf16.msra.mxu0 %v2211
        %2389 = vmatpush.bf16.msra.mxu0 %v2209
        %2390 = vmatmul.bf16.gmra.mxu0 %v1912
        %v2391 = vpop.f32.mrf.mxu0
        %v2392 = vadd.f32 %v2379, %v2391
        %v2393 = vpop.f32.mrf.mxu0
        %2394 = vdwg.mxu0
        %2395 = vmatpush.bf16.msra.mxu0 %v2239
        %2396 = vmatpush.bf16.msra.mxu0 %v2237
        %2397 = vmatpush.bf16.msra.mxu0 %v2235
        %2398 = vmatpush.bf16.msra.mxu0 %v2233
        %2399 = vmatpush.bf16.msra.mxu0 %v2231
        %2400 = vmatpush.bf16.msra.mxu0 %v2229
        %2401 = vmatpush.bf16.msra.mxu0 %v2227
        %2402 = vmatpush.bf16.msra.mxu0 %v2225
        %2403 = vmatmul.bf16.gmra.mxu0 %v1913
        %v2404 = vpop.f32.mrf.mxu0
        %v2405 = vadd.f32 %v2392, %v2404
        %v2406 = vpop.f32.mrf.mxu0
        %2407 = vdwg.mxu0
        %v2408 = vld [vmem:[%s13] sm:$0x3]
        %v2409 = vld [vmem:[%s14] sm:$0x3]
        %v2410 = vadd.f32 %v2353, %v2405
        %2411 = vadd.xlane.f32.xlu0 %v2410
        %v2412 = vpop.xlane.xlu0 %2411
        %v2413 = vrcp.pop 256.0
        %v2414 = vmul.f32 256.0, %v2413
        %v2415 = vsub.f32 1.0, %v2414
        %v2416 = vmul.f32 %v2413, %v2415
        %v2417 = vadd.f32 %v2413, %v2416
        %vm2418 = vweird.f32 %v2413
        %v2419 = vsel %vm2418, %v2413, %v2417
        %v2420 = vmul.f32 %v2412, %v2419
        %v2421 = vsub.f32 %v2353, %v2420
        %v2422 = vsub.f32 %v2405, %v2420
        %v2423 = vmul.f32 %v2421, %v2421
        %v2424 = vmul.f32 %v2422, %v2422
        %v2425 = vadd.f32 %v2423, %v2424
        %2426 = vadd.xlane.f32.xlu0 %v2425
        %v2427 = vpop.xlane.xlu0 %2426
        %v2428 = vmul.f32 %v2427, %v2419
        %v2429 = vadd.f32 %v2428, 1e-05
        %v2430 = vrsqrt.pop %v2429
        %v2431 = vmul.f32 %v2430, %v2429
        %v2432 = vmul.f32 %v2431, %v2430
        %v2433 = vmul.f32 0.5, %v2432
        %v2434 = vsub.f32 1.5, %v2433
        %v2435 = vmul.f32 %v2430, %v2434
        %vm2436 = vweird.f32 %v2429
        %vm2437 = vweird.f32 %v2430
        %vm2438 = vmor %vm2436, %vm2437
        %v2439 = vsel %vm2438, %v2430, %v2435
        %v2440 = vmul.f32 %v2421, %v2439
        %v2441 = vmul.f32 %v2422, %v2439
        %v2443 = vperm.slane %v2408, 0
        %v2444 = vperm.slane %v2408, 1
        %v2447 = vmul.f32 %v2440, %v2443
        %v2448 = vmul.f32 %v2441, %v2444
        %v2450 = vperm.slane %v2409, 0
        %v2451 = vperm.slane %v2409, 1
        %v2454 = vadd.f32 %v2447, %v2450
        %v2455 = vadd.f32 %v2448, %v2451
        %v2456 = vmax.f32 %v2454, 0.0
        %v2457 = vmax.f32 %v2455, 0.0
        %v2458 = vpack.c.bf16 %v2456, %v2456
        %v2459 = vpack.c.bf16 %v2457, %v2457
        %v2460 = vld [vmem:[#allocation20] sm:$0xf]
        %v2461 = vld [vmem:[#allocation20 + $0x4] sm:$0xf]
        %v2462 = vld [vmem:[#allocation20 + $0x8] sm:$0xf]
        %v2463 = vld [vmem:[#allocation20 + $0xc] sm:$0xf]
        %v2464 = vld [vmem:[#allocation20 + $0x10] sm:$0xf]
        %v2465 = vld [vmem:[#allocation20 + $0x14] sm:$0xf]
        %v2466 = vld [vmem:[#allocation20 + $0x18] sm:$0xf]
        %v2467 = vld [vmem:[#allocation20 + $0x1c] sm:$0xf]
        %v2468 = vld [vmem:[#allocation20 + $0x20] sm:$0xf]
        %v2469 = vld [vmem:[#allocation20 + $0x24] sm:$0xf]
        %v2470 = vld [vmem:[#allocation20 + $0x28] sm:$0xf]
        %v2471 = vld [vmem:[#allocation20 + $0x2c] sm:$0xf]
        %v2472 = vld [vmem:[#allocation20 + $0x30] sm:$0xf]
        %v2473 = vld [vmem:[#allocation20 + $0x34] sm:$0xf]
        %v2474 = vld [vmem:[#allocation20 + $0x38] sm:$0xf]
        %v2475 = vld [vmem:[#allocation20 + $0x3c] sm:$0xf]
        %v2476 = vld [vmem:[#allocation20 + $0x40] sm:$0xf]
        %v2477 = vld [vmem:[#allocation20 + $0x44] sm:$0xf]
        %v2478 = vld [vmem:[#allocation20 + $0x48] sm:$0xf]
        %v2479 = vld [vmem:[#allocation20 + $0x4c] sm:$0xf]
        %v2480 = vld [vmem:[#allocation20 + $0x50] sm:$0xf]
        %v2481 = vld [vmem:[#allocation20 + $0x54] sm:$0xf]
        %v2482 = vld [vmem:[#allocation20 + $0x58] sm:$0xf]
        %v2483 = vld [vmem:[#allocation20 + $0x5c] sm:$0xf]
        %v2484 = vld [vmem:[#allocation20 + $0x60] sm:$0xf]
        %v2485 = vld [vmem:[#allocation20 + $0x64] sm:$0xf]
        %v2486 = vld [vmem:[#allocation20 + $0x68] sm:$0xf]
        %v2487 = vld [vmem:[#allocation20 + $0x6c] sm:$0xf]
        %v2488 = vld [vmem:[#allocation20 + $0x70] sm:$0xf]
        %v2489 = vld [vmem:[#allocation20 + $0x74] sm:$0xf]
        %v2490 = vld [vmem:[#allocation20 + $0x78] sm:$0xf]
        %v2491 = vld [vmem:[#allocation20 + $0x7c] sm:$0xf]
        %v2492 = vld [vmem:[%s16] sm:$0x1]
        %v2494 = vperm.slane %v2492, 0
        %v2528 = vunpack.c.l.b16 %v2460
        %v2529 = vunpack.c.l.b16 %v2461
        %v2530 = vunpack.c.l.b16 %v2462
        %v2531 = vunpack.c.l.b16 %v2463
        %v2532 = vunpack.c.l.b16 %v2464
        %v2533 = vunpack.c.l.b16 %v2465
        %v2534 = vunpack.c.l.b16 %v2466
        %v2535 = vunpack.c.l.b16 %v2467
        %v2536 = vunpack.c.l.b16 %v2468
        %v2537 = vunpack.c.l.b16 %v2469
        %v2538 = vunpack.c.l.b16 %v2470
        %v2539 = vunpack.c.l.b16 %v2471
        %v2540 = vunpack.c.l.b16 %v2472
        %v2541 = vunpack.c.l.b16 %v2473
        %v2542 = vunpack.c.l.b16 %v2474
        %v2543 = vunpack.c.l.b16 %v2475
        %v2544 = vunpack.c.l.b16 %v2476
        %v2545 = vunpack.c.l.b16 %v2477
        %v2546 = vunpack.c.l.b16 %v2478
        %v2547 = vunpack.c.l.b16 %v2479
        %v2548 = vunpack.c.l.b16 %v2480
        %v2549 = vunpack.c.l.b16 %v2481
        %v2550 = vunpack.c.l.b16 %v2482
        %v2551 = vunpack.c.l.b16 %v2483
        %v2552 = vunpack.c.l.b16 %v2484
        %v2553 = vunpack.c.l.b16 %v2485
        %v2554 = vunpack.c.l.b16 %v2486
        %v2555 = vunpack.c.l.b16 %v2487
        %v2556 = vunpack.c.l.b16 %v2488
        %v2557 = vunpack.c.l.b16 %v2489
        %v2558 = vunpack.c.l.b16 %v2490
        %v2559 = vunpack.c.l.b16 %v2491
        %v2560 = vpack.c.b16 %v2529, %v2528
        %v2561 = vpack.c.b16 %v2531, %v2530
        %v2562 = vpack.c.b16 %v2533, %v2532
        %v2563 = vpack.c.b16 %v2535, %v2534
        %v2564 = vpack.c.b16 %v2537, %v2536
        %v2565 = vpack.c.b16 %v2539, %v2538
        %v2566 = vpack.c.b16 %v2541, %v2540
        %v2567 = vpack.c.b16 %v2543, %v2542
        %v2568 = vpack.c.b16 %v2545, %v2544
        %v2569 = vpack.c.b16 %v2547, %v2546
        %v2570 = vpack.c.b16 %v2549, %v2548
        %v2571 = vpack.c.b16 %v2551, %v2550
        %v2572 = vpack.c.b16 %v2553, %v2552
        %v2573 = vpack.c.b16 %v2555, %v2554
        %v2574 = vpack.c.b16 %v2557, %v2556
        %v2575 = vpack.c.b16 %v2559, %v2558
        %2592 = vmatpush.bf16.msra.mxu0 %v2567
        %2593 = vmatpush.bf16.msra.mxu0 %v2566
        %2594 = vmatpush.bf16.msra.mxu0 %v2565
        %2595 = vmatpush.bf16.msra.mxu0 %v2564
        %2596 = vmatpush.bf16.msra.mxu0 %v2563
        %2597 = vmatpush.bf16.msra.mxu0 %v2562
        %2598 = vmatpush.bf16.msra.mxu0 %v2561
        %2599 = vmatpush.bf16.msra.mxu0 %v2560
        %2600 = vmatmul.bf16.gmra.mxu0 %v2458
        %v2601 = vpop.f32.mrf.mxu0
        %v2602 = vadd.f32 %v2494, %v2601
        %v2603 = vpop.f32.mrf.mxu0
        %2604 = vdwg.mxu0
        %2605 = vmatpush.bf16.msra.mxu0 %v2575
        %2606 = vmatpush.bf16.msra.mxu0 %v2574
        %2607 = vmatpush.bf16.msra.mxu0 %v2573
        %2608 = vmatpush.bf16.msra.mxu0 %v2572
        %2609 = vmatpush.bf16.msra.mxu0 %v2571
        %2610 = vmatpush.bf16.msra.mxu0 %v2570
        %2611 = vmatpush.bf16.msra.mxu0 %v2569
        %2612 = vmatpush.bf16.msra.mxu0 %v2568
        %2613 = vmatmul.bf16.gmra.mxu0 %v2459
        %v2614 = vpop.f32.mrf.mxu0
        %v2615 = vadd.f32 %v2602, %v2614
        %v2616 = vpop.f32.mrf.mxu0
        %2617 = vdwg.mxu0
        %v2618 = vld [vmem:[%s17] sm:$0x1]
        %v2619 = vld [vmem:[%s18] sm:$0x1]
        %2620 = vadd.xlane.f32.xlu0 %v2615
        %v2621 = vpop.xlane.xlu0 %2620
        %v2622 = vmul.f32 %v2621, %v1312
        %v2623 = vsub.f32 %v2615, %v2622
        %v2624 = vmul.f32 %v2623, %v2623
        %2625 = vadd.xlane.f32.xlu0 %v2624
        %v2626 = vpop.xlane.xlu0 %2625
        %v2627 = vmul.f32 %v2626, %v1312
        %v2628 = vadd.f32 %v2627, 1e-05
        %v2629 = vrsqrt.pop %v2628
        %v2630 = vmul.f32 %v2629, %v2628
        %v2631 = vmul.f32 %v2630, %v2629
        %v2632 = vmul.f32 0.5, %v2631
        %v2633 = vsub.f32 1.5, %v2632
        %v2634 = vmul.f32 %v2629, %v2633
        %vm2635 = vweird.f32 %v2628
        %vm2636 = vweird.f32 %v2629
        %vm2637 = vmor %vm2635, %vm2636
        %v2638 = vsel %vm2637, %v2629, %v2634
        %v2639 = vmul.f32 %v2623, %v2638
        %v2641 = vperm.slane %v2618, 0
        %v2643 = vmul.f32 %v2639, %v2641
        %v2645 = vperm.slane %v2619, 0
        %v2647 = vadd.f32 %v2643, %v2645
        %v2648 = vmax.f32 %v2647, 0.0
        %v2649 = vld [vmem:[%s19] sm:$0x1]
        %v2651 = vperm.slane %v2649, 0
        %v2653 = vmul.f32 %v2648, %v2651
        %2654 = vadd.xlane.f32.xlu0 %v2653
        %v2655 = vpop.xlane.xlu0 %2654
        %v2656 = vld [vmem:[#allocation2] sm:$0x1]
        %v2658 = vperm.slane %v2656, 0
        %v2660 = vadd.f32 %v2655, %v2658
        %v2661 = vmax.f32 %v2660, -1000.0
        %v2662 = vmin.f32 %v2661, 1000.0
        %vm2663 = vcmp.eq.s32.totalorder %v833, 0
        %v2664 = vsel %vm2663, 1, 0
        %v2665 = vcvt.s32.f32 %v2664
        %2667 = vset.pattern.permute.xlu0 0
        %2668 = vperm.xlu0 %2667, %v2662
        %v2669 = vpop.permute.xlu0 %2668
        %v2671 = vmul.f32 %v2669, %v2665
        %vm2672 = vcmp.eq.s32.totalorder %v833, 1
        %v2673 = vsel %vm2672, 1, 0
        %v2674 = vcvt.s32.f32 %v2673
        %v2675 = vmul.f32 %v1498, %v2674
        %v2676 = vadd.f32 %v2671, %v2675
        %vm2677 = vcmp.eq.s32.totalorder %v833, 2
        %v2678 = vsel %vm2677, 1, 0
        %v2679 = vcvt.s32.f32 %v2678
        %v2680 = vmul.f32 %v1501, %v2679
        %v2681 = vadd.f32 %v2676, %v2680
        %vm2682 = vcmp.eq.s32.totalorder %v833, 3
        %v2683 = vsel %vm2682, 1, 0
        %v2684 = vcvt.s32.f32 %v2683
        %v2685 = vmul.f32 %v1504, %v2684
        %v2686 = vadd.f32 %v2681, %v2685
        %vm2687 = vcmp.eq.s32.totalorder %v833, 4
        %v2688 = vsel %vm2687, 1, 0
        %v2689 = vcvt.s32.f32 %v2688
        %v2690 = vmul.f32 %v1521, %v2689
        %v2691 = vadd.f32 %v2686, %v2690
        %vm2692 = vcmp.eq.s32.totalorder %v833, 5
        %v2693 = vsel %vm2692, 1, 0
        %v2694 = vcvt.s32.f32 %v2693
        %v2695 = vmul.f32 %v1524, %v2694
        %v2696 = vadd.f32 %v2691, %v2695
        %vm2697 = vcmp.eq.s32.totalorder %v833, 6
        %v2698 = vsel %vm2697, 1, 0
        %v2699 = vcvt.s32.f32 %v2698
        %v2700 = vmul.f32 %v1527, %v2699
        %v2701 = vadd.f32 %v2696, %v2700
        %2702 = vst [vmem:[%s831] sm:$0xff] %v2701
        %s2703 = sand.u32 %s499, 1
        %s2704 = scalar_lea.sflag [#allocation5], %s2703
        %s2705 = sand.u32 %s499, 1
        %s2706 = smul.addr %s2705, 8
        %s2707 = scalar_lea.vmem [#allocation21], %s2706
        // Predicated region
        $region149: #{tpu_custom_call.1} parent=103 // pred_check
          %p2708 = pneg %p509
        $region150: #{tpu_custom_call.1} parent=103 // pred_check_branch
          %2710 = sbr.rel (%p2708) target = $region152
        $region151: #{tpu_custom_call.1} parent=103 // pred_region
          %2712 = vsyncadd %s2704, 0
          %s2713 = smul.addr %s45, 8
          %s2714 = scalar_lea.hbm %s21, %s2713
          %s2716 = sshll.u32 %s2707, 4
          %s2717 = int_to_ptr.vmem [resolvable:$true] %s2716
          %s2718 = sshll.u32 %s2714, 4
          %s2719 = int_to_ptr.hbm [resolvable:$true] %s2718
          %2721 = dma.vmem_to_hbm [thread:$0]  %s2717, 128, %s2719, %s2704
        $region152: #{tpu_custom_call.1} parent=103 // pred_fallthru
          _
      $region104: #{tpu_custom_call.1} parent=5 // pred_fallthru
        _
      %p2722 = scmp.le.s32.totalorder 2, %s40
      // Predicated region
      $region153: #{tpu_custom_call.1} parent=5 // pred_check
        %p2723 = pneg %p2722
      $region154: #{tpu_custom_call.1} parent=5 // pred_check_branch
        %2725 = sbr.rel (%p2723) target = $region156
      $region155: #{tpu_custom_call.1} parent=5 // pred_region
        %s2726 = ssub.s32 %s40, 2
        // Predicated region
        $region157: #{tpu_custom_call.1} parent=155 // pred_check
          %p2727 = pneg %p515
        $region158: #{tpu_custom_call.1} parent=155 // pred_check_branch
          %2729 = sbr.rel (%p2727) target = $region160
        $region159: #{tpu_custom_call.1} parent=155 // pred_region
          %s2730 = sand.u32 %s500, 1
          %s2731 = scalar_lea.sflag [#allocation5], %s2730
          %s2732 = sand.u32 %s500, 1
          %s2733 = smul.addr %s2732, 8
          %s2734 = scalar_lea.vmem [#allocation21], %s2733
          %2736 = dma.done %s2731, 128
        $region160: #{tpu_custom_call.1} parent=155 // pred_fallthru
          _
      $region156: #{tpu_custom_call.1} parent=5 // pred_fallthru
        _
    $region6: #{tpu_custom_call.1} parent=1 // loop_footer
      %s44 = sadd.s32 1, %s40
    $region7: #{tpu_custom_call.1} parent=1 // loop_footer_branch
      %39 = sbr.rel target = $region3
    $region8: #{tpu_custom_call.1} parent=1 // loop_exit
      _
    %2737 = vsyncpa [#allocation4], 1
    %s2738 = scalar_lea.sflag [#allocation4], 1
    %2739 = vsyncpa %s2738, 1
    %2740 = vsyncpa [#allocation7], 1
    %2741 = vsyncpa [#allocation10], 1
    %2742 = vsyncpa [#allocation13], 1
    %2743 = vsyncpa [#allocation16], 1
    %2744 = vsyncpa [#allocation19], 1
    %2745 = vsyncpa [#allocation5], 1
    %s2746 = scalar_lea.sflag [#allocation5], 1
    %2747 = vsyncpa %s2746, 1

</llo_original>
